<compile_context>
chip_gen: v5e
topology: v5e:2x2
jax: 0.10.0
libtpu: 0.0.40
codegen_flags: <defaults>
</compile_context>

<pallas_src>
import math

import jax
import jax.numpy as jnp
from jax.experimental import pallas as pl
from jax.experimental.pallas import tpu as pltpu


def _round_up(n: int, m: int) -> int:
    return ((n + m - 1) // m) * m


def _encoder_kernel(x_ref, w1_ref, b1_ref, w2_ref, b2_ref,
                    w3_ref, b3_ref, w4_ref, b4_ref, o_ref):
    """All four Linear(+ReLU) layers fused; activations never leave VMEM."""

    def dot(h, w_ref):
        # Cast the activation operand to the weight dtype (bf16 by default) so
        # the MXU runs native bf16 passes; accumulate in float32.
        return jnp.dot(h.astype(w_ref.dtype), w_ref[...],
                       preferred_element_type=jnp.float32)

    h = jnp.maximum(dot(x_ref[...], w1_ref) + b1_ref[...], 0.0)
    h = jnp.maximum(dot(h, w2_ref) + b2_ref[...], 0.0)
    h = jnp.maximum(dot(h, w3_ref) + b3_ref[...], 0.0)
    o_ref[...] = (dot(h, w4_ref) + b4_ref[...]).astype(o_ref.dtype)


class Encoder:
    """JAX/Pallas equivalent of the PyTorch Encoder module (fused MLP)."""

    HIDDEN = (500, 500, 2000)

    def __init__(self, input_dim, feature_dim, key=None,
                 compute_dtype=jnp.bfloat16):
        self.input_dim = int(input_dim)
        self.feature_dim = int(feature_dim)
        self.compute_dtype = compute_dtype
        if key is None:
            key = jax.random.PRNGKey(0)

        # Lane-aligned (multiple-of-128) padded sizes. Zero padding keeps the
        # math exact: padded weight columns / bias entries are zero, so padded
        # hidden activations are relu(0) = 0 and contribute nothing to the
        # next layer; padded output columns are sliced off in __call__.
        self._hpad = tuple(_round_up(h, 128) for h in self.HIDDEN)   # 512, 512, 2048
        self._fpad = _round_up(self.feature_dim, 128)

        dims = (self.input_dim, *self.HIDDEN, self.feature_dim)
        pdims = (self.input_dim, *self._hpad, self._fpad)

        # f32 master parameters (PyTorch-style init: U(-1/sqrt(fan_in), +)).
        self.weights_f32 = []
        self.biases_f32 = []
        # Padded compute copies fed to the kernel (weights in compute_dtype;
        # biases kept f32 and added to the f32 accumulator).
        self.weights = []
        self.biases = []
        for i in range(4):
            key, wk, bk = jax.random.split(key, 3)
            bound = 1.0 / math.sqrt(dims[i])
            # Stored (in_features, out_features): kernel computes x @ W, so the
            # MXU output is lane-dense with no in-kernel transposes.
            w = jax.random.uniform(wk, (dims[i], dims[i + 1]), jnp.float32,
                                   minval=-bound, maxval=bound)
            b = jax.random.uniform(bk, (dims[i + 1],), jnp.float32,
                                   minval=-bound, maxval=bound)
            self.weights_f32.append(w)
            self.biases_f32.append(b)

            wp = jnp.pad(w, ((0, pdims[i] - dims[i]),
                             (0, pdims[i + 1] - dims[i + 1])))
            bp = jnp.pad(b, (0, pdims[i + 1] - dims[i + 1]))
            self.weights.append(wp.astype(compute_dtype))
            self.biases.append(bp.reshape(1, -1).astype(jnp.float32))

    @staticmethod
    def _batch_tile(batch):
        if batch <= 256:
            return batch                     # single grid step
        if batch <= 1024:
            # >= 2 steps so "parallel" can shard across v7x's two TensorCores;
            # tiles stay <= 512 rows (v5e/v6e sweet spot) and multiple of 8.
            return _round_up(pl.cdiv(batch, 2), 8)
        return 512

    def __call__(self, x):
        batch, d = x.shape
        assert d == self.input_dim, (d, self.input_dim)
        fpad = self._fpad

        tb = self._batch_tile(batch)
        grid = (pl.cdiv(batch, tb),)         # ragged last block is masked by Pallas

        w1, w2, w3, w4 = self.weights
        b1, b2, b3, b4 = self.biases

        def row_map(i):
            return (i, 0)

        def fixed_map(i):
            return (0, 0)

        # Advisory cost estimate for XLA's scheduler.
        k_dims = (self.input_dim, *self._hpad)
        n_dims = (*self._hpad, fpad)
        flops = 2 * batch * sum(k * n for k, n in zip(k_dims, n_dims))
        param_bytes = (sum(w.size * w.dtype.itemsize for w in self.weights)
                       + sum(b.size * b.dtype.itemsize for b in self.biases))
        bytes_accessed = (x.size * x.dtype.itemsize + param_bytes
                          + batch * fpad * x.dtype.itemsize)

        # VMEM budget: resident (double-buffered) weights/biases + pipelined
        # x/out tiles + fused f32 activations. Raise the scoped limit only when
        # the estimate needs it, never past v7x's 64 MiB physical budget.
        itemsize = jnp.dtype(x.dtype).itemsize
        vmem_est = (2 * param_bytes
                    + 2 * tb * (self.input_dim + fpad) * itemsize
                    + 3 * tb * max(self._hpad) * 4)
        vmem_limit = int(min(max(vmem_est + (8 << 20), 32 << 20), 64 << 20))

        out = pl.pallas_call(
            _encoder_kernel,
            out_shape=jax.ShapeDtypeStruct((batch, fpad), x.dtype),
            grid_spec=pltpu.PrefetchScalarGridSpec(
                num_scalar_prefetch=0,
                grid=grid,
                in_specs=[
                    pl.BlockSpec((tb, self.input_dim), row_map),
                    # Constant index maps -> each weight/bias block is fetched
                    # once and stays resident in VMEM for the whole grid.
                    # TODO(synk): for very large input_dim (>~4k) on v7x, tile
                    # the layer-1 contraction (K grid axis / pl.ds loop over W1
                    # row-chunks) instead of keeping all of W1 resident.
                    pl.BlockSpec(w1.shape, fixed_map),
                    pl.BlockSpec(b1.shape, fixed_map),
                    pl.BlockSpec(w2.shape, fixed_map),
                    pl.BlockSpec(b2.shape, fixed_map),
                    pl.BlockSpec(w3.shape, fixed_map),
                    pl.BlockSpec(b3.shape, fixed_map),
                    pl.BlockSpec(w4.shape, fixed_map),
                    pl.BlockSpec(b4.shape, fixed_map),
                ],
                out_specs=pl.BlockSpec((tb, fpad), row_map),
            ),
            compiler_params=pltpu.CompilerParams(
                dimension_semantics=("parallel",),   # batch rows independent
                vmem_limit_bytes=vmem_limit,
            ),
            cost_estimate=pl.CostEstimate(
                flops=flops, transcendentals=0, bytes_accessed=bytes_accessed),
        )(x, w1, b1, w2, b2, w3, b3, w4, b4)

        # Drop the lane-padding columns (zero by construction).
        if fpad != self.feature_dim:
            out = out[:, :self.feature_dim]
        return out


if __name__ == "__main__":
    key = jax.random.PRNGKey(0)
    k_x, k_params = jax.random.split(key)

    # Small shapes consistent with the module's forward: x is (batch, input_dim).
    batch, input_dim, feature_dim = 8, 32, 16
    x = jax.random.normal(k_x, (batch, input_dim), dtype=jnp.float32)

    enc = Encoder(input_dim, feature_dim, key=k_params)
    out = jax.block_until_ready(enc(x))
    assert out.shape == (batch, feature_dim), (out.shape, (batch, feature_dim))

    # Reference 1: matched precision (bf16-rounded operands, f32 accumulation)
    # -- the kernel's exact compute recipe; agreement is accumulation-order noise.
    h = x
    for i in range(4):
        w = enc.weights[i].astype(jnp.float32)
        b = enc.biases[i]
        h = jnp.dot(h.astype(enc.compute_dtype).astype(jnp.float32), w,
                    precision=jax.lax.Precision.HIGHEST) + b
        if i < 3:
            h = jnp.maximum(h, 0.0)
    ref_matched = h[:, :feature_dim]

    # Reference 2: full-f32 semantics of the original PyTorch module
    # (documents the bf16-operand precision trade-off requested by the review).
    h = x
    for i in range(4):
        h = jnp.dot(h, enc.weights_f32[i],
                    precision=jax.lax.Precision.HIGHEST) + enc.biases_f32[i]
        if i < 3:
            h = jnp.maximum(h, 0.0)
    ref_f32 = h

    err_matched = float(jnp.max(jnp.abs(out - ref_matched)))
    err_f32 = float(jnp.max(jnp.abs(out - ref_f32)))
    assert jnp.allclose(out, ref_matched, rtol=1e-2, atol=1e-2), (
        f"kernel vs matched-precision reference mismatch, max_err={err_matched}")
    assert jnp.allclose(out, ref_f32, rtol=5e-2, atol=5e-2), (
        f"kernel vs f32 reference mismatch, max_err={err_f32}")

    print("KERNEL_OK")
</pallas_src>

<mosaic_0001>
module attributes {stable_mosaic.version = 11 : i64} {
  func.func @_encoder_kernel(%arg0: i32, %arg1: memref<8x32xf32, #tpu.memory_space<vmem>>, %arg2: memref<32x512xbf16, #tpu.memory_space<vmem>>, %arg3: memref<1x512xf32, #tpu.memory_space<vmem>>, %arg4: memref<512x512xbf16, #tpu.memory_space<vmem>>, %arg5: memref<1x512xf32, #tpu.memory_space<vmem>>, %arg6: memref<512x2048xbf16, #tpu.memory_space<vmem>>, %arg7: memref<1x2048xf32, #tpu.memory_space<vmem>>, %arg8: memref<2048x128xbf16, #tpu.memory_space<vmem>>, %arg9: memref<1x128xf32, #tpu.memory_space<vmem>>, %arg10: memref<8x128xf32, #tpu.memory_space<vmem>>) attributes {dimension_semantics = [#tpu.dimension_semantics<parallel>], iteration_bounds = array<i64: 1>, scalar_prefetch = 0 : i64, scratch_operands = 0 : i64, tpu.core_type = #tpu.core_type<tc>, window_params = [{transform_indices = @transform_0, window_bounds = array<i64: 8, 32>}, {pipeline_mode = #tpu.pipeline_mode<synchronous>, transform_indices = @transform_1, window_bounds = array<i64: 32, 512>}, {pipeline_mode = #tpu.pipeline_mode<synchronous>, transform_indices = @transform_2, window_bounds = array<i64: 1, 512>}, {pipeline_mode = #tpu.pipeline_mode<synchronous>, transform_indices = @transform_3, window_bounds = array<i64: 512, 512>}, {pipeline_mode = #tpu.pipeline_mode<synchronous>, transform_indices = @transform_4, window_bounds = array<i64: 1, 512>}, {pipeline_mode = #tpu.pipeline_mode<synchronous>, transform_indices = @transform_5, window_bounds = array<i64: 512, 2048>}, {pipeline_mode = #tpu.pipeline_mode<synchronous>, transform_indices = @transform_6, window_bounds = array<i64: 1, 2048>}, {pipeline_mode = #tpu.pipeline_mode<synchronous>, transform_indices = @transform_7, window_bounds = array<i64: 2048, 128>}, {pipeline_mode = #tpu.pipeline_mode<synchronous>, transform_indices = @transform_8, window_bounds = array<i64: 1, 128>}, {transform_indices = @transform_9, window_bounds = array<i64: 8, 128>}]} {
    %c0 = arith.constant 0 : index
    %c0_0 = arith.constant 0 : index
    %0 = vector.load %arg1[%c0, %c0_0] : memref<8x32xf32, #tpu.memory_space<vmem>>, vector<8x32xf32>
    %1 = arith.truncf %0 : vector<8x32xf32> to vector<8x32xbf16>
    %c0_1 = arith.constant 0 : index
    %c0_2 = arith.constant 0 : index
    %2 = vector.load %arg2[%c0_1, %c0_2] : memref<32x512xbf16, #tpu.memory_space<vmem>>, vector<32x512xbf16>
    %cst = arith.constant dense<0.000000e+00> : vector<8x512xf32>
    %3 = tpu.matmul %1, %2, %cst {dimension_numbers = #tpu.dot_dimension_numbers<[1], [0], [0], [1], [0, 0, 1, 1], [], []>} : vector<8x32xbf16>, vector<32x512xbf16>, vector<8x512xf32> -> vector<8x512xf32>
    %c0_3 = arith.constant 0 : index
    %c0_4 = arith.constant 0 : index
    %4 = vector.load %arg3[%c0_3, %c0_4] : memref<1x512xf32, #tpu.memory_space<vmem>>, vector<1x512xf32>
    %5 = vector.broadcast %4 : vector<1x512xf32> to vector<8x512xf32>
    %6 = arith.addf %3, %5 : vector<8x512xf32>
    %cst_5 = arith.constant 0.000000e+00 : f32
    %7 = vector.broadcast %cst_5 : f32 to vector<8x512xf32>
    %8 = arith.maximumf %6, %7 : vector<8x512xf32>
    %9 = arith.truncf %8 : vector<8x512xf32> to vector<8x512xbf16>
    %c0_6 = arith.constant 0 : index
    %c0_7 = arith.constant 0 : index
    %10 = vector.load %arg4[%c0_6, %c0_7] : memref<512x512xbf16, #tpu.memory_space<vmem>>, vector<512x512xbf16>
    %cst_8 = arith.constant dense<0.000000e+00> : vector<8x512xf32>
    %11 = tpu.matmul %9, %10, %cst_8 {dimension_numbers = #tpu.dot_dimension_numbers<[1], [0], [0], [1], [0, 0, 1, 1], [], []>} : vector<8x512xbf16>, vector<512x512xbf16>, vector<8x512xf32> -> vector<8x512xf32>
    %c0_9 = arith.constant 0 : index
    %c0_10 = arith.constant 0 : index
    %12 = vector.load %arg5[%c0_9, %c0_10] : memref<1x512xf32, #tpu.memory_space<vmem>>, vector<1x512xf32>
    %13 = vector.broadcast %12 : vector<1x512xf32> to vector<8x512xf32>
    %14 = arith.addf %11, %13 : vector<8x512xf32>
    %cst_11 = arith.constant 0.000000e+00 : f32
    %15 = vector.broadcast %cst_11 : f32 to vector<8x512xf32>
    %16 = arith.maximumf %14, %15 : vector<8x512xf32>
    %17 = arith.truncf %16 : vector<8x512xf32> to vector<8x512xbf16>
    %c0_12 = arith.constant 0 : index
    %c0_13 = arith.constant 0 : index
    %18 = vector.load %arg6[%c0_12, %c0_13] : memref<512x2048xbf16, #tpu.memory_space<vmem>>, vector<512x2048xbf16>
    %cst_14 = arith.constant dense<0.000000e+00> : vector<8x2048xf32>
    %19 = tpu.matmul %17, %18, %cst_14 {dimension_numbers = #tpu.dot_dimension_numbers<[1], [0], [0], [1], [0, 0, 1, 1], [], []>} : vector<8x512xbf16>, vector<512x2048xbf16>, vector<8x2048xf32> -> vector<8x2048xf32>
    %c0_15 = arith.constant 0 : index
    %c0_16 = arith.constant 0 : index
    %20 = vector.load %arg7[%c0_15, %c0_16] : memref<1x2048xf32, #tpu.memory_space<vmem>>, vector<1x2048xf32>
    %21 = vector.broadcast %20 : vector<1x2048xf32> to vector<8x2048xf32>
    %22 = arith.addf %19, %21 : vector<8x2048xf32>
    %cst_17 = arith.constant 0.000000e+00 : f32
    %23 = vector.broadcast %cst_17 : f32 to vector<8x2048xf32>
    %24 = arith.maximumf %22, %23 : vector<8x2048xf32>
    %25 = arith.truncf %24 : vector<8x2048xf32> to vector<8x2048xbf16>
    %c0_18 = arith.constant 0 : index
    %c0_19 = arith.constant 0 : index
    %26 = vector.load %arg8[%c0_18, %c0_19] : memref<2048x128xbf16, #tpu.memory_space<vmem>>, vector<2048x128xbf16>
    %cst_20 = arith.constant dense<0.000000e+00> : vector<8x128xf32>
    %27 = tpu.matmul %25, %26, %cst_20 {dimension_numbers = #tpu.dot_dimension_numbers<[1], [0], [0], [1], [0, 0, 1, 1], [], []>} : vector<8x2048xbf16>, vector<2048x128xbf16>, vector<8x128xf32> -> vector<8x128xf32>
    %c0_21 = arith.constant 0 : index
    %c0_22 = arith.constant 0 : index
    %28 = vector.load %arg9[%c0_21, %c0_22] : memref<1x128xf32, #tpu.memory_space<vmem>>, vector<1x128xf32>
    %29 = vector.broadcast %28 : vector<1x128xf32> to vector<8x128xf32>
    %30 = arith.addf %27, %29 : vector<8x128xf32>
    %c0_23 = arith.constant 0 : index
    %c0_24 = arith.constant 0 : index
    %31 = vector.load %arg10[%c0_23, %c0_24] : memref<8x128xf32, #tpu.memory_space<vmem>>, vector<8x128xf32>
    tpu.vector_store %arg10[%c0_23, %c0_24], %30 {strides = array<i32>} : memref<8x128xf32, #tpu.memory_space<vmem>>, vector<8x128xf32>,
    return
  }
  func.func @transform_0(%arg0: i32) -> (i32, i32) {
    %c0_i32 = arith.constant 0 : i32
    %c0_i32_0 = arith.constant 0 : i32
    return %arg0, %c0_i32 : i32, i32
  }
  func.func @transform_1(%arg0: i32) -> (i32, i32) {
    %c0_i32 = arith.constant 0 : i32
    %c0_i32_0 = arith.constant 0 : i32
    %c0_i32_1 = arith.constant 0 : i32
    return %c0_i32, %c0_i32_0 : i32, i32
  }
  func.func @transform_2(%arg0: i32) -> (i32, i32) {
    %c0_i32 = arith.constant 0 : i32
    %c0_i32_0 = arith.constant 0 : i32
    %c0_i32_1 = arith.constant 0 : i32
    return %c0_i32, %c0_i32_0 : i32, i32
  }
  func.func @transform_3(%arg0: i32) -> (i32, i32) {
    %c0_i32 = arith.constant 0 : i32
    %c0_i32_0 = arith.constant 0 : i32
    %c0_i32_1 = arith.constant 0 : i32
    return %c0_i32, %c0_i32_0 : i32, i32
  }
  func.func @transform_4(%arg0: i32) -> (i32, i32) {
    %c0_i32 = arith.constant 0 : i32
    %c0_i32_0 = arith.constant 0 : i32
    %c0_i32_1 = arith.constant 0 : i32
    return %c0_i32, %c0_i32_0 : i32, i32
  }
  func.func @transform_5(%arg0: i32) -> (i32, i32) {
    %c0_i32 = arith.constant 0 : i32
    %c0_i32_0 = arith.constant 0 : i32
    %c0_i32_1 = arith.constant 0 : i32
    return %c0_i32, %c0_i32_0 : i32, i32
  }
  func.func @transform_6(%arg0: i32) -> (i32, i32) {
    %c0_i32 = arith.constant 0 : i32
    %c0_i32_0 = arith.constant 0 : i32
    %c0_i32_1 = arith.constant 0 : i32
    return %c0_i32, %c0_i32_0 : i32, i32
  }
  func.func @transform_7(%arg0: i32) -> (i32, i32) {
    %c0_i32 = arith.constant 0 : i32
    %c0_i32_0 = arith.constant 0 : i32
    %c0_i32_1 = arith.constant 0 : i32
    return %c0_i32, %c0_i32_0 : i32, i32
  }
  func.func @transform_8(%arg0: i32) -> (i32, i32) {
    %c0_i32 = arith.constant 0 : i32
    %c0_i32_0 = arith.constant 0 : i32
    %c0_i32_1 = arith.constant 0 : i32
    return %c0_i32, %c0_i32_0 : i32, i32
  }
  func.func @transform_9(%arg0: i32) -> (i32, i32) {
    %c0_i32 = arith.constant 0 : i32
    %c0_i32_0 = arith.constant 0 : i32
    return %arg0, %c0_i32 : i32, i32
  }
}

</mosaic_0001>

<llo_original>
// kernel: tpu_custom_call.1
$region0: #{tpu_custom_call.1}
  #allocation0 [shape = 'u32[]', space=smem, size = 0x4, offset = 0x4, fixed_abs, tag = 'smem constant byte address 0x4 - core index']
  #allocation1 [shape = 'u32[72,128]{1,0:T(1,128)}', space=vmem, size = 0x9000, scoped, tag = 'internal scratch']
  %s0 = inlined_call_operand.hbm [shape: f32[8,32], index: 0, kind: input, shape index: {}]
  %s1 = inlined_call_operand.hbm [shape: bf16[32,512], index: 1, kind: input, shape index: {}]
  %s2 = inlined_call_operand.hbm [shape: f32[1,512], index: 2, kind: input, shape index: {}]
  %s3 = inlined_call_operand.hbm [shape: bf16[512,512], index: 3, kind: input, shape index: {}]
  %s4 = inlined_call_operand.hbm [shape: f32[1,512], index: 4, kind: input, shape index: {}]
  %s5 = inlined_call_operand.hbm [shape: bf16[512,2048], index: 5, kind: input, shape index: {}]
  %s6 = inlined_call_operand.hbm [shape: f32[1,2048], index: 6, kind: input, shape index: {}]
  %s7 = inlined_call_operand.hbm [shape: bf16[2048,128], index: 7, kind: input, shape index: {}]
  %s8 = inlined_call_operand.hbm [shape: f32[1,128], index: 8, kind: input, shape index: {}]
  %s9 = inlined_call_operand.hbm [shape: f32[8,128], index: 9, kind: output, shape index: {}]
  %s10 = sld [smem:[#allocation0]]
  $region82: #{tpu_custom_call.1} parent=0
    _
  %s12 = ssub.s32 1, %s10
  %s13 = scalar_select 0, %s12, %s10
  $region1: #{tpu_custom_call.1} parent=0
    #allocation2 [shape = 'u8[4096]{0}', space=vmem, size = 0x1000, scoped, tag = 'input window, operand 0, single buffered']
    #allocation3 [shape = 's32[1]{0}', space=sflag, size = 0x4, scoped, tag = 'scoped memory for tpu_custom_call.1']
    #allocation4 [shape = 's32[1]{0}', space=sflag, size = 0x4, scoped, tag = 'scoped memory for tpu_custom_call.1']
    #allocation5 [shape = 'u8[32768]{0}', space=vmem, size = 0x8000, scoped, tag = 'input window, operand 1, single buffered']
    #allocation6 [shape = 's32[1]{0}', space=sflag, size = 0x4, scoped, tag = 'scoped memory for tpu_custom_call.1']
    #allocation7 [shape = 'u8[2048]{0}', space=vmem, size = 0x800, scoped, tag = 'input window, operand 2, single buffered']
    #allocation8 [shape = 'u8[524288]{0}', space=vmem, size = 0x80000, scoped, tag = 'input window, operand 3, single buffered']
    #allocation9 [shape = 's32[1]{0}', space=sflag, size = 0x4, scoped, tag = 'scoped memory for tpu_custom_call.1']
    #allocation10 [shape = 'u8[2048]{0}', space=vmem, size = 0x800, scoped, tag = 'input window, operand 4, single buffered']
    #allocation11 [shape = 'u8[2097152]{0}', space=vmem, size = 0x200000, scoped, tag = 'input window, operand 5, single buffered']
    #allocation12 [shape = 's32[1]{0}', space=sflag, size = 0x4, scoped, tag = 'scoped memory for tpu_custom_call.1']
    #allocation13 [shape = 'u8[8192]{0}', space=vmem, size = 0x2000, scoped, tag = 'input window, operand 6, single buffered']
    #allocation14 [shape = 'u8[524288]{0}', space=vmem, size = 0x80000, scoped, tag = 'input window, operand 7, single buffered']
    #allocation15 [shape = 's32[1]{0}', space=sflag, size = 0x4, scoped, tag = 'scoped memory for tpu_custom_call.1']
    #allocation16 [shape = 'u8[512]{0}', space=vmem, size = 0x400, scoped, tag = 'input window, operand 8, single buffered']
    #allocation17 [shape = 'u8[4096]{0}', space=vmem, size = 0x1000, scoped, tag = 'output window, operand 0, single buffered']
    %14 = vsyncpa [#allocation3], 0
    %15 = vsyncpa [#allocation6], 0
    %16 = vsyncpa [#allocation9], 0
    %17 = vsyncpa [#allocation12], 0
    %18 = vsyncpa [#allocation15], 0
    %19 = vsyncpa [#allocation4], 0
    // Predicated region
    $region2: #{tpu_custom_call.1} parent=1 // pred_check
      _
    $region3: #{tpu_custom_call.1} parent=1 // pred_check_branch
      %21 = sbr.rel (0) target = $region5
    $region4: #{tpu_custom_call.1} parent=1 // pred_region
      %23 = vsyncadd [#allocation3], 0
      %s25 = sshll.u32 %s0, 4
      %s26 = int_to_ptr.hbm [resolvable:$true] %s25
      %s27 = sshll.u32 [#allocation2], 4
      %s28 = int_to_ptr.vmem [resolvable:$true] %s27
      %30 = dma.hbm_to_vmem [thread:$0]  %s26, 128, %s28, [#allocation3]
    $region5: #{tpu_custom_call.1} parent=1 // pred_fallthru
      _
    // Predicated region
    $region6: #{tpu_custom_call.1} parent=1 // pred_check
      _
    $region7: #{tpu_custom_call.1} parent=1 // pred_check_branch
      %32 = sbr.rel (0) target = $region9
    $region8: #{tpu_custom_call.1} parent=1 // pred_region
      %34 = vsyncadd [#allocation6], 0
      %s35 = sshll.u32 %s1, 4
      %s36 = int_to_ptr.hbm [resolvable:$true] %s35
      %s37 = sshll.u32 [#allocation5], 4
      %s38 = int_to_ptr.vmem [resolvable:$true] %s37
      %43 = dma.hbm_to_vmem [thread:$0]  %s36, 1024, %s38, [#allocation6], 256, 256, 16
    $region9: #{tpu_custom_call.1} parent=1 // pred_fallthru
      _
    // Predicated region
    $region10: #{tpu_custom_call.1} parent=1 // pred_check
      _
    $region11: #{tpu_custom_call.1} parent=1 // pred_check_branch
      %45 = sbr.rel (0) target = $region13
    $region12: #{tpu_custom_call.1} parent=1 // pred_region
      %47 = vsyncadd [#allocation6], 0
      %s49 = sshll.u32 %s2, 4
      %s50 = int_to_ptr.hbm [resolvable:$true] %s49
      %s51 = sshll.u32 [#allocation7], 4
      %s52 = int_to_ptr.vmem [resolvable:$true] %s51
      %54 = dma.hbm_to_vmem [thread:$0]  %s50, 64, %s52, [#allocation6]
    $region13: #{tpu_custom_call.1} parent=1 // pred_fallthru
      _
    // Predicated region
    $region14: #{tpu_custom_call.1} parent=1 // pred_check
      _
    $region15: #{tpu_custom_call.1} parent=1 // pred_check_branch
      %56 = sbr.rel (0) target = $region17
    $region16: #{tpu_custom_call.1} parent=1 // pred_region
      %58 = vsyncadd [#allocation9], 0
      %s59 = sshll.u32 %s3, 4
      %s60 = int_to_ptr.hbm [resolvable:$true] %s59
      %s61 = sshll.u32 [#allocation8], 4
      %s62 = int_to_ptr.vmem [resolvable:$true] %s61
      %67 = dma.hbm_to_vmem [thread:$0]  %s60, 16384, %s62, [#allocation9], 256, 256, 16
    $region17: #{tpu_custom_call.1} parent=1 // pred_fallthru
      _
    // Predicated region
    $region18: #{tpu_custom_call.1} parent=1 // pred_check
      _
    $region19: #{tpu_custom_call.1} parent=1 // pred_check_branch
      %69 = sbr.rel (0) target = $region21
    $region20: #{tpu_custom_call.1} parent=1 // pred_region
      %71 = vsyncadd [#allocation9], 0
      %s73 = sshll.u32 %s4, 4
      %s74 = int_to_ptr.hbm [resolvable:$true] %s73
      %s75 = sshll.u32 [#allocation10], 4
      %s76 = int_to_ptr.vmem [resolvable:$true] %s75
      %78 = dma.hbm_to_vmem [thread:$0]  %s74, 64, %s76, [#allocation9]
    $region21: #{tpu_custom_call.1} parent=1 // pred_fallthru
      _
    // Predicated region
    $region22: #{tpu_custom_call.1} parent=1 // pred_check
      _
    $region23: #{tpu_custom_call.1} parent=1 // pred_check_branch
      %80 = sbr.rel (0) target = $region25
    $region24: #{tpu_custom_call.1} parent=1 // pred_region
      %82 = vsyncadd [#allocation12], 0
      %s83 = sshll.u32 %s5, 4
      %s84 = int_to_ptr.hbm [resolvable:$true] %s83
      %s85 = sshll.u32 [#allocation11], 4
      %s86 = int_to_ptr.vmem [resolvable:$true] %s85
      %91 = dma.hbm_to_vmem [thread:$0]  %s84, 65536, %s86, [#allocation12], 1024, 1024, 64
    $region25: #{tpu_custom_call.1} parent=1 // pred_fallthru
      _
    // Predicated region
    $region26: #{tpu_custom_call.1} parent=1 // pred_check
      _
    $region27: #{tpu_custom_call.1} parent=1 // pred_check_branch
      %93 = sbr.rel (0) target = $region29
    $region28: #{tpu_custom_call.1} parent=1 // pred_region
      %95 = vsyncadd [#allocation12], 0
      %s97 = sshll.u32 %s6, 4
      %s98 = int_to_ptr.hbm [resolvable:$true] %s97
      %s99 = sshll.u32 [#allocation13], 4
      %s100 = int_to_ptr.vmem [resolvable:$true] %s99
      %102 = dma.hbm_to_vmem [thread:$0]  %s98, 256, %s100, [#allocation12]
    $region29: #{tpu_custom_call.1} parent=1 // pred_fallthru
      _
    // Predicated region
    $region30: #{tpu_custom_call.1} parent=1 // pred_check
      _
    $region31: #{tpu_custom_call.1} parent=1 // pred_check_branch
      %104 = sbr.rel (0) target = $region33
    $region32: #{tpu_custom_call.1} parent=1 // pred_region
      %106 = vsyncadd [#allocation15], 0
      %s107 = sshll.u32 %s7, 4
      %s108 = int_to_ptr.hbm [resolvable:$true] %s107
      %s109 = sshll.u32 [#allocation14], 4
      %s110 = int_to_ptr.vmem [resolvable:$true] %s109
      %115 = dma.hbm_to_vmem [thread:$0]  %s108, 16384, %s110, [#allocation15], 64, 64, 4
    $region33: #{tpu_custom_call.1} parent=1 // pred_fallthru
      _
    // Predicated region
    $region34: #{tpu_custom_call.1} parent=1 // pred_check
      _
    $region35: #{tpu_custom_call.1} parent=1 // pred_check_branch
      %117 = sbr.rel (0) target = $region37
    $region36: #{tpu_custom_call.1} parent=1 // pred_region
      %119 = vsyncadd [#allocation15], 0
      %s121 = sshll.u32 %s8, 4
      %s122 = int_to_ptr.hbm [resolvable:$true] %s121
      %s123 = sshll.u32 [#allocation16], 4
      %s124 = int_to_ptr.vmem [resolvable:$true] %s123
      %126 = dma.hbm_to_vmem [thread:$0]  %s122, 16, %s124, [#allocation15]
    $region37: #{tpu_custom_call.1} parent=1 // pred_fallthru
      _
    // Predicated region
    $region38: #{tpu_custom_call.1} parent=1 // pred_check
      _
    $region39: #{tpu_custom_call.1} parent=1 // pred_check_branch
      %128 = sbr.rel (0) target = $region41
    $region40: #{tpu_custom_call.1} parent=1 // pred_region
      %130 = dma.done [#allocation3], 128
    $region41: #{tpu_custom_call.1} parent=1 // pred_fallthru
      _
    // Predicated region
    $region42: #{tpu_custom_call.1} parent=1 // pred_check
      _
    $region43: #{tpu_custom_call.1} parent=1 // pred_check_branch
      %132 = sbr.rel (0) target = $region45
    $region44: #{tpu_custom_call.1} parent=1 // pred_region
      %134 = dma.done [#allocation6], 1024
    $region45: #{tpu_custom_call.1} parent=1 // pred_fallthru
      _
    // Predicated region
    $region46: #{tpu_custom_call.1} parent=1 // pred_check
      _
    $region47: #{tpu_custom_call.1} parent=1 // pred_check_branch
      %136 = sbr.rel (0) target = $region49
    $region48: #{tpu_custom_call.1} parent=1 // pred_region
      %138 = dma.done [#allocation6], 64
    $region49: #{tpu_custom_call.1} parent=1 // pred_fallthru
      _
    // Predicated region
    $region50: #{tpu_custom_call.1} parent=1 // pred_check
      _
    $region51: #{tpu_custom_call.1} parent=1 // pred_check_branch
      %140 = sbr.rel (0) target = $region53
    $region52: #{tpu_custom_call.1} parent=1 // pred_region
      %142 = dma.done [#allocation9], 16384
    $region53: #{tpu_custom_call.1} parent=1 // pred_fallthru
      _
    // Predicated region
    $region54: #{tpu_custom_call.1} parent=1 // pred_check
      _
    $region55: #{tpu_custom_call.1} parent=1 // pred_check_branch
      %144 = sbr.rel (0) target = $region57
    $region56: #{tpu_custom_call.1} parent=1 // pred_region
      %146 = dma.done [#allocation9], 64
    $region57: #{tpu_custom_call.1} parent=1 // pred_fallthru
      _
    // Predicated region
    $region58: #{tpu_custom_call.1} parent=1 // pred_check
      _
    $region59: #{tpu_custom_call.1} parent=1 // pred_check_branch
      %148 = sbr.rel (0) target = $region61
    $region60: #{tpu_custom_call.1} parent=1 // pred_region
      %150 = dma.done [#allocation12], 65536
    $region61: #{tpu_custom_call.1} parent=1 // pred_fallthru
      _
    // Predicated region
    $region62: #{tpu_custom_call.1} parent=1 // pred_check
      _
    $region63: #{tpu_custom_call.1} parent=1 // pred_check_branch
      %152 = sbr.rel (0) target = $region65
    $region64: #{tpu_custom_call.1} parent=1 // pred_region
      %154 = dma.done [#allocation12], 256
    $region65: #{tpu_custom_call.1} parent=1 // pred_fallthru
      _
    // Predicated region
    $region66: #{tpu_custom_call.1} parent=1 // pred_check
      _
    $region67: #{tpu_custom_call.1} parent=1 // pred_check_branch
      %156 = sbr.rel (0) target = $region69
    $region68: #{tpu_custom_call.1} parent=1 // pred_region
      %158 = dma.done [#allocation15], 16384
    $region69: #{tpu_custom_call.1} parent=1 // pred_fallthru
      _
    // Predicated region
    $region70: #{tpu_custom_call.1} parent=1 // pred_check
      _
    $region71: #{tpu_custom_call.1} parent=1 // pred_check_branch
      %160 = sbr.rel (0) target = $region73
    $region72: #{tpu_custom_call.1} parent=1 // pred_region
      %162 = dma.done [#allocation15], 16
    $region73: #{tpu_custom_call.1} parent=1 // pred_fallthru
      _
    %v164 = vld [vmem:[#allocation2] sm:$0xff]
    %v165 = vpack.c.bf16 %v164, %v164
    %v166 = vld [vmem:[#allocation5] sm:$0xff]
    %v167 = vld [vmem:[#allocation5 + $0x8] sm:$0xff]
    %v168 = vld [vmem:[#allocation5 + $0x10] sm:$0xff]
    %v169 = vld [vmem:[#allocation5 + $0x18] sm:$0xff]
    %v170 = vld [vmem:[#allocation5 + $0x20] sm:$0xff]
    %v171 = vld [vmem:[#allocation5 + $0x28] sm:$0xff]
    %v172 = vld [vmem:[#allocation5 + $0x30] sm:$0xff]
    %v173 = vld [vmem:[#allocation5 + $0x38] sm:$0xff]
    %v174 = vld [vmem:[#allocation7] sm:$0xf]
    %v176 = vperm.slane %v174, 0
    %v177 = vperm.slane %v174, 1
    %v178 = vperm.slane %v174, 2
    %v179 = vperm.slane %v174, 3
    %v192 = vunpack.c.l.b16 %v166
    %v193 = vunpack.c.h.b16 %v166
    %v194 = vunpack.c.l.b16 %v167
    %v195 = vunpack.c.h.b16 %v167
    %v196 = vunpack.c.l.b16 %v168
    %v197 = vunpack.c.h.b16 %v168
    %v198 = vunpack.c.l.b16 %v169
    %v199 = vunpack.c.h.b16 %v169
    %v200 = vunpack.c.l.b16 %v170
    %v201 = vunpack.c.h.b16 %v170
    %v202 = vunpack.c.l.b16 %v171
    %v203 = vunpack.c.h.b16 %v171
    %v204 = vunpack.c.l.b16 %v172
    %v205 = vunpack.c.h.b16 %v172
    %v206 = vunpack.c.l.b16 %v173
    %v207 = vunpack.c.h.b16 %v173
    %v208 = vpack.c.b16 %v196, %v192
    %v209 = vpack.c.b16 %v197, %v193
    %v210 = vpack.c.b16 %v198, %v194
    %v211 = vpack.c.b16 %v199, %v195
    %v212 = vpack.c.b16 %v204, %v200
    %v213 = vpack.c.b16 %v205, %v201
    %v214 = vpack.c.b16 %v206, %v202
    %v215 = vpack.c.b16 %v207, %v203
    %vm224 = vcmask 261120
    %v226 = vsel %vm224, %v165, 0
    %228 = vmatpush.bf16.msra.mxu0 0
    %229 = vmatpush.bf16.msra.mxu0 0
    %230 = vmatpush.bf16.msra.mxu0 0
    %231 = vmatpush.bf16.msra.mxu0 0
    %232 = vmatpush.bf16.msra.mxu0 0
    %233 = vmatpush.bf16.msra.mxu0 0
    %234 = vmatpush.bf16.msra.mxu0 %v212
    %235 = vmatpush.bf16.msra.mxu0 %v208
    %236 = vmatmul.bf16.gmra.mxu0 %v226
    %v237 = vpop.f32.mrf.mxu0
    %v238 = vadd.f32 %v176, %v237
    %v239 = vpop.f32.mrf.mxu0
    %240 = vdwg.mxu0
    %241 = vmatpush.bf16.msra.mxu0 0
    %242 = vmatpush.bf16.msra.mxu0 0
    %243 = vmatpush.bf16.msra.mxu0 0
    %244 = vmatpush.bf16.msra.mxu0 0
    %245 = vmatpush.bf16.msra.mxu0 0
    %246 = vmatpush.bf16.msra.mxu0 0
    %247 = vmatpush.bf16.msra.mxu0 %v213
    %248 = vmatpush.bf16.msra.mxu0 %v209
    %249 = vmatmul.bf16.gmra.mxu0 %v226
    %v250 = vpop.f32.mrf.mxu0
    %v251 = vadd.f32 %v177, %v250
    %v252 = vpop.f32.mrf.mxu0
    %253 = vdwg.mxu0
    %254 = vmatpush.bf16.msra.mxu0 0
    %255 = vmatpush.bf16.msra.mxu0 0
    %256 = vmatpush.bf16.msra.mxu0 0
    %257 = vmatpush.bf16.msra.mxu0 0
    %258 = vmatpush.bf16.msra.mxu0 0
    %259 = vmatpush.bf16.msra.mxu0 0
    %260 = vmatpush.bf16.msra.mxu0 %v214
    %261 = vmatpush.bf16.msra.mxu0 %v210
    %262 = vmatmul.bf16.gmra.mxu0 %v226
    %v263 = vpop.f32.mrf.mxu0
    %v264 = vadd.f32 %v178, %v263
    %v265 = vpop.f32.mrf.mxu0
    %266 = vdwg.mxu0
    %267 = vmatpush.bf16.msra.mxu0 0
    %268 = vmatpush.bf16.msra.mxu0 0
    %269 = vmatpush.bf16.msra.mxu0 0
    %270 = vmatpush.bf16.msra.mxu0 0
    %271 = vmatpush.bf16.msra.mxu0 0
    %272 = vmatpush.bf16.msra.mxu0 0
    %273 = vmatpush.bf16.msra.mxu0 %v215
    %274 = vmatpush.bf16.msra.mxu0 %v211
    %275 = vmatmul.bf16.gmra.mxu0 %v226
    %v276 = vpop.f32.mrf.mxu0
    %v277 = vadd.f32 %v179, %v276
    %v278 = vpop.f32.mrf.mxu0
    %279 = vdwg.mxu0
    %v280 = vmax.f32 %v238, 0.0
    %v281 = vmax.f32 %v251, 0.0
    %v282 = vmax.f32 %v264, 0.0
    %v283 = vmax.f32 %v277, 0.0
    %v284 = vpack.c.bf16 %v280, %v280
    %v285 = vpack.c.bf16 %v281, %v281
    %v286 = vpack.c.bf16 %v282, %v282
    %v287 = vpack.c.bf16 %v283, %v283
    %v288 = vld [vmem:[#allocation8] sm:$0xff]
    %v289 = vld [vmem:[#allocation8 + $0x8] sm:$0xff]
    %v290 = vld [vmem:[#allocation8 + $0x10] sm:$0xff]
    %v291 = vld [vmem:[#allocation8 + $0x18] sm:$0xff]
    %v292 = vld [vmem:[#allocation8 + $0x20] sm:$0xff]
    %v293 = vld [vmem:[#allocation8 + $0x28] sm:$0xff]
    %v294 = vld [vmem:[#allocation8 + $0x30] sm:$0xff]
    %v295 = vld [vmem:[#allocation8 + $0x38] sm:$0xff]
    %v296 = vld [vmem:[#allocation8 + $0x40] sm:$0xff]
    %v297 = vld [vmem:[#allocation8 + $0x48] sm:$0xff]
    %v298 = vld [vmem:[#allocation8 + $0x50] sm:$0xff]
    %v299 = vld [vmem:[#allocation8 + $0x58] sm:$0xff]
    %v300 = vld [vmem:[#allocation8 + $0x60] sm:$0xff]
    %v301 = vld [vmem:[#allocation8 + $0x68] sm:$0xff]
    %v302 = vld [vmem:[#allocation8 + $0x70] sm:$0xff]
    %v303 = vld [vmem:[#allocation8 + $0x78] sm:$0xff]
    %v304 = vld [vmem:[#allocation8 + $0x80] sm:$0xff]
    %v305 = vld [vmem:[#allocation8 + $0x88] sm:$0xff]
    %v306 = vld [vmem:[#allocation8 + $0x90] sm:$0xff]
    %v307 = vld [vmem:[#allocation8 + $0x98] sm:$0xff]
    %v308 = vld [vmem:[#allocation8 + $0xa0] sm:$0xff]
    %v309 = vld [vmem:[#allocation8 + $0xa8] sm:$0xff]
    %v310 = vld [vmem:[#allocation8 + $0xb0] sm:$0xff]
    %v311 = vld [vmem:[#allocation8 + $0xb8] sm:$0xff]
    %v312 = vld [vmem:[#allocation8 + $0xc0] sm:$0xff]
    %v313 = vld [vmem:[#allocation8 + $0xc8] sm:$0xff]
    %v314 = vld [vmem:[#allocation8 + $0xd0] sm:$0xff]
    %v315 = vld [vmem:[#allocation8 + $0xd8] sm:$0xff]
    %v316 = vld [vmem:[#allocation8 + $0xe0] sm:$0xff]
    %v317 = vld [vmem:[#allocation8 + $0xe8] sm:$0xff]
    %v318 = vld [vmem:[#allocation8 + $0xf0] sm:$0xff]
    %v319 = vld [vmem:[#allocation8 + $0xf8] sm:$0xff]
    %v320 = vld [vmem:[#allocation8 + $0x100] sm:$0xff]
    %v321 = vld [vmem:[#allocation8 + $0x108] sm:$0xff]
    %v322 = vld [vmem:[#allocation8 + $0x110] sm:$0xff]
    %v323 = vld [vmem:[#allocation8 + $0x118] sm:$0xff]
    %v324 = vld [vmem:[#allocation8 + $0x120] sm:$0xff]
    %v325 = vld [vmem:[#allocation8 + $0x128] sm:$0xff]
    %v326 = vld [vmem:[#allocation8 + $0x130] sm:$0xff]
    %v327 = vld [vmem:[#allocation8 + $0x138] sm:$0xff]
    %v328 = vld [vmem:[#allocation8 + $0x140] sm:$0xff]
    %v329 = vld [vmem:[#allocation8 + $0x148] sm:$0xff]
    %v330 = vld [vmem:[#allocation8 + $0x150] sm:$0xff]
    %v331 = vld [vmem:[#allocation8 + $0x158] sm:$0xff]
    %v332 = vld [vmem:[#allocation8 + $0x160] sm:$0xff]
    %v333 = vld [vmem:[#allocation8 + $0x168] sm:$0xff]
    %v334 = vld [vmem:[#allocation8 + $0x170] sm:$0xff]
    %v335 = vld [vmem:[#allocation8 + $0x178] sm:$0xff]
    %v336 = vld [vmem:[#allocation8 + $0x180] sm:$0xff]
    %v337 = vld [vmem:[#allocation8 + $0x188] sm:$0xff]
    %v338 = vld [vmem:[#allocation8 + $0x190] sm:$0xff]
    %v339 = vld [vmem:[#allocation8 + $0x198] sm:$0xff]
    %v340 = vld [vmem:[#allocation8 + $0x1a0] sm:$0xff]
    %v341 = vld [vmem:[#allocation8 + $0x1a8] sm:$0xff]
    %v342 = vld [vmem:[#allocation8 + $0x1b0] sm:$0xff]
    %v343 = vld [vmem:[#allocation8 + $0x1b8] sm:$0xff]
    %v344 = vld [vmem:[#allocation8 + $0x1c0] sm:$0xff]
    %v345 = vld [vmem:[#allocation8 + $0x1c8] sm:$0xff]
    %v346 = vld [vmem:[#allocation8 + $0x1d0] sm:$0xff]
    %v347 = vld [vmem:[#allocation8 + $0x1d8] sm:$0xff]
    %v348 = vld [vmem:[#allocation8 + $0x1e0] sm:$0xff]
    %v349 = vld [vmem:[#allocation8 + $0x1e8] sm:$0xff]
    %v350 = vld [vmem:[#allocation8 + $0x1f0] sm:$0xff]
    %v351 = vld [vmem:[#allocation8 + $0x1f8] sm:$0xff]
    %v352 = vld [vmem:[#allocation8 + $0x200] sm:$0xff]
    %v353 = vld [vmem:[#allocation8 + $0x208] sm:$0xff]
    %v354 = vld [vmem:[#allocation8 + $0x210] sm:$0xff]
    %v355 = vld [vmem:[#allocation8 + $0x218] sm:$0xff]
    %v356 = vld [vmem:[#allocation8 + $0x220] sm:$0xff]
    %v357 = vld [vmem:[#allocation8 + $0x228] sm:$0xff]
    %v358 = vld [vmem:[#allocation8 + $0x230] sm:$0xff]
    %v359 = vld [vmem:[#allocation8 + $0x238] sm:$0xff]
    %v360 = vld [vmem:[#allocation8 + $0x240] sm:$0xff]
    %v361 = vld [vmem:[#allocation8 + $0x248] sm:$0xff]
    %v362 = vld [vmem:[#allocation8 + $0x250] sm:$0xff]
    %v363 = vld [vmem:[#allocation8 + $0x258] sm:$0xff]
    %v364 = vld [vmem:[#allocation8 + $0x260] sm:$0xff]
    %v365 = vld [vmem:[#allocation8 + $0x268] sm:$0xff]
    %v366 = vld [vmem:[#allocation8 + $0x270] sm:$0xff]
    %v367 = vld [vmem:[#allocation8 + $0x278] sm:$0xff]
    %v368 = vld [vmem:[#allocation8 + $0x280] sm:$0xff]
    %v369 = vld [vmem:[#allocation8 + $0x288] sm:$0xff]
    %v370 = vld [vmem:[#allocation8 + $0x290] sm:$0xff]
    %v371 = vld [vmem:[#allocation8 + $0x298] sm:$0xff]
    %v372 = vld [vmem:[#allocation8 + $0x2a0] sm:$0xff]
    %v373 = vld [vmem:[#allocation8 + $0x2a8] sm:$0xff]
    %v374 = vld [vmem:[#allocation8 + $0x2b0] sm:$0xff]
    %v375 = vld [vmem:[#allocation8 + $0x2b8] sm:$0xff]
    %v376 = vld [vmem:[#allocation8 + $0x2c0] sm:$0xff]
    %v377 = vld [vmem:[#allocation8 + $0x2c8] sm:$0xff]
    %v378 = vld [vmem:[#allocation8 + $0x2d0] sm:$0xff]
    %v379 = vld [vmem:[#allocation8 + $0x2d8] sm:$0xff]
    %v380 = vld [vmem:[#allocation8 + $0x2e0] sm:$0xff]
    %v381 = vld [vmem:[#allocation8 + $0x2e8] sm:$0xff]
    %v382 = vld [vmem:[#allocation8 + $0x2f0] sm:$0xff]
    %v383 = vld [vmem:[#allocation8 + $0x2f8] sm:$0xff]
    %v384 = vld [vmem:[#allocation8 + $0x300] sm:$0xff]
    %v385 = vld [vmem:[#allocation8 + $0x308] sm:$0xff]
    %v386 = vld [vmem:[#allocation8 + $0x310] sm:$0xff]
    %v387 = vld [vmem:[#allocation8 + $0x318] sm:$0xff]
    %v388 = vld [vmem:[#allocation8 + $0x320] sm:$0xff]
    %v389 = vld [vmem:[#allocation8 + $0x328] sm:$0xff]
    %v390 = vld [vmem:[#allocation8 + $0x330] sm:$0xff]
    %v391 = vld [vmem:[#allocation8 + $0x338] sm:$0xff]
    %v392 = vld [vmem:[#allocation8 + $0x340] sm:$0xff]
    %v393 = vld [vmem:[#allocation8 + $0x348] sm:$0xff]
    %v394 = vld [vmem:[#allocation8 + $0x350] sm:$0xff]
    %v395 = vld [vmem:[#allocation8 + $0x358] sm:$0xff]
    %v396 = vld [vmem:[#allocation8 + $0x360] sm:$0xff]
    %v397 = vld [vmem:[#allocation8 + $0x368] sm:$0xff]
    %v398 = vld [vmem:[#allocation8 + $0x370] sm:$0xff]
    %v399 = vld [vmem:[#allocation8 + $0x378] sm:$0xff]
    %v400 = vld [vmem:[#allocation8 + $0x380] sm:$0xff]
    %v401 = vld [vmem:[#allocation8 + $0x388] sm:$0xff]
    %v402 = vld [vmem:[#allocation8 + $0x390] sm:$0xff]
    %v403 = vld [vmem:[#allocation8 + $0x398] sm:$0xff]
    %v404 = vld [vmem:[#allocation8 + $0x3a0] sm:$0xff]
    %v405 = vld [vmem:[#allocation8 + $0x3a8] sm:$0xff]
    %v406 = vld [vmem:[#allocation8 + $0x3b0] sm:$0xff]
    %v407 = vld [vmem:[#allocation8 + $0x3b8] sm:$0xff]
    %v408 = vld [vmem:[#allocation8 + $0x3c0] sm:$0xff]
    %v409 = vld [vmem:[#allocation8 + $0x3c8] sm:$0xff]
    %v410 = vld [vmem:[#allocation8 + $0x3d0] sm:$0xff]
    %v411 = vld [vmem:[#allocation8 + $0x3d8] sm:$0xff]
    %v412 = vld [vmem:[#allocation8 + $0x3e0] sm:$0xff]
    %v413 = vld [vmem:[#allocation8 + $0x3e8] sm:$0xff]
    %v414 = vld [vmem:[#allocation8 + $0x3f0] sm:$0xff]
    %v415 = vld [vmem:[#allocation8 + $0x3f8] sm:$0xff]
    %v416 = vld [vmem:[#allocation10] sm:$0xf]
    %v418 = vperm.slane %v416, 0
    %v419 = vperm.slane %v416, 1
    %v420 = vperm.slane %v416, 2
    %v421 = vperm.slane %v416, 3
    %v554 = vunpack.c.l.b16 %v288
    %v555 = vunpack.c.h.b16 %v288
    %v556 = vunpack.c.l.b16 %v289
    %v557 = vunpack.c.h.b16 %v289
    %v558 = vunpack.c.l.b16 %v290
    %v559 = vunpack.c.h.b16 %v290
    %v560 = vunpack.c.l.b16 %v291
    %v561 = vunpack.c.h.b16 %v291
    %v562 = vunpack.c.l.b16 %v292
    %v563 = vunpack.c.h.b16 %v292
    %v564 = vunpack.c.l.b16 %v293
    %v565 = vunpack.c.h.b16 %v293
    %v566 = vunpack.c.l.b16 %v294
    %v567 = vunpack.c.h.b16 %v294
    %v568 = vunpack.c.l.b16 %v295
    %v569 = vunpack.c.h.b16 %v295
    %v570 = vunpack.c.l.b16 %v296
    %v571 = vunpack.c.h.b16 %v296
    %v572 = vunpack.c.l.b16 %v297
    %v573 = vunpack.c.h.b16 %v297
    %v574 = vunpack.c.l.b16 %v298
    %v575 = vunpack.c.h.b16 %v298
    %v576 = vunpack.c.l.b16 %v299
    %v577 = vunpack.c.h.b16 %v299
    %v578 = vunpack.c.l.b16 %v300
    %v579 = vunpack.c.h.b16 %v300
    %v580 = vunpack.c.l.b16 %v301
    %v581 = vunpack.c.h.b16 %v301
    %v582 = vunpack.c.l.b16 %v302
    %v583 = vunpack.c.h.b16 %v302
    %v584 = vunpack.c.l.b16 %v303
    %v585 = vunpack.c.h.b16 %v303
    %v586 = vunpack.c.l.b16 %v304
    %v587 = vunpack.c.h.b16 %v304
    %v588 = vunpack.c.l.b16 %v305
    %v589 = vunpack.c.h.b16 %v305
    %v590 = vunpack.c.l.b16 %v306
    %v591 = vunpack.c.h.b16 %v306
    %v592 = vunpack.c.l.b16 %v307
    %v593 = vunpack.c.h.b16 %v307
    %v594 = vunpack.c.l.b16 %v308
    %v595 = vunpack.c.h.b16 %v308
    %v596 = vunpack.c.l.b16 %v309
    %v597 = vunpack.c.h.b16 %v309
    %v598 = vunpack.c.l.b16 %v310
    %v599 = vunpack.c.h.b16 %v310
    %v600 = vunpack.c.l.b16 %v311
    %v601 = vunpack.c.h.b16 %v311
    %v602 = vunpack.c.l.b16 %v312
    %v603 = vunpack.c.h.b16 %v312
    %v604 = vunpack.c.l.b16 %v313
    %v605 = vunpack.c.h.b16 %v313
    %v606 = vunpack.c.l.b16 %v314
    %v607 = vunpack.c.h.b16 %v314
    %v608 = vunpack.c.l.b16 %v315
    %v609 = vunpack.c.h.b16 %v315
    %v610 = vunpack.c.l.b16 %v316
    %v611 = vunpack.c.h.b16 %v316
    %v612 = vunpack.c.l.b16 %v317
    %v613 = vunpack.c.h.b16 %v317
    %v614 = vunpack.c.l.b16 %v318
    %v615 = vunpack.c.h.b16 %v318
    %v616 = vunpack.c.l.b16 %v319
    %v617 = vunpack.c.h.b16 %v319
    %v618 = vunpack.c.l.b16 %v320
    %v619 = vunpack.c.h.b16 %v320
    %v620 = vunpack.c.l.b16 %v321
    %v621 = vunpack.c.h.b16 %v321
    %v622 = vunpack.c.l.b16 %v322
    %v623 = vunpack.c.h.b16 %v322
    %v624 = vunpack.c.l.b16 %v323
    %v625 = vunpack.c.h.b16 %v323
    %v626 = vunpack.c.l.b16 %v324
    %v627 = vunpack.c.h.b16 %v324
    %v628 = vunpack.c.l.b16 %v325
    %v629 = vunpack.c.h.b16 %v325
    %v630 = vunpack.c.l.b16 %v326
    %v631 = vunpack.c.h.b16 %v326
    %v632 = vunpack.c.l.b16 %v327
    %v633 = vunpack.c.h.b16 %v327
    %v634 = vunpack.c.l.b16 %v328
    %v635 = vunpack.c.h.b16 %v328
    %v636 = vunpack.c.l.b16 %v329
    %v637 = vunpack.c.h.b16 %v329
    %v638 = vunpack.c.l.b16 %v330
    %v639 = vunpack.c.h.b16 %v330
    %v640 = vunpack.c.l.b16 %v331
    %v641 = vunpack.c.h.b16 %v331
    %v642 = vunpack.c.l.b16 %v332
    %v643 = vunpack.c.h.b16 %v332
    %v644 = vunpack.c.l.b16 %v333
    %v645 = vunpack.c.h.b16 %v333
    %v646 = vunpack.c.l.b16 %v334
    %v647 = vunpack.c.h.b16 %v334
    %v648 = vunpack.c.l.b16 %v335
    %v649 = vunpack.c.h.b16 %v335
    %v650 = vunpack.c.l.b16 %v336
    %v651 = vunpack.c.h.b16 %v336
    %v652 = vunpack.c.l.b16 %v337
    %v653 = vunpack.c.h.b16 %v337
    %v654 = vunpack.c.l.b16 %v338
    %v655 = vunpack.c.h.b16 %v338
    %v656 = vunpack.c.l.b16 %v339
    %v657 = vunpack.c.h.b16 %v339
    %v658 = vunpack.c.l.b16 %v340
    %v659 = vunpack.c.h.b16 %v340
    %v660 = vunpack.c.l.b16 %v341
    %v661 = vunpack.c.h.b16 %v341
    %v662 = vunpack.c.l.b16 %v342
    %v663 = vunpack.c.h.b16 %v342
    %v664 = vunpack.c.l.b16 %v343
    %v665 = vunpack.c.h.b16 %v343
    %v666 = vunpack.c.l.b16 %v344
    %v667 = vunpack.c.h.b16 %v344
    %v668 = vunpack.c.l.b16 %v345
    %v669 = vunpack.c.h.b16 %v345
    %v670 = vunpack.c.l.b16 %v346
    %v671 = vunpack.c.h.b16 %v346
    %v672 = vunpack.c.l.b16 %v347
    %v673 = vunpack.c.h.b16 %v347
    %v674 = vunpack.c.l.b16 %v348
    %v675 = vunpack.c.h.b16 %v348
    %v676 = vunpack.c.l.b16 %v349
    %v677 = vunpack.c.h.b16 %v349
    %v678 = vunpack.c.l.b16 %v350
    %v679 = vunpack.c.h.b16 %v350
    %v680 = vunpack.c.l.b16 %v351
    %v681 = vunpack.c.h.b16 %v351
    %v682 = vunpack.c.l.b16 %v352
    %v683 = vunpack.c.h.b16 %v352
    %v684 = vunpack.c.l.b16 %v353
    %v685 = vunpack.c.h.b16 %v353
    %v686 = vunpack.c.l.b16 %v354
    %v687 = vunpack.c.h.b16 %v354
    %v688 = vunpack.c.l.b16 %v355
    %v689 = vunpack.c.h.b16 %v355
    %v690 = vunpack.c.l.b16 %v356
    %v691 = vunpack.c.h.b16 %v356
    %v692 = vunpack.c.l.b16 %v357
    %v693 = vunpack.c.h.b16 %v357
    %v694 = vunpack.c.l.b16 %v358
    %v695 = vunpack.c.h.b16 %v358
    %v696 = vunpack.c.l.b16 %v359
    %v697 = vunpack.c.h.b16 %v359
    %v698 = vunpack.c.l.b16 %v360
    %v699 = vunpack.c.h.b16 %v360
    %v700 = vunpack.c.l.b16 %v361
    %v701 = vunpack.c.h.b16 %v361
    %v702 = vunpack.c.l.b16 %v362
    %v703 = vunpack.c.h.b16 %v362
    %v704 = vunpack.c.l.b16 %v363
    %v705 = vunpack.c.h.b16 %v363
    %v706 = vunpack.c.l.b16 %v364
    %v707 = vunpack.c.h.b16 %v364
    %v708 = vunpack.c.l.b16 %v365
    %v709 = vunpack.c.h.b16 %v365
    %v710 = vunpack.c.l.b16 %v366
    %v711 = vunpack.c.h.b16 %v366
    %v712 = vunpack.c.l.b16 %v367
    %v713 = vunpack.c.h.b16 %v367
    %v714 = vunpack.c.l.b16 %v368
    %v715 = vunpack.c.h.b16 %v368
    %v716 = vunpack.c.l.b16 %v369
    %v717 = vunpack.c.h.b16 %v369
    %v718 = vunpack.c.l.b16 %v370
    %v719 = vunpack.c.h.b16 %v370
    %v720 = vunpack.c.l.b16 %v371
    %v721 = vunpack.c.h.b16 %v371
    %v722 = vunpack.c.l.b16 %v372
    %v723 = vunpack.c.h.b16 %v372
    %v724 = vunpack.c.l.b16 %v373
    %v725 = vunpack.c.h.b16 %v373
    %v726 = vunpack.c.l.b16 %v374
    %v727 = vunpack.c.h.b16 %v374
    %v728 = vunpack.c.l.b16 %v375
    %v729 = vunpack.c.h.b16 %v375
    %v730 = vunpack.c.l.b16 %v376
    %v731 = vunpack.c.h.b16 %v376
    %v732 = vunpack.c.l.b16 %v377
    %v733 = vunpack.c.h.b16 %v377
    %v734 = vunpack.c.l.b16 %v378
    %v735 = vunpack.c.h.b16 %v378
    %v736 = vunpack.c.l.b16 %v379
    %v737 = vunpack.c.h.b16 %v379
    %v738 = vunpack.c.l.b16 %v380
    %v739 = vunpack.c.h.b16 %v380
    %v740 = vunpack.c.l.b16 %v381
    %v741 = vunpack.c.h.b16 %v381
    %v742 = vunpack.c.l.b16 %v382
    %v743 = vunpack.c.h.b16 %v382
    %v744 = vunpack.c.l.b16 %v383
    %v745 = vunpack.c.h.b16 %v383
    %v746 = vunpack.c.l.b16 %v384
    %v747 = vunpack.c.h.b16 %v384
    %v748 = vunpack.c.l.b16 %v385
    %v749 = vunpack.c.h.b16 %v385
    %v750 = vunpack.c.l.b16 %v386
    %v751 = vunpack.c.h.b16 %v386
    %v752 = vunpack.c.l.b16 %v387
    %v753 = vunpack.c.h.b16 %v387
    %v754 = vunpack.c.l.b16 %v388
    %v755 = vunpack.c.h.b16 %v388
    %v756 = vunpack.c.l.b16 %v389
    %v757 = vunpack.c.h.b16 %v389
    %v758 = vunpack.c.l.b16 %v390
    %v759 = vunpack.c.h.b16 %v390
    %v760 = vunpack.c.l.b16 %v391
    %v761 = vunpack.c.h.b16 %v391
    %v762 = vunpack.c.l.b16 %v392
    %v763 = vunpack.c.h.b16 %v392
    %v764 = vunpack.c.l.b16 %v393
    %v765 = vunpack.c.h.b16 %v393
    %v766 = vunpack.c.l.b16 %v394
    %v767 = vunpack.c.h.b16 %v394
    %v768 = vunpack.c.l.b16 %v395
    %v769 = vunpack.c.h.b16 %v395
    %v770 = vunpack.c.l.b16 %v396
    %v771 = vunpack.c.h.b16 %v396
    %v772 = vunpack.c.l.b16 %v397
    %v773 = vunpack.c.h.b16 %v397
    %v774 = vunpack.c.l.b16 %v398
    %v775 = vunpack.c.h.b16 %v398
    %v776 = vunpack.c.l.b16 %v399
    %v777 = vunpack.c.h.b16 %v399
    %v778 = vunpack.c.l.b16 %v400
    %v779 = vunpack.c.h.b16 %v400
    %v780 = vunpack.c.l.b16 %v401
    %v781 = vunpack.c.h.b16 %v401
    %v782 = vunpack.c.l.b16 %v402
    %v783 = vunpack.c.h.b16 %v402
    %v784 = vunpack.c.l.b16 %v403
    %v785 = vunpack.c.h.b16 %v403
    %v786 = vunpack.c.l.b16 %v404
    %v787 = vunpack.c.h.b16 %v404
    %v788 = vunpack.c.l.b16 %v405
    %v789 = vunpack.c.h.b16 %v405
    %v790 = vunpack.c.l.b16 %v406
    %v791 = vunpack.c.h.b16 %v406
    %v792 = vunpack.c.l.b16 %v407
    %v793 = vunpack.c.h.b16 %v407
    %v794 = vunpack.c.l.b16 %v408
    %v795 = vunpack.c.h.b16 %v408
    %v796 = vunpack.c.l.b16 %v409
    %v797 = vunpack.c.h.b16 %v409
    %v798 = vunpack.c.l.b16 %v410
    %v799 = vunpack.c.h.b16 %v410
    %v800 = vunpack.c.l.b16 %v411
    %v801 = vunpack.c.h.b16 %v411
    %v802 = vunpack.c.l.b16 %v412
    %v803 = vunpack.c.h.b16 %v412
    %v804 = vunpack.c.l.b16 %v413
    %v805 = vunpack.c.h.b16 %v413
    %v806 = vunpack.c.l.b16 %v414
    %v807 = vunpack.c.h.b16 %v414
    %v808 = vunpack.c.l.b16 %v415
    %v809 = vunpack.c.h.b16 %v415
    %v810 = vpack.c.b16 %v558, %v554
    %v811 = vpack.c.b16 %v559, %v555
    %v812 = vpack.c.b16 %v560, %v556
    %v813 = vpack.c.b16 %v561, %v557
    %v814 = vpack.c.b16 %v566, %v562
    %v815 = vpack.c.b16 %v567, %v563
    %v816 = vpack.c.b16 %v568, %v564
    %v817 = vpack.c.b16 %v569, %v565
    %v818 = vpack.c.b16 %v574, %v570
    %v819 = vpack.c.b16 %v575, %v571
    %v820 = vpack.c.b16 %v576, %v572
    %v821 = vpack.c.b16 %v577, %v573
    %v822 = vpack.c.b16 %v582, %v578
    %v823 = vpack.c.b16 %v583, %v579
    %v824 = vpack.c.b16 %v584, %v580
    %v825 = vpack.c.b16 %v585, %v581
    %v826 = vpack.c.b16 %v590, %v586
    %v827 = vpack.c.b16 %v591, %v587
    %v828 = vpack.c.b16 %v592, %v588
    %v829 = vpack.c.b16 %v593, %v589
    %v830 = vpack.c.b16 %v598, %v594
    %v831 = vpack.c.b16 %v599, %v595
    %v832 = vpack.c.b16 %v600, %v596
    %v833 = vpack.c.b16 %v601, %v597
    %v834 = vpack.c.b16 %v606, %v602
    %v835 = vpack.c.b16 %v607, %v603
    %v836 = vpack.c.b16 %v608, %v604
    %v837 = vpack.c.b16 %v609, %v605
    %v838 = vpack.c.b16 %v614, %v610
    %v839 = vpack.c.b16 %v615, %v611
    %v840 = vpack.c.b16 %v616, %v612
    %v841 = vpack.c.b16 %v617, %v613
    %v842 = vpack.c.b16 %v622, %v618
    %v843 = vpack.c.b16 %v623, %v619
    %v844 = vpack.c.b16 %v624, %v620
    %v845 = vpack.c.b16 %v625, %v621
    %v846 = vpack.c.b16 %v630, %v626
    %v847 = vpack.c.b16 %v631, %v627
    %v848 = vpack.c.b16 %v632, %v628
    %v849 = vpack.c.b16 %v633, %v629
    %v850 = vpack.c.b16 %v638, %v634
    %v851 = vpack.c.b16 %v639, %v635
    %v852 = vpack.c.b16 %v640, %v636
    %v853 = vpack.c.b16 %v641, %v637
    %v854 = vpack.c.b16 %v646, %v642
    %v855 = vpack.c.b16 %v647, %v643
    %v856 = vpack.c.b16 %v648, %v644
    %v857 = vpack.c.b16 %v649, %v645
    %v858 = vpack.c.b16 %v654, %v650
    %v859 = vpack.c.b16 %v655, %v651
    %v860 = vpack.c.b16 %v656, %v652
    %v861 = vpack.c.b16 %v657, %v653
    %v862 = vpack.c.b16 %v662, %v658
    %v863 = vpack.c.b16 %v663, %v659
    %v864 = vpack.c.b16 %v664, %v660
    %v865 = vpack.c.b16 %v665, %v661
    %v866 = vpack.c.b16 %v670, %v666
    %v867 = vpack.c.b16 %v671, %v667
    %v868 = vpack.c.b16 %v672, %v668
    %v869 = vpack.c.b16 %v673, %v669
    %v870 = vpack.c.b16 %v678, %v674
    %v871 = vpack.c.b16 %v679, %v675
    %v872 = vpack.c.b16 %v680, %v676
    %v873 = vpack.c.b16 %v681, %v677
    %v874 = vpack.c.b16 %v686, %v682
    %v875 = vpack.c.b16 %v687, %v683
    %v876 = vpack.c.b16 %v688, %v684
    %v877 = vpack.c.b16 %v689, %v685
    %v878 = vpack.c.b16 %v694, %v690
    %v879 = vpack.c.b16 %v695, %v691
    %v880 = vpack.c.b16 %v696, %v692
    %v881 = vpack.c.b16 %v697, %v693
    %v882 = vpack.c.b16 %v702, %v698
    %v883 = vpack.c.b16 %v703, %v699
    %v884 = vpack.c.b16 %v704, %v700
    %v885 = vpack.c.b16 %v705, %v701
    %v886 = vpack.c.b16 %v710, %v706
    %v887 = vpack.c.b16 %v711, %v707
    %v888 = vpack.c.b16 %v712, %v708
    %v889 = vpack.c.b16 %v713, %v709
    %v890 = vpack.c.b16 %v718, %v714
    %v891 = vpack.c.b16 %v719, %v715
    %v892 = vpack.c.b16 %v720, %v716
    %v893 = vpack.c.b16 %v721, %v717
    %v894 = vpack.c.b16 %v726, %v722
    %v895 = vpack.c.b16 %v727, %v723
    %v896 = vpack.c.b16 %v728, %v724
    %v897 = vpack.c.b16 %v729, %v725
    %v898 = vpack.c.b16 %v734, %v730
    %v899 = vpack.c.b16 %v735, %v731
    %v900 = vpack.c.b16 %v736, %v732
    %v901 = vpack.c.b16 %v737, %v733
    %v902 = vpack.c.b16 %v742, %v738
    %v903 = vpack.c.b16 %v743, %v739
    %v904 = vpack.c.b16 %v744, %v740
    %v905 = vpack.c.b16 %v745, %v741
    %v906 = vpack.c.b16 %v750, %v746
    %v907 = vpack.c.b16 %v751, %v747
    %v908 = vpack.c.b16 %v752, %v748
    %v909 = vpack.c.b16 %v753, %v749
    %v910 = vpack.c.b16 %v758, %v754
    %v911 = vpack.c.b16 %v759, %v755
    %v912 = vpack.c.b16 %v760, %v756
    %v913 = vpack.c.b16 %v761, %v757
    %v914 = vpack.c.b16 %v766, %v762
    %v915 = vpack.c.b16 %v767, %v763
    %v916 = vpack.c.b16 %v768, %v764
    %v917 = vpack.c.b16 %v769, %v765
    %v918 = vpack.c.b16 %v774, %v770
    %v919 = vpack.c.b16 %v775, %v771
    %v920 = vpack.c.b16 %v776, %v772
    %v921 = vpack.c.b16 %v777, %v773
    %v922 = vpack.c.b16 %v782, %v778
    %v923 = vpack.c.b16 %v783, %v779
    %v924 = vpack.c.b16 %v784, %v780
    %v925 = vpack.c.b16 %v785, %v781
    %v926 = vpack.c.b16 %v790, %v786
    %v927 = vpack.c.b16 %v791, %v787
    %v928 = vpack.c.b16 %v792, %v788
    %v929 = vpack.c.b16 %v793, %v789
    %v930 = vpack.c.b16 %v798, %v794
    %v931 = vpack.c.b16 %v799, %v795
    %v932 = vpack.c.b16 %v800, %v796
    %v933 = vpack.c.b16 %v801, %v797
    %v934 = vpack.c.b16 %v806, %v802
    %v935 = vpack.c.b16 %v807, %v803
    %v936 = vpack.c.b16 %v808, %v804
    %v937 = vpack.c.b16 %v809, %v805
    %1066 = vmatpush.bf16.msra.mxu0 %v838
    %1067 = vmatpush.bf16.msra.mxu0 %v834
    %1068 = vmatpush.bf16.msra.mxu0 %v830
    %1069 = vmatpush.bf16.msra.mxu0 %v826
    %1070 = vmatpush.bf16.msra.mxu0 %v822
    %1071 = vmatpush.bf16.msra.mxu0 %v818
    %1072 = vmatpush.bf16.msra.mxu0 %v814
    %1073 = vmatpush.bf16.msra.mxu0 %v810
    %1074 = vmatmul.bf16.gmra.mxu0 %v284
    %v1075 = vpop.f32.mrf.mxu0
    %v1076 = vadd.f32 %v418, %v1075
    %v1077 = vpop.f32.mrf.mxu0
    %1078 = vdwg.mxu0
    %1079 = vmatpush.bf16.msra.mxu0 %v870
    %1080 = vmatpush.bf16.msra.mxu0 %v866
    %1081 = vmatpush.bf16.msra.mxu0 %v862
    %1082 = vmatpush.bf16.msra.mxu0 %v858
    %1083 = vmatpush.bf16.msra.mxu0 %v854
    %1084 = vmatpush.bf16.msra.mxu0 %v850
    %1085 = vmatpush.bf16.msra.mxu0 %v846
    %1086 = vmatpush.bf16.msra.mxu0 %v842
    %1087 = vmatmul.bf16.gmra.mxu0 %v285
    %v1088 = vpop.f32.mrf.mxu0
    %v1089 = vadd.f32 %v1076, %v1088
    %v1090 = vpop.f32.mrf.mxu0
    %1091 = vdwg.mxu0
    %1092 = vmatpush.bf16.msra.mxu0 %v902
    %1093 = vmatpush.bf16.msra.mxu0 %v898
    %1094 = vmatpush.bf16.msra.mxu0 %v894
    %1095 = vmatpush.bf16.msra.mxu0 %v890
    %1096 = vmatpush.bf16.msra.mxu0 %v886
    %1097 = vmatpush.bf16.msra.mxu0 %v882
    %1098 = vmatpush.bf16.msra.mxu0 %v878
    %1099 = vmatpush.bf16.msra.mxu0 %v874
    %1100 = vmatmul.bf16.gmra.mxu0 %v286
    %v1101 = vpop.f32.mrf.mxu0
    %v1102 = vadd.f32 %v1089, %v1101
    %v1103 = vpop.f32.mrf.mxu0
    %1104 = vdwg.mxu0
    %1105 = vmatpush.bf16.msra.mxu0 %v934
    %1106 = vmatpush.bf16.msra.mxu0 %v930
    %1107 = vmatpush.bf16.msra.mxu0 %v926
    %1108 = vmatpush.bf16.msra.mxu0 %v922
    %1109 = vmatpush.bf16.msra.mxu0 %v918
    %1110 = vmatpush.bf16.msra.mxu0 %v914
    %1111 = vmatpush.bf16.msra.mxu0 %v910
    %1112 = vmatpush.bf16.msra.mxu0 %v906
    %1113 = vmatmul.bf16.gmra.mxu0 %v287
    %v1114 = vpop.f32.mrf.mxu0
    %v1115 = vadd.f32 %v1102, %v1114
    %v1116 = vpop.f32.mrf.mxu0
    %1117 = vdwg.mxu0
    %1118 = vmatpush.bf16.msra.mxu0 %v839
    %1119 = vmatpush.bf16.msra.mxu0 %v835
    %1120 = vmatpush.bf16.msra.mxu0 %v831
    %1121 = vmatpush.bf16.msra.mxu0 %v827
    %1122 = vmatpush.bf16.msra.mxu0 %v823
    %1123 = vmatpush.bf16.msra.mxu0 %v819
    %1124 = vmatpush.bf16.msra.mxu0 %v815
    %1125 = vmatpush.bf16.msra.mxu0 %v811
    %1126 = vmatmul.bf16.gmra.mxu0 %v284
    %v1127 = vpop.f32.mrf.mxu0
    %v1128 = vadd.f32 %v419, %v1127
    %v1129 = vpop.f32.mrf.mxu0
    %1130 = vdwg.mxu0
    %1131 = vmatpush.bf16.msra.mxu0 %v871
    %1132 = vmatpush.bf16.msra.mxu0 %v867
    %1133 = vmatpush.bf16.msra.mxu0 %v863
    %1134 = vmatpush.bf16.msra.mxu0 %v859
    %1135 = vmatpush.bf16.msra.mxu0 %v855
    %1136 = vmatpush.bf16.msra.mxu0 %v851
    %1137 = vmatpush.bf16.msra.mxu0 %v847
    %1138 = vmatpush.bf16.msra.mxu0 %v843
    %1139 = vmatmul.bf16.gmra.mxu0 %v285
    %v1140 = vpop.f32.mrf.mxu0
    %v1141 = vadd.f32 %v1128, %v1140
    %v1142 = vpop.f32.mrf.mxu0
    %1143 = vdwg.mxu0
    %1144 = vmatpush.bf16.msra.mxu0 %v903
    %1145 = vmatpush.bf16.msra.mxu0 %v899
    %1146 = vmatpush.bf16.msra.mxu0 %v895
    %1147 = vmatpush.bf16.msra.mxu0 %v891
    %1148 = vmatpush.bf16.msra.mxu0 %v887
    %1149 = vmatpush.bf16.msra.mxu0 %v883
    %1150 = vmatpush.bf16.msra.mxu0 %v879
    %1151 = vmatpush.bf16.msra.mxu0 %v875
    %1152 = vmatmul.bf16.gmra.mxu0 %v286
    %v1153 = vpop.f32.mrf.mxu0
    %v1154 = vadd.f32 %v1141, %v1153
    %v1155 = vpop.f32.mrf.mxu0
    %1156 = vdwg.mxu0
    %1157 = vmatpush.bf16.msra.mxu0 %v935
    %1158 = vmatpush.bf16.msra.mxu0 %v931
    %1159 = vmatpush.bf16.msra.mxu0 %v927
    %1160 = vmatpush.bf16.msra.mxu0 %v923
    %1161 = vmatpush.bf16.msra.mxu0 %v919
    %1162 = vmatpush.bf16.msra.mxu0 %v915
    %1163 = vmatpush.bf16.msra.mxu0 %v911
    %1164 = vmatpush.bf16.msra.mxu0 %v907
    %1165 = vmatmul.bf16.gmra.mxu0 %v287
    %v1166 = vpop.f32.mrf.mxu0
    %v1167 = vadd.f32 %v1154, %v1166
    %v1168 = vpop.f32.mrf.mxu0
    %1169 = vdwg.mxu0
    %1170 = vmatpush.bf16.msra.mxu0 %v840
    %1171 = vmatpush.bf16.msra.mxu0 %v836
    %1172 = vmatpush.bf16.msra.mxu0 %v832
    %1173 = vmatpush.bf16.msra.mxu0 %v828
    %1174 = vmatpush.bf16.msra.mxu0 %v824
    %1175 = vmatpush.bf16.msra.mxu0 %v820
    %1176 = vmatpush.bf16.msra.mxu0 %v816
    %1177 = vmatpush.bf16.msra.mxu0 %v812
    %1178 = vmatmul.bf16.gmra.mxu0 %v284
    %v1179 = vpop.f32.mrf.mxu0
    %v1180 = vadd.f32 %v420, %v1179
    %v1181 = vpop.f32.mrf.mxu0
    %1182 = vdwg.mxu0
    %1183 = vmatpush.bf16.msra.mxu0 %v872
    %1184 = vmatpush.bf16.msra.mxu0 %v868
    %1185 = vmatpush.bf16.msra.mxu0 %v864
    %1186 = vmatpush.bf16.msra.mxu0 %v860
    %1187 = vmatpush.bf16.msra.mxu0 %v856
    %1188 = vmatpush.bf16.msra.mxu0 %v852
    %1189 = vmatpush.bf16.msra.mxu0 %v848
    %1190 = vmatpush.bf16.msra.mxu0 %v844
    %1191 = vmatmul.bf16.gmra.mxu0 %v285
    %v1192 = vpop.f32.mrf.mxu0
    %v1193 = vadd.f32 %v1180, %v1192
    %v1194 = vpop.f32.mrf.mxu0
    %1195 = vdwg.mxu0
    %1196 = vmatpush.bf16.msra.mxu0 %v904
    %1197 = vmatpush.bf16.msra.mxu0 %v900
    %1198 = vmatpush.bf16.msra.mxu0 %v896
    %1199 = vmatpush.bf16.msra.mxu0 %v892
    %1200 = vmatpush.bf16.msra.mxu0 %v888
    %1201 = vmatpush.bf16.msra.mxu0 %v884
    %1202 = vmatpush.bf16.msra.mxu0 %v880
    %1203 = vmatpush.bf16.msra.mxu0 %v876
    %1204 = vmatmul.bf16.gmra.mxu0 %v286
    %v1205 = vpop.f32.mrf.mxu0
    %v1206 = vadd.f32 %v1193, %v1205
    %v1207 = vpop.f32.mrf.mxu0
    %1208 = vdwg.mxu0
    %1209 = vmatpush.bf16.msra.mxu0 %v936
    %1210 = vmatpush.bf16.msra.mxu0 %v932
    %1211 = vmatpush.bf16.msra.mxu0 %v928
    %1212 = vmatpush.bf16.msra.mxu0 %v924
    %1213 = vmatpush.bf16.msra.mxu0 %v920
    %1214 = vmatpush.bf16.msra.mxu0 %v916
    %1215 = vmatpush.bf16.msra.mxu0 %v912
    %1216 = vmatpush.bf16.msra.mxu0 %v908
    %1217 = vmatmul.bf16.gmra.mxu0 %v287
    %v1218 = vpop.f32.mrf.mxu0
    %v1219 = vadd.f32 %v1206, %v1218
    %v1220 = vpop.f32.mrf.mxu0
    %1221 = vdwg.mxu0
    %1222 = vmatpush.bf16.msra.mxu0 %v841
    %1223 = vmatpush.bf16.msra.mxu0 %v837
    %1224 = vmatpush.bf16.msra.mxu0 %v833
    %1225 = vmatpush.bf16.msra.mxu0 %v829
    %1226 = vmatpush.bf16.msra.mxu0 %v825
    %1227 = vmatpush.bf16.msra.mxu0 %v821
    %1228 = vmatpush.bf16.msra.mxu0 %v817
    %1229 = vmatpush.bf16.msra.mxu0 %v813
    %1230 = vmatmul.bf16.gmra.mxu0 %v284
    %v1231 = vpop.f32.mrf.mxu0
    %v1232 = vadd.f32 %v421, %v1231
    %v1233 = vpop.f32.mrf.mxu0
    %1234 = vdwg.mxu0
    %1235 = vmatpush.bf16.msra.mxu0 %v873
    %1236 = vmatpush.bf16.msra.mxu0 %v869
    %1237 = vmatpush.bf16.msra.mxu0 %v865
    %1238 = vmatpush.bf16.msra.mxu0 %v861
    %1239 = vmatpush.bf16.msra.mxu0 %v857
    %1240 = vmatpush.bf16.msra.mxu0 %v853
    %1241 = vmatpush.bf16.msra.mxu0 %v849
    %1242 = vmatpush.bf16.msra.mxu0 %v845
    %1243 = vmatmul.bf16.gmra.mxu0 %v285
    %v1244 = vpop.f32.mrf.mxu0
    %v1245 = vadd.f32 %v1232, %v1244
    %v1246 = vpop.f32.mrf.mxu0
    %1247 = vdwg.mxu0
    %1248 = vmatpush.bf16.msra.mxu0 %v905
    %1249 = vmatpush.bf16.msra.mxu0 %v901
    %1250 = vmatpush.bf16.msra.mxu0 %v897
    %1251 = vmatpush.bf16.msra.mxu0 %v893
    %1252 = vmatpush.bf16.msra.mxu0 %v889
    %1253 = vmatpush.bf16.msra.mxu0 %v885
    %1254 = vmatpush.bf16.msra.mxu0 %v881
    %1255 = vmatpush.bf16.msra.mxu0 %v877
    %1256 = vmatmul.bf16.gmra.mxu0 %v286
    %v1257 = vpop.f32.mrf.mxu0
    %v1258 = vadd.f32 %v1245, %v1257
    %v1259 = vpop.f32.mrf.mxu0
    %1260 = vdwg.mxu0
    %1261 = vmatpush.bf16.msra.mxu0 %v937
    %1262 = vmatpush.bf16.msra.mxu0 %v933
    %1263 = vmatpush.bf16.msra.mxu0 %v929
    %1264 = vmatpush.bf16.msra.mxu0 %v925
    %1265 = vmatpush.bf16.msra.mxu0 %v921
    %1266 = vmatpush.bf16.msra.mxu0 %v917
    %1267 = vmatpush.bf16.msra.mxu0 %v913
    %1268 = vmatpush.bf16.msra.mxu0 %v909
    %1269 = vmatmul.bf16.gmra.mxu0 %v287
    %v1270 = vpop.f32.mrf.mxu0
    %v1271 = vadd.f32 %v1258, %v1270
    %v1272 = vpop.f32.mrf.mxu0
    %1273 = vdwg.mxu0
    %v1274 = vmax.f32 %v1115, 0.0
    %v1275 = vmax.f32 %v1167, 0.0
    %v1276 = vmax.f32 %v1219, 0.0
    %v1277 = vmax.f32 %v1271, 0.0
    %v1278 = vpack.c.bf16 %v1274, %v1274
    %v1279 = vpack.c.bf16 %v1275, %v1275
    %v1280 = vpack.c.bf16 %v1276, %v1276
    %v1281 = vpack.c.bf16 %v1277, %v1277
    %v1282 = vld [vmem:[#allocation11] sm:$0xff]
    %v1283 = vld [vmem:[#allocation11 + $0x8] sm:$0xff]
    %v1284 = vld [vmem:[#allocation11 + $0x10] sm:$0xff]
    %v1285 = vld [vmem:[#allocation11 + $0x18] sm:$0xff]
    %v1286 = vld [vmem:[#allocation11 + $0x20] sm:$0xff]
    %v1287 = vld [vmem:[#allocation11 + $0x28] sm:$0xff]
    %v1288 = vld [vmem:[#allocation11 + $0x30] sm:$0xff]
    %v1289 = vld [vmem:[#allocation11 + $0x38] sm:$0xff]
    %v1290 = vld [vmem:[#allocation11 + $0x40] sm:$0xff]
    %v1291 = vld [vmem:[#allocation11 + $0x48] sm:$0xff]
    %v1292 = vld [vmem:[#allocation11 + $0x50] sm:$0xff]
    %v1293 = vld [vmem:[#allocation11 + $0x58] sm:$0xff]
    %v1294 = vld [vmem:[#allocation11 + $0x60] sm:$0xff]
    %v1295 = vld [vmem:[#allocation11 + $0x68] sm:$0xff]
    %v1296 = vld [vmem:[#allocation11 + $0x70] sm:$0xff]
    %v1297 = vld [vmem:[#allocation11 + $0x78] sm:$0xff]
    %v1298 = vld [vmem:[#allocation11 + $0x80] sm:$0xff]
    %v1299 = vld [vmem:[#allocation11 + $0x88] sm:$0xff]
    %v1300 = vld [vmem:[#allocation11 + $0x90] sm:$0xff]
    %v1301 = vld [vmem:[#allocation11 + $0x98] sm:$0xff]
    %v1302 = vld [vmem:[#allocation11 + $0xa0] sm:$0xff]
    %v1303 = vld [vmem:[#allocation11 + $0xa8] sm:$0xff]
    %v1304 = vld [vmem:[#allocation11 + $0xb0] sm:$0xff]
    %v1305 = vld [vmem:[#allocation11 + $0xb8] sm:$0xff]
    %v1306 = vld [vmem:[#allocation11 + $0xc0] sm:$0xff]
    %v1307 = vld [vmem:[#allocation11 + $0xc8] sm:$0xff]
    %v1308 = vld [vmem:[#allocation11 + $0xd0] sm:$0xff]
    %v1309 = vld [vmem:[#allocation11 + $0xd8] sm:$0xff]
    %v1310 = vld [vmem:[#allocation11 + $0xe0] sm:$0xff]
    %v1311 = vld [vmem:[#allocation11 + $0xe8] sm:$0xff]
    %v1312 = vld [vmem:[#allocation11 + $0xf0] sm:$0xff]
    %v1313 = vld [vmem:[#allocation11 + $0xf8] sm:$0xff]
    %v1314 = vld [vmem:[#allocation11 + $0x100] sm:$0xff]
    %v1315 = vld [vmem:[#allocation11 + $0x108] sm:$0xff]
    %v1316 = vld [vmem:[#allocation11 + $0x110] sm:$0xff]
    %v1317 = vld [vmem:[#allocation11 + $0x118] sm:$0xff]
    %v1318 = vld [vmem:[#allocation11 + $0x120] sm:$0xff]
    %v1319 = vld [vmem:[#allocation11 + $0x128] sm:$0xff]
    %v1320 = vld [vmem:[#allocation11 + $0x130] sm:$0xff]
    %v1321 = vld [vmem:[#allocation11 + $0x138] sm:$0xff]
    %v1322 = vld [vmem:[#allocation11 + $0x140] sm:$0xff]
    %v1323 = vld [vmem:[#allocation11 + $0x148] sm:$0xff]
    %v1324 = vld [vmem:[#allocation11 + $0x150] sm:$0xff]
    %v1325 = vld [vmem:[#allocation11 + $0x158] sm:$0xff]
    %v1326 = vld [vmem:[#allocation11 + $0x160] sm:$0xff]
    %v1327 = vld [vmem:[#allocation11 + $0x168] sm:$0xff]
    %v1328 = vld [vmem:[#allocation11 + $0x170] sm:$0xff]
    %v1329 = vld [vmem:[#allocation11 + $0x178] sm:$0xff]
    %v1330 = vld [vmem:[#allocation11 + $0x180] sm:$0xff]
    %v1331 = vld [vmem:[#allocation11 + $0x188] sm:$0xff]
    %v1332 = vld [vmem:[#allocation11 + $0x190] sm:$0xff]
    %v1333 = vld [vmem:[#allocation11 + $0x198] sm:$0xff]
    %v1334 = vld [vmem:[#allocation11 + $0x1a0] sm:$0xff]
    %v1335 = vld [vmem:[#allocation11 + $0x1a8] sm:$0xff]
    %v1336 = vld [vmem:[#allocation11 + $0x1b0] sm:$0xff]
    %v1337 = vld [vmem:[#allocation11 + $0x1b8] sm:$0xff]
    %v1338 = vld [vmem:[#allocation11 + $0x1c0] sm:$0xff]
    %v1339 = vld [vmem:[#allocation11 + $0x1c8] sm:$0xff]
    %v1340 = vld [vmem:[#allocation11 + $0x1d0] sm:$0xff]
    %v1341 = vld [vmem:[#allocation11 + $0x1d8] sm:$0xff]
    %v1342 = vld [vmem:[#allocation11 + $0x1e0] sm:$0xff]
    %v1343 = vld [vmem:[#allocation11 + $0x1e8] sm:$0xff]
    %v1344 = vld [vmem:[#allocation11 + $0x1f0] sm:$0xff]
    %v1345 = vld [vmem:[#allocation11 + $0x1f8] sm:$0xff]
    %v1346 = vld [vmem:[#allocation11 + $0x200] sm:$0xff]
    %v1347 = vld [vmem:[#allocation11 + $0x208] sm:$0xff]
    %v1348 = vld [vmem:[#allocation11 + $0x210] sm:$0xff]
    %v1349 = vld [vmem:[#allocation11 + $0x218] sm:$0xff]
    %v1350 = vld [vmem:[#allocation11 + $0x220] sm:$0xff]
    %v1351 = vld [vmem:[#allocation11 + $0x228] sm:$0xff]
    %v1352 = vld [vmem:[#allocation11 + $0x230] sm:$0xff]
    %v1353 = vld [vmem:[#allocation11 + $0x238] sm:$0xff]
    %v1354 = vld [vmem:[#allocation11 + $0x240] sm:$0xff]
    %v1355 = vld [vmem:[#allocation11 + $0x248] sm:$0xff]
    %v1356 = vld [vmem:[#allocation11 + $0x250] sm:$0xff]
    %v1357 = vld [vmem:[#allocation11 + $0x258] sm:$0xff]
    %v1358 = vld [vmem:[#allocation11 + $0x260] sm:$0xff]
    %v1359 = vld [vmem:[#allocation11 + $0x268] sm:$0xff]
    %v1360 = vld [vmem:[#allocation11 + $0x270] sm:$0xff]
    %v1361 = vld [vmem:[#allocation11 + $0x278] sm:$0xff]
    %v1362 = vld [vmem:[#allocation11 + $0x280] sm:$0xff]
    %v1363 = vld [vmem:[#allocation11 + $0x288] sm:$0xff]
    %v1364 = vld [vmem:[#allocation11 + $0x290] sm:$0xff]
    %v1365 = vld [vmem:[#allocation11 + $0x298] sm:$0xff]
    %v1366 = vld [vmem:[#allocation11 + $0x2a0] sm:$0xff]
    %v1367 = vld [vmem:[#allocation11 + $0x2a8] sm:$0xff]
    %v1368 = vld [vmem:[#allocation11 + $0x2b0] sm:$0xff]
    %v1369 = vld [vmem:[#allocation11 + $0x2b8] sm:$0xff]
    %v1370 = vld [vmem:[#allocation11 + $0x2c0] sm:$0xff]
    %v1371 = vld [vmem:[#allocation11 + $0x2c8] sm:$0xff]
    %v1372 = vld [vmem:[#allocation11 + $0x2d0] sm:$0xff]
    %v1373 = vld [vmem:[#allocation11 + $0x2d8] sm:$0xff]
    %v1374 = vld [vmem:[#allocation11 + $0x2e0] sm:$0xff]
    %v1375 = vld [vmem:[#allocation11 + $0x2e8] sm:$0xff]
    %v1376 = vld [vmem:[#allocation11 + $0x2f0] sm:$0xff]
    %v1377 = vld [vmem:[#allocation11 + $0x2f8] sm:$0xff]
    %v1378 = vld [vmem:[#allocation11 + $0x300] sm:$0xff]
    %v1379 = vld [vmem:[#allocation11 + $0x308] sm:$0xff]
    %v1380 = vld [vmem:[#allocation11 + $0x310] sm:$0xff]
    %v1381 = vld [vmem:[#allocation11 + $0x318] sm:$0xff]
    %v1382 = vld [vmem:[#allocation11 + $0x320] sm:$0xff]
    %v1383 = vld [vmem:[#allocation11 + $0x328] sm:$0xff]
    %v1384 = vld [vmem:[#allocation11 + $0x330] sm:$0xff]
    %v1385 = vld [vmem:[#allocation11 + $0x338] sm:$0xff]
    %v1386 = vld [vmem:[#allocation11 + $0x340] sm:$0xff]
    %v1387 = vld [vmem:[#allocation11 + $0x348] sm:$0xff]
    %v1388 = vld [vmem:[#allocation11 + $0x350] sm:$0xff]
    %v1389 = vld [vmem:[#allocation11 + $0x358] sm:$0xff]
    %v1390 = vld [vmem:[#allocation11 + $0x360] sm:$0xff]
    %v1391 = vld [vmem:[#allocation11 + $0x368] sm:$0xff]
    %v1392 = vld [vmem:[#allocation11 + $0x370] sm:$0xff]
    %v1393 = vld [vmem:[#allocation11 + $0x378] sm:$0xff]
    %v1394 = vld [vmem:[#allocation11 + $0x380] sm:$0xff]
    %v1395 = vld [vmem:[#allocation11 + $0x388] sm:$0xff]
    %v1396 = vld [vmem:[#allocation11 + $0x390] sm:$0xff]
    %v1397 = vld [vmem:[#allocation11 + $0x398] sm:$0xff]
    %v1398 = vld [vmem:[#allocation11 + $0x3a0] sm:$0xff]
    %v1399 = vld [vmem:[#allocation11 + $0x3a8] sm:$0xff]
    %v1400 = vld [vmem:[#allocation11 + $0x3b0] sm:$0xff]
    %v1401 = vld [vmem:[#allocation11 + $0x3b8] sm:$0xff]
    %v1402 = vld [vmem:[#allocation11 + $0x3c0] sm:$0xff]
    %v1403 = vld [vmem:[#allocation11 + $0x3c8] sm:$0xff]
    %v1404 = vld [vmem:[#allocation11 + $0x3d0] sm:$0xff]
    %v1405 = vld [vmem:[#allocation11 + $0x3d8] sm:$0xff]
    %v1406 = vld [vmem:[#allocation11 + $0x3e0] sm:$0xff]
    %v1407 = vld [vmem:[#allocation11 + $0x3e8] sm:$0xff]
    %v1408 = vld [vmem:[#allocation11 + $0x3f0] sm:$0xff]
    %v1409 = vld [vmem:[#allocation11 + $0x3f8] sm:$0xff]
    %v1410 = vld [vmem:[#allocation11 + $0x400] sm:$0xff]
    %v1411 = vld [vmem:[#allocation11 + $0x408] sm:$0xff]
    %v1412 = vld [vmem:[#allocation11 + $0x410] sm:$0xff]
    %v1413 = vld [vmem:[#allocation11 + $0x418] sm:$0xff]
    %v1414 = vld [vmem:[#allocation11 + $0x420] sm:$0xff]
    %v1415 = vld [vmem:[#allocation11 + $0x428] sm:$0xff]
    %v1416 = vld [vmem:[#allocation11 + $0x430] sm:$0xff]
    %v1417 = vld [vmem:[#allocation11 + $0x438] sm:$0xff]
    %v1418 = vld [vmem:[#allocation11 + $0x440] sm:$0xff]
    %v1419 = vld [vmem:[#allocation11 + $0x448] sm:$0xff]
    %v1420 = vld [vmem:[#allocation11 + $0x450] sm:$0xff]
    %v1421 = vld [vmem:[#allocation11 + $0x458] sm:$0xff]
    %v1422 = vld [vmem:[#allocation11 + $0x460] sm:$0xff]
    %v1423 = vld [vmem:[#allocation11 + $0x468] sm:$0xff]
    %v1424 = vld [vmem:[#allocation11 + $0x470] sm:$0xff]
    %v1425 = vld [vmem:[#allocation11 + $0x478] sm:$0xff]
    %v1426 = vld [vmem:[#allocation11 + $0x480] sm:$0xff]
    %v1427 = vld [vmem:[#allocation11 + $0x488] sm:$0xff]
    %v1428 = vld [vmem:[#allocation11 + $0x490] sm:$0xff]
    %v1429 = vld [vmem:[#allocation11 + $0x498] sm:$0xff]
    %v1430 = vld [vmem:[#allocation11 + $0x4a0] sm:$0xff]
    %v1431 = vld [vmem:[#allocation11 + $0x4a8] sm:$0xff]
    %v1432 = vld [vmem:[#allocation11 + $0x4b0] sm:$0xff]
    %v1433 = vld [vmem:[#allocation11 + $0x4b8] sm:$0xff]
    %v1434 = vld [vmem:[#allocation11 + $0x4c0] sm:$0xff]
    %v1435 = vld [vmem:[#allocation11 + $0x4c8] sm:$0xff]
    %v1436 = vld [vmem:[#allocation11 + $0x4d0] sm:$0xff]
    %v1437 = vld [vmem:[#allocation11 + $0x4d8] sm:$0xff]
    %v1438 = vld [vmem:[#allocation11 + $0x4e0] sm:$0xff]
    %v1439 = vld [vmem:[#allocation11 + $0x4e8] sm:$0xff]
    %v1440 = vld [vmem:[#allocation11 + $0x4f0] sm:$0xff]
    %v1441 = vld [vmem:[#allocation11 + $0x4f8] sm:$0xff]
    %v1442 = vld [vmem:[#allocation11 + $0x500] sm:$0xff]
    %v1443 = vld [vmem:[#allocation11 + $0x508] sm:$0xff]
    %v1444 = vld [vmem:[#allocation11 + $0x510] sm:$0xff]
    %v1445 = vld [vmem:[#allocation11 + $0x518] sm:$0xff]
    %v1446 = vld [vmem:[#allocation11 + $0x520] sm:$0xff]
    %v1447 = vld [vmem:[#allocation11 + $0x528] sm:$0xff]
    %v1448 = vld [vmem:[#allocation11 + $0x530] sm:$0xff]
    %v1449 = vld [vmem:[#allocation11 + $0x538] sm:$0xff]
    %v1450 = vld [vmem:[#allocation11 + $0x540] sm:$0xff]
    %v1451 = vld [vmem:[#allocation11 + $0x548] sm:$0xff]
    %v1452 = vld [vmem:[#allocation11 + $0x550] sm:$0xff]
    %v1453 = vld [vmem:[#allocation11 + $0x558] sm:$0xff]
    %v1454 = vld [vmem:[#allocation11 + $0x560] sm:$0xff]
    %v1455 = vld [vmem:[#allocation11 + $0x568] sm:$0xff]
    %v1456 = vld [vmem:[#allocation11 + $0x570] sm:$0xff]
    %v1457 = vld [vmem:[#allocation11 + $0x578] sm:$0xff]
    %v1458 = vld [vmem:[#allocation11 + $0x580] sm:$0xff]
    %v1459 = vld [vmem:[#allocation11 + $0x588] sm:$0xff]
    %v1460 = vld [vmem:[#allocation11 + $0x590] sm:$0xff]
    %v1461 = vld [vmem:[#allocation11 + $0x598] sm:$0xff]
    %v1462 = vld [vmem:[#allocation11 + $0x5a0] sm:$0xff]
    %v1463 = vld [vmem:[#allocation11 + $0x5a8] sm:$0xff]
    %v1464 = vld [vmem:[#allocation11 + $0x5b0] sm:$0xff]
    %v1465 = vld [vmem:[#allocation11 + $0x5b8] sm:$0xff]
    %v1466 = vld [vmem:[#allocation11 + $0x5c0] sm:$0xff]
    %v1467 = vld [vmem:[#allocation11 + $0x5c8] sm:$0xff]
    %v1468 = vld [vmem:[#allocation11 + $0x5d0] sm:$0xff]
    %v1469 = vld [vmem:[#allocation11 + $0x5d8] sm:$0xff]
    %v1470 = vld [vmem:[#allocation11 + $0x5e0] sm:$0xff]
    %v1471 = vld [vmem:[#allocation11 + $0x5e8] sm:$0xff]
    %v1472 = vld [vmem:[#allocation11 + $0x5f0] sm:$0xff]
    %v1473 = vld [vmem:[#allocation11 + $0x5f8] sm:$0xff]
    %v1474 = vld [vmem:[#allocation11 + $0x600] sm:$0xff]
    %v1475 = vld [vmem:[#allocation11 + $0x608] sm:$0xff]
    %v1476 = vld [vmem:[#allocation11 + $0x610] sm:$0xff]
    %v1477 = vld [vmem:[#allocation11 + $0x618] sm:$0xff]
    %v1478 = vld [vmem:[#allocation11 + $0x620] sm:$0xff]
    %v1479 = vld [vmem:[#allocation11 + $0x628] sm:$0xff]
    %v1480 = vld [vmem:[#allocation11 + $0x630] sm:$0xff]
    %v1481 = vld [vmem:[#allocation11 + $0x638] sm:$0xff]
    %v1482 = vld [vmem:[#allocation11 + $0x640] sm:$0xff]
    %v1483 = vld [vmem:[#allocation11 + $0x648] sm:$0xff]
    %v1484 = vld [vmem:[#allocation11 + $0x650] sm:$0xff]
    %v1485 = vld [vmem:[#allocation11 + $0x658] sm:$0xff]
    %v1486 = vld [vmem:[#allocation11 + $0x660] sm:$0xff]
    %v1487 = vld [vmem:[#allocation11 + $0x668] sm:$0xff]
    %v1488 = vld [vmem:[#allocation11 + $0x670] sm:$0xff]
    %v1489 = vld [vmem:[#allocation11 + $0x678] sm:$0xff]
    %v1490 = vld [vmem:[#allocation11 + $0x680] sm:$0xff]
    %v1491 = vld [vmem:[#allocation11 + $0x688] sm:$0xff]
    %v1492 = vld [vmem:[#allocation11 + $0x690] sm:$0xff]
    %v1493 = vld [vmem:[#allocation11 + $0x698] sm:$0xff]
    %v1494 = vld [vmem:[#allocation11 + $0x6a0] sm:$0xff]
    %v1495 = vld [vmem:[#allocation11 + $0x6a8] sm:$0xff]
    %v1496 = vld [vmem:[#allocation11 + $0x6b0] sm:$0xff]
    %v1497 = vld [vmem:[#allocation11 + $0x6b8] sm:$0xff]
    %v1498 = vld [vmem:[#allocation11 + $0x6c0] sm:$0xff]
    %v1499 = vld [vmem:[#allocation11 + $0x6c8] sm:$0xff]
    %v1500 = vld [vmem:[#allocation11 + $0x6d0] sm:$0xff]
    %v1501 = vld [vmem:[#allocation11 + $0x6d8] sm:$0xff]
    %v1502 = vld [vmem:[#allocation11 + $0x6e0] sm:$0xff]
    %v1503 = vld [vmem:[#allocation11 + $0x6e8] sm:$0xff]
    %v1504 = vld [vmem:[#allocation11 + $0x6f0] sm:$0xff]
    %v1505 = vld [vmem:[#allocation11 + $0x6f8] sm:$0xff]
    %v1506 = vld [vmem:[#allocation11 + $0x700] sm:$0xff]
    %v1507 = vld [vmem:[#allocation11 + $0x708] sm:$0xff]
    %v1508 = vld [vmem:[#allocation11 + $0x710] sm:$0xff]
    %v1509 = vld [vmem:[#allocation11 + $0x718] sm:$0xff]
    %v1510 = vld [vmem:[#allocation11 + $0x720] sm:$0xff]
    %v1511 = vld [vmem:[#allocation11 + $0x728] sm:$0xff]
    %v1512 = vld [vmem:[#allocation11 + $0x730] sm:$0xff]
    %v1513 = vld [vmem:[#allocation11 + $0x738] sm:$0xff]
    %v1514 = vld [vmem:[#allocation11 + $0x740] sm:$0xff]
    %v1515 = vld [vmem:[#allocation11 + $0x748] sm:$0xff]
    %v1516 = vld [vmem:[#allocation11 + $0x750] sm:$0xff]
    %v1517 = vld [vmem:[#allocation11 + $0x758] sm:$0xff]
    %v1518 = vld [vmem:[#allocation11 + $0x760] sm:$0xff]
    %v1519 = vld [vmem:[#allocation11 + $0x768] sm:$0xff]
    %v1520 = vld [vmem:[#allocation11 + $0x770] sm:$0xff]
    %v1521 = vld [vmem:[#allocation11 + $0x778] sm:$0xff]
    %v1522 = vld [vmem:[#allocation11 + $0x780] sm:$0xff]
    %v1523 = vld [vmem:[#allocation11 + $0x788] sm:$0xff]
    %v1524 = vld [vmem:[#allocation11 + $0x790] sm:$0xff]
    %v1525 = vld [vmem:[#allocation11 + $0x798] sm:$0xff]
    %v1526 = vld [vmem:[#allocation11 + $0x7a0] sm:$0xff]
    %v1527 = vld [vmem:[#allocation11 + $0x7a8] sm:$0xff]
    %v1528 = vld [vmem:[#allocation11 + $0x7b0] sm:$0xff]
    %v1529 = vld [vmem:[#allocation11 + $0x7b8] sm:$0xff]
    %v1530 = vld [vmem:[#allocation11 + $0x7c0] sm:$0xff]
    %v1531 = vld [vmem:[#allocation11 + $0x7c8] sm:$0xff]
    %v1532 = vld [vmem:[#allocation11 + $0x7d0] sm:$0xff]
    %v1533 = vld [vmem:[#allocation11 + $0x7d8] sm:$0xff]
    %v1534 = vld [vmem:[#allocation11 + $0x7e0] sm:$0xff]
    %v1535 = vld [vmem:[#allocation11 + $0x7e8] sm:$0xff]
    %v1536 = vld [vmem:[#allocation11 + $0x7f0] sm:$0xff]
    %v1537 = vld [vmem:[#allocation11 + $0x7f8] sm:$0xff]
    %v1538 = vld [vmem:[#allocation11 + $0x800] sm:$0xff]
    %v1539 = vld [vmem:[#allocation11 + $0x808] sm:$0xff]
    %v1540 = vld [vmem:[#allocation11 + $0x810] sm:$0xff]
    %v1541 = vld [vmem:[#allocation11 + $0x818] sm:$0xff]
    %v1542 = vld [vmem:[#allocation11 + $0x820] sm:$0xff]
    %v1543 = vld [vmem:[#allocation11 + $0x828] sm:$0xff]
    %v1544 = vld [vmem:[#allocation11 + $0x830] sm:$0xff]
    %v1545 = vld [vmem:[#allocation11 + $0x838] sm:$0xff]
    %v1546 = vld [vmem:[#allocation11 + $0x840] sm:$0xff]
    %v1547 = vld [vmem:[#allocation11 + $0x848] sm:$0xff]
    %v1548 = vld [vmem:[#allocation11 + $0x850] sm:$0xff]
    %v1549 = vld [vmem:[#allocation11 + $0x858] sm:$0xff]
    %v1550 = vld [vmem:[#allocation11 + $0x860] sm:$0xff]
    %v1551 = vld [vmem:[#allocation11 + $0x868] sm:$0xff]
    %v1552 = vld [vmem:[#allocation11 + $0x870] sm:$0xff]
    %v1553 = vld [vmem:[#allocation11 + $0x878] sm:$0xff]
    %v1554 = vld [vmem:[#allocation11 + $0x880] sm:$0xff]
    %v1555 = vld [vmem:[#allocation11 + $0x888] sm:$0xff]
    %v1556 = vld [vmem:[#allocation11 + $0x890] sm:$0xff]
    %v1557 = vld [vmem:[#allocation11 + $0x898] sm:$0xff]
    %v1558 = vld [vmem:[#allocation11 + $0x8a0] sm:$0xff]
    %v1559 = vld [vmem:[#allocation11 + $0x8a8] sm:$0xff]
    %v1560 = vld [vmem:[#allocation11 + $0x8b0] sm:$0xff]
    %v1561 = vld [vmem:[#allocation11 + $0x8b8] sm:$0xff]
    %v1562 = vld [vmem:[#allocation11 + $0x8c0] sm:$0xff]
    %v1563 = vld [vmem:[#allocation11 + $0x8c8] sm:$0xff]
    %v1564 = vld [vmem:[#allocation11 + $0x8d0] sm:$0xff]
    %v1565 = vld [vmem:[#allocation11 + $0x8d8] sm:$0xff]
    %v1566 = vld [vmem:[#allocation11 + $0x8e0] sm:$0xff]
    %v1567 = vld [vmem:[#allocation11 + $0x8e8] sm:$0xff]
    %v1568 = vld [vmem:[#allocation11 + $0x8f0] sm:$0xff]
    %v1569 = vld [vmem:[#allocation11 + $0x8f8] sm:$0xff]
    %v1570 = vld [vmem:[#allocation11 + $0x900] sm:$0xff]
    %v1571 = vld [vmem:[#allocation11 + $0x908] sm:$0xff]
    %v1572 = vld [vmem:[#allocation11 + $0x910] sm:$0xff]
    %v1573 = vld [vmem:[#allocation11 + $0x918] sm:$0xff]
    %v1574 = vld [vmem:[#allocation11 + $0x920] sm:$0xff]
    %v1575 = vld [vmem:[#allocation11 + $0x928] sm:$0xff]
    %v1576 = vld [vmem:[#allocation11 + $0x930] sm:$0xff]
    %v1577 = vld [vmem:[#allocation11 + $0x938] sm:$0xff]
    %v1578 = vld [vmem:[#allocation11 + $0x940] sm:$0xff]
    %v1579 = vld [vmem:[#allocation11 + $0x948] sm:$0xff]
    %v1580 = vld [vmem:[#allocation11 + $0x950] sm:$0xff]
    %v1581 = vld [vmem:[#allocation11 + $0x958] sm:$0xff]
    %v1582 = vld [vmem:[#allocation11 + $0x960] sm:$0xff]
    %v1583 = vld [vmem:[#allocation11 + $0x968] sm:$0xff]
    %v1584 = vld [vmem:[#allocation11 + $0x970] sm:$0xff]
    %v1585 = vld [vmem:[#allocation11 + $0x978] sm:$0xff]
    %v1586 = vld [vmem:[#allocation11 + $0x980] sm:$0xff]
    %v1587 = vld [vmem:[#allocation11 + $0x988] sm:$0xff]
    %v1588 = vld [vmem:[#allocation11 + $0x990] sm:$0xff]
    %v1589 = vld [vmem:[#allocation11 + $0x998] sm:$0xff]
    %v1590 = vld [vmem:[#allocation11 + $0x9a0] sm:$0xff]
    %v1591 = vld [vmem:[#allocation11 + $0x9a8] sm:$0xff]
    %v1592 = vld [vmem:[#allocation11 + $0x9b0] sm:$0xff]
    %v1593 = vld [vmem:[#allocation11 + $0x9b8] sm:$0xff]
    %v1594 = vld [vmem:[#allocation11 + $0x9c0] sm:$0xff]
    %v1595 = vld [vmem:[#allocation11 + $0x9c8] sm:$0xff]
    %v1596 = vld [vmem:[#allocation11 + $0x9d0] sm:$0xff]
    %v1597 = vld [vmem:[#allocation11 + $0x9d8] sm:$0xff]
    %v1598 = vld [vmem:[#allocation11 + $0x9e0] sm:$0xff]
    %v1599 = vld [vmem:[#allocation11 + $0x9e8] sm:$0xff]
    %v1600 = vld [vmem:[#allocation11 + $0x9f0] sm:$0xff]
    %v1601 = vld [vmem:[#allocation11 + $0x9f8] sm:$0xff]
    %v1602 = vld [vmem:[#allocation11 + $0xa00] sm:$0xff]
    %v1603 = vld [vmem:[#allocation11 + $0xa08] sm:$0xff]
    %v1604 = vld [vmem:[#allocation11 + $0xa10] sm:$0xff]
    %v1605 = vld [vmem:[#allocation11 + $0xa18] sm:$0xff]
    %v1606 = vld [vmem:[#allocation11 + $0xa20] sm:$0xff]
    %v1607 = vld [vmem:[#allocation11 + $0xa28] sm:$0xff]
    %v1608 = vld [vmem:[#allocation11 + $0xa30] sm:$0xff]
    %v1609 = vld [vmem:[#allocation11 + $0xa38] sm:$0xff]
    %v1610 = vld [vmem:[#allocation11 + $0xa40] sm:$0xff]
    %v1611 = vld [vmem:[#allocation11 + $0xa48] sm:$0xff]
    %v1612 = vld [vmem:[#allocation11 + $0xa50] sm:$0xff]
    %v1613 = vld [vmem:[#allocation11 + $0xa58] sm:$0xff]
    %v1614 = vld [vmem:[#allocation11 + $0xa60] sm:$0xff]
    %v1615 = vld [vmem:[#allocation11 + $0xa68] sm:$0xff]
    %v1616 = vld [vmem:[#allocation11 + $0xa70] sm:$0xff]
    %v1617 = vld [vmem:[#allocation11 + $0xa78] sm:$0xff]
    %v1618 = vld [vmem:[#allocation11 + $0xa80] sm:$0xff]
    %v1619 = vld [vmem:[#allocation11 + $0xa88] sm:$0xff]
    %v1620 = vld [vmem:[#allocation11 + $0xa90] sm:$0xff]
    %v1621 = vld [vmem:[#allocation11 + $0xa98] sm:$0xff]
    %v1622 = vld [vmem:[#allocation11 + $0xaa0] sm:$0xff]
    %v1623 = vld [vmem:[#allocation11 + $0xaa8] sm:$0xff]
    %v1624 = vld [vmem:[#allocation11 + $0xab0] sm:$0xff]
    %v1625 = vld [vmem:[#allocation11 + $0xab8] sm:$0xff]
    %v1626 = vld [vmem:[#allocation11 + $0xac0] sm:$0xff]
    %v1627 = vld [vmem:[#allocation11 + $0xac8] sm:$0xff]
    %v1628 = vld [vmem:[#allocation11 + $0xad0] sm:$0xff]
    %v1629 = vld [vmem:[#allocation11 + $0xad8] sm:$0xff]
    %v1630 = vld [vmem:[#allocation11 + $0xae0] sm:$0xff]
    %v1631 = vld [vmem:[#allocation11 + $0xae8] sm:$0xff]
    %v1632 = vld [vmem:[#allocation11 + $0xaf0] sm:$0xff]
    %v1633 = vld [vmem:[#allocation11 + $0xaf8] sm:$0xff]
    %v1634 = vld [vmem:[#allocation11 + $0xb00] sm:$0xff]
    %v1635 = vld [vmem:[#allocation11 + $0xb08] sm:$0xff]
    %v1636 = vld [vmem:[#allocation11 + $0xb10] sm:$0xff]
    %v1637 = vld [vmem:[#allocation11 + $0xb18] sm:$0xff]
    %v1638 = vld [vmem:[#allocation11 + $0xb20] sm:$0xff]
    %v1639 = vld [vmem:[#allocation11 + $0xb28] sm:$0xff]
    %v1640 = vld [vmem:[#allocation11 + $0xb30] sm:$0xff]
    %v1641 = vld [vmem:[#allocation11 + $0xb38] sm:$0xff]
    %v1642 = vld [vmem:[#allocation11 + $0xb40] sm:$0xff]
    %v1643 = vld [vmem:[#allocation11 + $0xb48] sm:$0xff]
    %v1644 = vld [vmem:[#allocation11 + $0xb50] sm:$0xff]
    %v1645 = vld [vmem:[#allocation11 + $0xb58] sm:$0xff]
    %v1646 = vld [vmem:[#allocation11 + $0xb60] sm:$0xff]
    %v1647 = vld [vmem:[#allocation11 + $0xb68] sm:$0xff]
    %v1648 = vld [vmem:[#allocation11 + $0xb70] sm:$0xff]
    %v1649 = vld [vmem:[#allocation11 + $0xb78] sm:$0xff]
    %v1650 = vld [vmem:[#allocation11 + $0xb80] sm:$0xff]
    %v1651 = vld [vmem:[#allocation11 + $0xb88] sm:$0xff]
    %v1652 = vld [vmem:[#allocation11 + $0xb90] sm:$0xff]
    %v1653 = vld [vmem:[#allocation11 + $0xb98] sm:$0xff]
    %v1654 = vld [vmem:[#allocation11 + $0xba0] sm:$0xff]
    %v1655 = vld [vmem:[#allocation11 + $0xba8] sm:$0xff]
    %v1656 = vld [vmem:[#allocation11 + $0xbb0] sm:$0xff]
    %v1657 = vld [vmem:[#allocation11 + $0xbb8] sm:$0xff]
    %v1658 = vld [vmem:[#allocation11 + $0xbc0] sm:$0xff]
    %v1659 = vld [vmem:[#allocation11 + $0xbc8] sm:$0xff]
    %v1660 = vld [vmem:[#allocation11 + $0xbd0] sm:$0xff]
    %v1661 = vld [vmem:[#allocation11 + $0xbd8] sm:$0xff]
    %v1662 = vld [vmem:[#allocation11 + $0xbe0] sm:$0xff]
    %v1663 = vld [vmem:[#allocation11 + $0xbe8] sm:$0xff]
    %v1664 = vld [vmem:[#allocation11 + $0xbf0] sm:$0xff]
    %v1665 = vld [vmem:[#allocation11 + $0xbf8] sm:$0xff]
    %v1666 = vld [vmem:[#allocation11 + $0xc00] sm:$0xff]
    %v1667 = vld [vmem:[#allocation11 + $0xc08] sm:$0xff]
    %v1668 = vld [vmem:[#allocation11 + $0xc10] sm:$0xff]
    %v1669 = vld [vmem:[#allocation11 + $0xc18] sm:$0xff]
    %v1670 = vld [vmem:[#allocation11 + $0xc20] sm:$0xff]
    %v1671 = vld [vmem:[#allocation11 + $0xc28] sm:$0xff]
    %v1672 = vld [vmem:[#allocation11 + $0xc30] sm:$0xff]
    %v1673 = vld [vmem:[#allocation11 + $0xc38] sm:$0xff]
    %v1674 = vld [vmem:[#allocation11 + $0xc40] sm:$0xff]
    %v1675 = vld [vmem:[#allocation11 + $0xc48] sm:$0xff]
    %v1676 = vld [vmem:[#allocation11 + $0xc50] sm:$0xff]
    %v1677 = vld [vmem:[#allocation11 + $0xc58] sm:$0xff]
    %v1678 = vld [vmem:[#allocation11 + $0xc60] sm:$0xff]
    %v1679 = vld [vmem:[#allocation11 + $0xc68] sm:$0xff]
    %v1680 = vld [vmem:[#allocation11 + $0xc70] sm:$0xff]
    %v1681 = vld [vmem:[#allocation11 + $0xc78] sm:$0xff]
    %v1682 = vld [vmem:[#allocation11 + $0xc80] sm:$0xff]
    %v1683 = vld [vmem:[#allocation11 + $0xc88] sm:$0xff]
    %v1684 = vld [vmem:[#allocation11 + $0xc90] sm:$0xff]
    %v1685 = vld [vmem:[#allocation11 + $0xc98] sm:$0xff]
    %v1686 = vld [vmem:[#allocation11 + $0xca0] sm:$0xff]
    %v1687 = vld [vmem:[#allocation11 + $0xca8] sm:$0xff]
    %v1688 = vld [vmem:[#allocation11 + $0xcb0] sm:$0xff]
    %v1689 = vld [vmem:[#allocation11 + $0xcb8] sm:$0xff]
    %v1690 = vld [vmem:[#allocation11 + $0xcc0] sm:$0xff]
    %v1691 = vld [vmem:[#allocation11 + $0xcc8] sm:$0xff]
    %v1692 = vld [vmem:[#allocation11 + $0xcd0] sm:$0xff]
    %v1693 = vld [vmem:[#allocation11 + $0xcd8] sm:$0xff]
    %v1694 = vld [vmem:[#allocation11 + $0xce0] sm:$0xff]
    %v1695 = vld [vmem:[#allocation11 + $0xce8] sm:$0xff]
    %v1696 = vld [vmem:[#allocation11 + $0xcf0] sm:$0xff]
    %v1697 = vld [vmem:[#allocation11 + $0xcf8] sm:$0xff]
    %v1698 = vld [vmem:[#allocation11 + $0xd00] sm:$0xff]
    %v1699 = vld [vmem:[#allocation11 + $0xd08] sm:$0xff]
    %v1700 = vld [vmem:[#allocation11 + $0xd10] sm:$0xff]
    %v1701 = vld [vmem:[#allocation11 + $0xd18] sm:$0xff]
    %v1702 = vld [vmem:[#allocation11 + $0xd20] sm:$0xff]
    %v1703 = vld [vmem:[#allocation11 + $0xd28] sm:$0xff]
    %v1704 = vld [vmem:[#allocation11 + $0xd30] sm:$0xff]
    %v1705 = vld [vmem:[#allocation11 + $0xd38] sm:$0xff]
    %v1706 = vld [vmem:[#allocation11 + $0xd40] sm:$0xff]
    %v1707 = vld [vmem:[#allocation11 + $0xd48] sm:$0xff]
    %v1708 = vld [vmem:[#allocation11 + $0xd50] sm:$0xff]
    %v1709 = vld [vmem:[#allocation11 + $0xd58] sm:$0xff]
    %v1710 = vld [vmem:[#allocation11 + $0xd60] sm:$0xff]
    %v1711 = vld [vmem:[#allocation11 + $0xd68] sm:$0xff]
    %v1712 = vld [vmem:[#allocation11 + $0xd70] sm:$0xff]
    %v1713 = vld [vmem:[#allocation11 + $0xd78] sm:$0xff]
    %v1714 = vld [vmem:[#allocation11 + $0xd80] sm:$0xff]
    %v1715 = vld [vmem:[#allocation11 + $0xd88] sm:$0xff]
    %v1716 = vld [vmem:[#allocation11 + $0xd90] sm:$0xff]
    %v1717 = vld [vmem:[#allocation11 + $0xd98] sm:$0xff]
    %v1718 = vld [vmem:[#allocation11 + $0xda0] sm:$0xff]
    %v1719 = vld [vmem:[#allocation11 + $0xda8] sm:$0xff]
    %v1720 = vld [vmem:[#allocation11 + $0xdb0] sm:$0xff]
    %v1721 = vld [vmem:[#allocation11 + $0xdb8] sm:$0xff]
    %v1722 = vld [vmem:[#allocation11 + $0xdc0] sm:$0xff]
    %v1723 = vld [vmem:[#allocation11 + $0xdc8] sm:$0xff]
    %v1724 = vld [vmem:[#allocation11 + $0xdd0] sm:$0xff]
    %v1725 = vld [vmem:[#allocation11 + $0xdd8] sm:$0xff]
    %v1726 = vld [vmem:[#allocation11 + $0xde0] sm:$0xff]
    %v1727 = vld [vmem:[#allocation11 + $0xde8] sm:$0xff]
    %v1728 = vld [vmem:[#allocation11 + $0xdf0] sm:$0xff]
    %v1729 = vld [vmem:[#allocation11 + $0xdf8] sm:$0xff]
    %v1730 = vld [vmem:[#allocation11 + $0xe00] sm:$0xff]
    %v1731 = vld [vmem:[#allocation11 + $0xe08] sm:$0xff]
    %v1732 = vld [vmem:[#allocation11 + $0xe10] sm:$0xff]
    %v1733 = vld [vmem:[#allocation11 + $0xe18] sm:$0xff]
    %v1734 = vld [vmem:[#allocation11 + $0xe20] sm:$0xff]
    %v1735 = vld [vmem:[#allocation11 + $0xe28] sm:$0xff]
    %v1736 = vld [vmem:[#allocation11 + $0xe30] sm:$0xff]
    %v1737 = vld [vmem:[#allocation11 + $0xe38] sm:$0xff]
    %v1738 = vld [vmem:[#allocation11 + $0xe40] sm:$0xff]
    %v1739 = vld [vmem:[#allocation11 + $0xe48] sm:$0xff]
    %v1740 = vld [vmem:[#allocation11 + $0xe50] sm:$0xff]
    %v1741 = vld [vmem:[#allocation11 + $0xe58] sm:$0xff]
    %v1742 = vld [vmem:[#allocation11 + $0xe60] sm:$0xff]
    %v1743 = vld [vmem:[#allocation11 + $0xe68] sm:$0xff]
    %v1744 = vld [vmem:[#allocation11 + $0xe70] sm:$0xff]
    %v1745 = vld [vmem:[#allocation11 + $0xe78] sm:$0xff]
    %v1746 = vld [vmem:[#allocation11 + $0xe80] sm:$0xff]
    %v1747 = vld [vmem:[#allocation11 + $0xe88] sm:$0xff]
    %v1748 = vld [vmem:[#allocation11 + $0xe90] sm:$0xff]
    %v1749 = vld [vmem:[#allocation11 + $0xe98] sm:$0xff]
    %v1750 = vld [vmem:[#allocation11 + $0xea0] sm:$0xff]
    %v1751 = vld [vmem:[#allocation11 + $0xea8] sm:$0xff]
    %v1752 = vld [vmem:[#allocation11 + $0xeb0] sm:$0xff]
    %v1753 = vld [vmem:[#allocation11 + $0xeb8] sm:$0xff]
    %v1754 = vld [vmem:[#allocation11 + $0xec0] sm:$0xff]
    %v1755 = vld [vmem:[#allocation11 + $0xec8] sm:$0xff]
    %v1756 = vld [vmem:[#allocation11 + $0xed0] sm:$0xff]
    %v1757 = vld [vmem:[#allocation11 + $0xed8] sm:$0xff]
    %v1758 = vld [vmem:[#allocation11 + $0xee0] sm:$0xff]
    %v1759 = vld [vmem:[#allocation11 + $0xee8] sm:$0xff]
    %v1760 = vld [vmem:[#allocation11 + $0xef0] sm:$0xff]
    %v1761 = vld [vmem:[#allocation11 + $0xef8] sm:$0xff]
    %v1762 = vld [vmem:[#allocation11 + $0xf00] sm:$0xff]
    %v1763 = vld [vmem:[#allocation11 + $0xf08] sm:$0xff]
    %v1764 = vld [vmem:[#allocation11 + $0xf10] sm:$0xff]
    %v1765 = vld [vmem:[#allocation11 + $0xf18] sm:$0xff]
    %v1766 = vld [vmem:[#allocation11 + $0xf20] sm:$0xff]
    %v1767 = vld [vmem:[#allocation11 + $0xf28] sm:$0xff]
    %v1768 = vld [vmem:[#allocation11 + $0xf30] sm:$0xff]
    %v1769 = vld [vmem:[#allocation11 + $0xf38] sm:$0xff]
    %v1770 = vld [vmem:[#allocation11 + $0xf40] sm:$0xff]
    %v1771 = vld [vmem:[#allocation11 + $0xf48] sm:$0xff]
    %v1772 = vld [vmem:[#allocation11 + $0xf50] sm:$0xff]
    %v1773 = vld [vmem:[#allocation11 + $0xf58] sm:$0xff]
    %v1774 = vld [vmem:[#allocation11 + $0xf60] sm:$0xff]
    %v1775 = vld [vmem:[#allocation11 + $0xf68] sm:$0xff]
    %v1776 = vld [vmem:[#allocation11 + $0xf70] sm:$0xff]
    %v1777 = vld [vmem:[#allocation11 + $0xf78] sm:$0xff]
    %v1778 = vld [vmem:[#allocation11 + $0xf80] sm:$0xff]
    %v1779 = vld [vmem:[#allocation11 + $0xf88] sm:$0xff]
    %v1780 = vld [vmem:[#allocation11 + $0xf90] sm:$0xff]
    %v1781 = vld [vmem:[#allocation11 + $0xf98] sm:$0xff]
    %v1782 = vld [vmem:[#allocation11 + $0xfa0] sm:$0xff]
    %v1783 = vld [vmem:[#allocation11 + $0xfa8] sm:$0xff]
    %v1784 = vld [vmem:[#allocation11 + $0xfb0] sm:$0xff]
    %v1785 = vld [vmem:[#allocation11 + $0xfb8] sm:$0xff]
    %v1786 = vld [vmem:[#allocation11 + $0xfc0] sm:$0xff]
    %v1787 = vld [vmem:[#allocation11 + $0xfc8] sm:$0xff]
    %v1788 = vld [vmem:[#allocation11 + $0xfd0] sm:$0xff]
    %v1789 = vld [vmem:[#allocation11 + $0xfd8] sm:$0xff]
    %v1790 = vld [vmem:[#allocation11 + $0xfe0] sm:$0xff]
    %v1791 = vld [vmem:[#allocation11 + $0xfe8] sm:$0xff]
    %v1792 = vld [vmem:[#allocation11 + $0xff0] sm:$0xff]
    %v1793 = vld [vmem:[#allocation11 + $0xff8] sm:$0xff]
    %v1794 = vld [vmem:[#allocation13] sm:$0xff]
    %v1795 = vld [vmem:[#allocation13 + $0x8] sm:$0xff]
    %v1798 = vperm.slane %v1794, 0
    %v1799 = vperm.slane %v1794, 1
    %v1800 = vperm.slane %v1794, 2
    %v1801 = vperm.slane %v1794, 3
    %v1802 = vperm.slane %v1794, 4
    %v1803 = vperm.slane %v1794, 5
    %v1804 = vperm.slane %v1794, 6
    %v1805 = vperm.slane %v1794, 7
    %v1806 = vperm.slane %v1795, 0
    %v1807 = vperm.slane %v1795, 1
    %v1808 = vperm.slane %v1795, 2
    %v1809 = vperm.slane %v1795, 3
    %v1810 = vperm.slane %v1795, 4
    %v1811 = vperm.slane %v1795, 5
    %v1812 = vperm.slane %v1795, 6
    %v1813 = vperm.slane %v1795, 7
    %v2342 = vunpack.c.l.b16 %v1282
    %v2343 = vunpack.c.h.b16 %v1282
    %v2344 = vunpack.c.l.b16 %v1283
    %v2345 = vunpack.c.h.b16 %v1283
    %v2346 = vunpack.c.l.b16 %v1284
    %v2347 = vunpack.c.h.b16 %v1284
    %v2348 = vunpack.c.l.b16 %v1285
    %v2349 = vunpack.c.h.b16 %v1285
    %v2350 = vunpack.c.l.b16 %v1286
    %v2351 = vunpack.c.h.b16 %v1286
    %v2352 = vunpack.c.l.b16 %v1287
    %v2353 = vunpack.c.h.b16 %v1287
    %v2354 = vunpack.c.l.b16 %v1288
    %v2355 = vunpack.c.h.b16 %v1288
    %v2356 = vunpack.c.l.b16 %v1289
    %v2357 = vunpack.c.h.b16 %v1289
    %v2358 = vunpack.c.l.b16 %v1290
    %v2359 = vunpack.c.h.b16 %v1290
    %v2360 = vunpack.c.l.b16 %v1291
    %v2361 = vunpack.c.h.b16 %v1291
    %v2362 = vunpack.c.l.b16 %v1292
    %v2363 = vunpack.c.h.b16 %v1292
    %v2364 = vunpack.c.l.b16 %v1293
    %v2365 = vunpack.c.h.b16 %v1293
    %v2366 = vunpack.c.l.b16 %v1294
    %v2367 = vunpack.c.h.b16 %v1294
    %v2368 = vunpack.c.l.b16 %v1295
    %v2369 = vunpack.c.h.b16 %v1295
    %v2370 = vunpack.c.l.b16 %v1296
    %v2371 = vunpack.c.h.b16 %v1296
    %v2372 = vunpack.c.l.b16 %v1297
    %v2373 = vunpack.c.h.b16 %v1297
    %v2374 = vunpack.c.l.b16 %v1298
    %v2375 = vunpack.c.h.b16 %v1298
    %v2376 = vunpack.c.l.b16 %v1299
    %v2377 = vunpack.c.h.b16 %v1299
    %v2378 = vunpack.c.l.b16 %v1300
    %v2379 = vunpack.c.h.b16 %v1300
    %v2380 = vunpack.c.l.b16 %v1301
    %v2381 = vunpack.c.h.b16 %v1301
    %v2382 = vunpack.c.l.b16 %v1302
    %v2383 = vunpack.c.h.b16 %v1302
    %v2384 = vunpack.c.l.b16 %v1303
    %v2385 = vunpack.c.h.b16 %v1303
    %v2386 = vunpack.c.l.b16 %v1304
    %v2387 = vunpack.c.h.b16 %v1304
    %v2388 = vunpack.c.l.b16 %v1305
    %v2389 = vunpack.c.h.b16 %v1305
    %v2390 = vunpack.c.l.b16 %v1306
    %v2391 = vunpack.c.h.b16 %v1306
    %v2392 = vunpack.c.l.b16 %v1307
    %v2393 = vunpack.c.h.b16 %v1307
    %v2394 = vunpack.c.l.b16 %v1308
    %v2395 = vunpack.c.h.b16 %v1308
    %v2396 = vunpack.c.l.b16 %v1309
    %v2397 = vunpack.c.h.b16 %v1309
    %v2398 = vunpack.c.l.b16 %v1310
    %v2399 = vunpack.c.h.b16 %v1310
    %v2400 = vunpack.c.l.b16 %v1311
    %v2401 = vunpack.c.h.b16 %v1311
    %v2402 = vunpack.c.l.b16 %v1312
    %v2403 = vunpack.c.h.b16 %v1312
    %v2404 = vunpack.c.l.b16 %v1313
    %v2405 = vunpack.c.h.b16 %v1313
    %v2406 = vunpack.c.l.b16 %v1314
    %v2407 = vunpack.c.h.b16 %v1314
    %v2408 = vunpack.c.l.b16 %v1315
    %v2409 = vunpack.c.h.b16 %v1315
    %v2410 = vunpack.c.l.b16 %v1316
    %v2411 = vunpack.c.h.b16 %v1316
    %v2412 = vunpack.c.l.b16 %v1317
    %v2413 = vunpack.c.h.b16 %v1317
    %v2414 = vunpack.c.l.b16 %v1318
    %v2415 = vunpack.c.h.b16 %v1318
    %v2416 = vunpack.c.l.b16 %v1319
    %v2417 = vunpack.c.h.b16 %v1319
    %v2418 = vunpack.c.l.b16 %v1320
    %v2419 = vunpack.c.h.b16 %v1320
    %v2420 = vunpack.c.l.b16 %v1321
    %v2421 = vunpack.c.h.b16 %v1321
    %v2422 = vunpack.c.l.b16 %v1322
    %v2423 = vunpack.c.h.b16 %v1322
    %v2424 = vunpack.c.l.b16 %v1323
    %v2425 = vunpack.c.h.b16 %v1323
    %v2426 = vunpack.c.l.b16 %v1324
    %v2427 = vunpack.c.h.b16 %v1324
    %v2428 = vunpack.c.l.b16 %v1325
    %v2429 = vunpack.c.h.b16 %v1325
    %v2430 = vunpack.c.l.b16 %v1326
    %v2431 = vunpack.c.h.b16 %v1326
    %v2432 = vunpack.c.l.b16 %v1327
    %v2433 = vunpack.c.h.b16 %v1327
    %v2434 = vunpack.c.l.b16 %v1328
    %v2435 = vunpack.c.h.b16 %v1328
    %v2436 = vunpack.c.l.b16 %v1329
    %v2437 = vunpack.c.h.b16 %v1329
    %v2438 = vunpack.c.l.b16 %v1330
    %v2439 = vunpack.c.h.b16 %v1330
    %v2440 = vunpack.c.l.b16 %v1331
    %v2441 = vunpack.c.h.b16 %v1331
    %v2442 = vunpack.c.l.b16 %v1332
    %v2443 = vunpack.c.h.b16 %v1332
    %v2444 = vunpack.c.l.b16 %v1333
    %v2445 = vunpack.c.h.b16 %v1333
    %v2446 = vunpack.c.l.b16 %v1334
    %v2447 = vunpack.c.h.b16 %v1334
    %v2448 = vunpack.c.l.b16 %v1335
    %v2449 = vunpack.c.h.b16 %v1335
    %v2450 = vunpack.c.l.b16 %v1336
    %v2451 = vunpack.c.h.b16 %v1336
    %v2452 = vunpack.c.l.b16 %v1337
    %v2453 = vunpack.c.h.b16 %v1337
    %v2454 = vunpack.c.l.b16 %v1338
    %v2455 = vunpack.c.h.b16 %v1338
    %v2456 = vunpack.c.l.b16 %v1339
    %v2457 = vunpack.c.h.b16 %v1339
    %v2458 = vunpack.c.l.b16 %v1340
    %v2459 = vunpack.c.h.b16 %v1340
    %v2460 = vunpack.c.l.b16 %v1341
    %v2461 = vunpack.c.h.b16 %v1341
    %v2462 = vunpack.c.l.b16 %v1342
    %v2463 = vunpack.c.h.b16 %v1342
    %v2464 = vunpack.c.l.b16 %v1343
    %v2465 = vunpack.c.h.b16 %v1343
    %v2466 = vunpack.c.l.b16 %v1344
    %v2467 = vunpack.c.h.b16 %v1344
    %v2468 = vunpack.c.l.b16 %v1345
    %v2469 = vunpack.c.h.b16 %v1345
    %v2470 = vunpack.c.l.b16 %v1346
    %v2471 = vunpack.c.h.b16 %v1346
    %v2472 = vunpack.c.l.b16 %v1347
    %v2473 = vunpack.c.h.b16 %v1347
    %v2474 = vunpack.c.l.b16 %v1348
    %v2475 = vunpack.c.h.b16 %v1348
    %v2476 = vunpack.c.l.b16 %v1349
    %v2477 = vunpack.c.h.b16 %v1349
    %v2478 = vunpack.c.l.b16 %v1350
    %v2479 = vunpack.c.h.b16 %v1350
    %v2480 = vunpack.c.l.b16 %v1351
    %v2481 = vunpack.c.h.b16 %v1351
    %v2482 = vunpack.c.l.b16 %v1352
    %v2483 = vunpack.c.h.b16 %v1352
    %v2484 = vunpack.c.l.b16 %v1353
    %v2485 = vunpack.c.h.b16 %v1353
    %v2486 = vunpack.c.l.b16 %v1354
    %v2487 = vunpack.c.h.b16 %v1354
    %v2488 = vunpack.c.l.b16 %v1355
    %v2489 = vunpack.c.h.b16 %v1355
    %v2490 = vunpack.c.l.b16 %v1356
    %v2491 = vunpack.c.h.b16 %v1356
    %v2492 = vunpack.c.l.b16 %v1357
    %v2493 = vunpack.c.h.b16 %v1357
    %v2494 = vunpack.c.l.b16 %v1358
    %v2495 = vunpack.c.h.b16 %v1358
    %v2496 = vunpack.c.l.b16 %v1359
    %v2497 = vunpack.c.h.b16 %v1359
    %v2498 = vunpack.c.l.b16 %v1360
    %v2499 = vunpack.c.h.b16 %v1360
    %v2500 = vunpack.c.l.b16 %v1361
    %v2501 = vunpack.c.h.b16 %v1361
    %v2502 = vunpack.c.l.b16 %v1362
    %v2503 = vunpack.c.h.b16 %v1362
    %v2504 = vunpack.c.l.b16 %v1363
    %v2505 = vunpack.c.h.b16 %v1363
    %v2506 = vunpack.c.l.b16 %v1364
    %v2507 = vunpack.c.h.b16 %v1364
    %v2508 = vunpack.c.l.b16 %v1365
    %v2509 = vunpack.c.h.b16 %v1365
    %v2510 = vunpack.c.l.b16 %v1366
    %v2511 = vunpack.c.h.b16 %v1366
    %v2512 = vunpack.c.l.b16 %v1367
    %v2513 = vunpack.c.h.b16 %v1367
    %v2514 = vunpack.c.l.b16 %v1368
    %v2515 = vunpack.c.h.b16 %v1368
    %v2516 = vunpack.c.l.b16 %v1369
    %v2517 = vunpack.c.h.b16 %v1369
    %v2518 = vunpack.c.l.b16 %v1370
    %v2519 = vunpack.c.h.b16 %v1370
    %v2520 = vunpack.c.l.b16 %v1371
    %v2521 = vunpack.c.h.b16 %v1371
    %v2522 = vunpack.c.l.b16 %v1372
    %v2523 = vunpack.c.h.b16 %v1372
    %v2524 = vunpack.c.l.b16 %v1373
    %v2525 = vunpack.c.h.b16 %v1373
    %v2526 = vunpack.c.l.b16 %v1374
    %v2527 = vunpack.c.h.b16 %v1374
    %v2528 = vunpack.c.l.b16 %v1375
    %v2529 = vunpack.c.h.b16 %v1375
    %v2530 = vunpack.c.l.b16 %v1376
    %v2531 = vunpack.c.h.b16 %v1376
    %v2532 = vunpack.c.l.b16 %v1377
    %v2533 = vunpack.c.h.b16 %v1377
    %v2534 = vunpack.c.l.b16 %v1378
    %v2535 = vunpack.c.h.b16 %v1378
    %v2536 = vunpack.c.l.b16 %v1379
    %v2537 = vunpack.c.h.b16 %v1379
    %v2538 = vunpack.c.l.b16 %v1380
    %v2539 = vunpack.c.h.b16 %v1380
    %v2540 = vunpack.c.l.b16 %v1381
    %v2541 = vunpack.c.h.b16 %v1381
    %v2542 = vunpack.c.l.b16 %v1382
    %v2543 = vunpack.c.h.b16 %v1382
    %v2544 = vunpack.c.l.b16 %v1383
    %v2545 = vunpack.c.h.b16 %v1383
    %v2546 = vunpack.c.l.b16 %v1384
    %v2547 = vunpack.c.h.b16 %v1384
    %v2548 = vunpack.c.l.b16 %v1385
    %v2549 = vunpack.c.h.b16 %v1385
    %v2550 = vunpack.c.l.b16 %v1386
    %v2551 = vunpack.c.h.b16 %v1386
    %v2552 = vunpack.c.l.b16 %v1387
    %v2553 = vunpack.c.h.b16 %v1387
    %v2554 = vunpack.c.l.b16 %v1388
    %v2555 = vunpack.c.h.b16 %v1388
    %v2556 = vunpack.c.l.b16 %v1389
    %v2557 = vunpack.c.h.b16 %v1389
    %v2558 = vunpack.c.l.b16 %v1390
    %v2559 = vunpack.c.h.b16 %v1390
    %v2560 = vunpack.c.l.b16 %v1391
    %v2561 = vunpack.c.h.b16 %v1391
    %v2562 = vunpack.c.l.b16 %v1392
    %v2563 = vunpack.c.h.b16 %v1392
    %v2564 = vunpack.c.l.b16 %v1393
    %v2565 = vunpack.c.h.b16 %v1393
    %v2566 = vunpack.c.l.b16 %v1394
    %v2567 = vunpack.c.h.b16 %v1394
    %v2568 = vunpack.c.l.b16 %v1395
    %v2569 = vunpack.c.h.b16 %v1395
    %v2570 = vunpack.c.l.b16 %v1396
    %v2571 = vunpack.c.h.b16 %v1396
    %v2572 = vunpack.c.l.b16 %v1397
    %v2573 = vunpack.c.h.b16 %v1397
    %v2574 = vunpack.c.l.b16 %v1398
    %v2575 = vunpack.c.h.b16 %v1398
    %v2576 = vunpack.c.l.b16 %v1399
    %v2577 = vunpack.c.h.b16 %v1399
    %v2578 = vunpack.c.l.b16 %v1400
    %v2579 = vunpack.c.h.b16 %v1400
    %v2580 = vunpack.c.l.b16 %v1401
    %v2581 = vunpack.c.h.b16 %v1401
    %v2582 = vunpack.c.l.b16 %v1402
    %v2583 = vunpack.c.h.b16 %v1402
    %v2584 = vunpack.c.l.b16 %v1403
    %v2585 = vunpack.c.h.b16 %v1403
    %v2586 = vunpack.c.l.b16 %v1404
    %v2587 = vunpack.c.h.b16 %v1404
    %v2588 = vunpack.c.l.b16 %v1405
    %v2589 = vunpack.c.h.b16 %v1405
    %v2590 = vunpack.c.l.b16 %v1406
    %v2591 = vunpack.c.h.b16 %v1406
    %v2592 = vunpack.c.l.b16 %v1407
    %v2593 = vunpack.c.h.b16 %v1407
    %v2594 = vunpack.c.l.b16 %v1408
    %v2595 = vunpack.c.h.b16 %v1408
    %v2596 = vunpack.c.l.b16 %v1409
    %v2597 = vunpack.c.h.b16 %v1409
    %v2598 = vunpack.c.l.b16 %v1410
    %v2599 = vunpack.c.h.b16 %v1410
    %v2600 = vunpack.c.l.b16 %v1411
    %v2601 = vunpack.c.h.b16 %v1411
    %v2602 = vunpack.c.l.b16 %v1412
    %v2603 = vunpack.c.h.b16 %v1412
    %v2604 = vunpack.c.l.b16 %v1413
    %v2605 = vunpack.c.h.b16 %v1413
    %v2606 = vunpack.c.l.b16 %v1414
    %v2607 = vunpack.c.h.b16 %v1414
    %v2608 = vunpack.c.l.b16 %v1415
    %v2609 = vunpack.c.h.b16 %v1415
    %v2610 = vunpack.c.l.b16 %v1416
    %v2611 = vunpack.c.h.b16 %v1416
    %v2612 = vunpack.c.l.b16 %v1417
    %v2613 = vunpack.c.h.b16 %v1417
    %v2614 = vunpack.c.l.b16 %v1418
    %v2615 = vunpack.c.h.b16 %v1418
    %v2616 = vunpack.c.l.b16 %v1419
    %v2617 = vunpack.c.h.b16 %v1419
    %v2618 = vunpack.c.l.b16 %v1420
    %v2619 = vunpack.c.h.b16 %v1420
    %v2620 = vunpack.c.l.b16 %v1421
    %v2621 = vunpack.c.h.b16 %v1421
    %v2622 = vunpack.c.l.b16 %v1422
    %v2623 = vunpack.c.h.b16 %v1422
    %v2624 = vunpack.c.l.b16 %v1423
    %v2625 = vunpack.c.h.b16 %v1423
    %v2626 = vunpack.c.l.b16 %v1424
    %v2627 = vunpack.c.h.b16 %v1424
    %v2628 = vunpack.c.l.b16 %v1425
    %v2629 = vunpack.c.h.b16 %v1425
    %v2630 = vunpack.c.l.b16 %v1426
    %v2631 = vunpack.c.h.b16 %v1426
    %v2632 = vunpack.c.l.b16 %v1427
    %v2633 = vunpack.c.h.b16 %v1427
    %v2634 = vunpack.c.l.b16 %v1428
    %v2635 = vunpack.c.h.b16 %v1428
    %v2636 = vunpack.c.l.b16 %v1429
    %v2637 = vunpack.c.h.b16 %v1429
    %v2638 = vunpack.c.l.b16 %v1430
    %v2639 = vunpack.c.h.b16 %v1430
    %v2640 = vunpack.c.l.b16 %v1431
    %v2641 = vunpack.c.h.b16 %v1431
    %v2642 = vunpack.c.l.b16 %v1432
    %v2643 = vunpack.c.h.b16 %v1432
    %v2644 = vunpack.c.l.b16 %v1433
    %v2645 = vunpack.c.h.b16 %v1433
    %v2646 = vunpack.c.l.b16 %v1434
    %v2647 = vunpack.c.h.b16 %v1434
    %v2648 = vunpack.c.l.b16 %v1435
    %v2649 = vunpack.c.h.b16 %v1435
    %v2650 = vunpack.c.l.b16 %v1436
    %v2651 = vunpack.c.h.b16 %v1436
    %v2652 = vunpack.c.l.b16 %v1437
    %v2653 = vunpack.c.h.b16 %v1437
    %v2654 = vunpack.c.l.b16 %v1438
    %v2655 = vunpack.c.h.b16 %v1438
    %v2656 = vunpack.c.l.b16 %v1439
    %v2657 = vunpack.c.h.b16 %v1439
    %v2658 = vunpack.c.l.b16 %v1440
    %v2659 = vunpack.c.h.b16 %v1440
    %v2660 = vunpack.c.l.b16 %v1441
    %v2661 = vunpack.c.h.b16 %v1441
    %v2662 = vunpack.c.l.b16 %v1442
    %v2663 = vunpack.c.h.b16 %v1442
    %v2664 = vunpack.c.l.b16 %v1443
    %v2665 = vunpack.c.h.b16 %v1443
    %v2666 = vunpack.c.l.b16 %v1444
    %v2667 = vunpack.c.h.b16 %v1444
    %v2668 = vunpack.c.l.b16 %v1445
    %v2669 = vunpack.c.h.b16 %v1445
    %v2670 = vunpack.c.l.b16 %v1446
    %v2671 = vunpack.c.h.b16 %v1446
    %v2672 = vunpack.c.l.b16 %v1447
    %v2673 = vunpack.c.h.b16 %v1447
    %v2674 = vunpack.c.l.b16 %v1448
    %v2675 = vunpack.c.h.b16 %v1448
    %v2676 = vunpack.c.l.b16 %v1449
    %v2677 = vunpack.c.h.b16 %v1449
    %v2678 = vunpack.c.l.b16 %v1450
    %v2679 = vunpack.c.h.b16 %v1450
    %v2680 = vunpack.c.l.b16 %v1451
    %v2681 = vunpack.c.h.b16 %v1451
    %v2682 = vunpack.c.l.b16 %v1452
    %v2683 = vunpack.c.h.b16 %v1452
    %v2684 = vunpack.c.l.b16 %v1453
    %v2685 = vunpack.c.h.b16 %v1453
    %v2686 = vunpack.c.l.b16 %v1454
    %v2687 = vunpack.c.h.b16 %v1454
    %v2688 = vunpack.c.l.b16 %v1455
    %v2689 = vunpack.c.h.b16 %v1455
    %v2690 = vunpack.c.l.b16 %v1456
    %v2691 = vunpack.c.h.b16 %v1456
    %v2692 = vunpack.c.l.b16 %v1457
    %v2693 = vunpack.c.h.b16 %v1457
    %v2694 = vunpack.c.l.b16 %v1458
    %v2695 = vunpack.c.h.b16 %v1458
    %v2696 = vunpack.c.l.b16 %v1459
    %v2697 = vunpack.c.h.b16 %v1459
    %v2698 = vunpack.c.l.b16 %v1460
    %v2699 = vunpack.c.h.b16 %v1460
    %v2700 = vunpack.c.l.b16 %v1461
    %v2701 = vunpack.c.h.b16 %v1461
    %v2702 = vunpack.c.l.b16 %v1462
    %v2703 = vunpack.c.h.b16 %v1462
    %v2704 = vunpack.c.l.b16 %v1463
    %v2705 = vunpack.c.h.b16 %v1463
    %v2706 = vunpack.c.l.b16 %v1464
    %v2707 = vunpack.c.h.b16 %v1464
    %v2708 = vunpack.c.l.b16 %v1465
    %v2709 = vunpack.c.h.b16 %v1465
    %v2710 = vunpack.c.l.b16 %v1466
    %v2711 = vunpack.c.h.b16 %v1466
    %v2712 = vunpack.c.l.b16 %v1467
    %v2713 = vunpack.c.h.b16 %v1467
    %v2714 = vunpack.c.l.b16 %v1468
    %v2715 = vunpack.c.h.b16 %v1468
    %v2716 = vunpack.c.l.b16 %v1469
    %v2717 = vunpack.c.h.b16 %v1469
    %v2718 = vunpack.c.l.b16 %v1470
    %v2719 = vunpack.c.h.b16 %v1470
    %v2720 = vunpack.c.l.b16 %v1471
    %v2721 = vunpack.c.h.b16 %v1471
    %v2722 = vunpack.c.l.b16 %v1472
    %v2723 = vunpack.c.h.b16 %v1472
    %v2724 = vunpack.c.l.b16 %v1473
    %v2725 = vunpack.c.h.b16 %v1473
    %v2726 = vunpack.c.l.b16 %v1474
    %v2727 = vunpack.c.h.b16 %v1474
    %v2728 = vunpack.c.l.b16 %v1475
    %v2729 = vunpack.c.h.b16 %v1475
    %v2730 = vunpack.c.l.b16 %v1476
    %v2731 = vunpack.c.h.b16 %v1476
    %v2732 = vunpack.c.l.b16 %v1477
    %v2733 = vunpack.c.h.b16 %v1477
    %v2734 = vunpack.c.l.b16 %v1478
    %v2735 = vunpack.c.h.b16 %v1478
    %v2736 = vunpack.c.l.b16 %v1479
    %v2737 = vunpack.c.h.b16 %v1479
    %v2738 = vunpack.c.l.b16 %v1480
    %v2739 = vunpack.c.h.b16 %v1480
    %v2740 = vunpack.c.l.b16 %v1481
    %v2741 = vunpack.c.h.b16 %v1481
    %v2742 = vunpack.c.l.b16 %v1482
    %v2743 = vunpack.c.h.b16 %v1482
    %v2744 = vunpack.c.l.b16 %v1483
    %v2745 = vunpack.c.h.b16 %v1483
    %v2746 = vunpack.c.l.b16 %v1484
    %v2747 = vunpack.c.h.b16 %v1484
    %v2748 = vunpack.c.l.b16 %v1485
    %v2749 = vunpack.c.h.b16 %v1485
    %v2750 = vunpack.c.l.b16 %v1486
    %v2751 = vunpack.c.h.b16 %v1486
    %v2752 = vunpack.c.l.b16 %v1487
    %v2753 = vunpack.c.h.b16 %v1487
    %v2754 = vunpack.c.l.b16 %v1488
    %v2755 = vunpack.c.h.b16 %v1488
    %v2756 = vunpack.c.l.b16 %v1489
    %v2757 = vunpack.c.h.b16 %v1489
    %v2758 = vunpack.c.l.b16 %v1490
    %v2759 = vunpack.c.h.b16 %v1490
    %v2760 = vunpack.c.l.b16 %v1491
    %v2761 = vunpack.c.h.b16 %v1491
    %v2762 = vunpack.c.l.b16 %v1492
    %v2763 = vunpack.c.h.b16 %v1492
    %v2764 = vunpack.c.l.b16 %v1493
    %v2765 = vunpack.c.h.b16 %v1493
    %v2766 = vunpack.c.l.b16 %v1494
    %v2767 = vunpack.c.h.b16 %v1494
    %v2768 = vunpack.c.l.b16 %v1495
    %v2769 = vunpack.c.h.b16 %v1495
    %v2770 = vunpack.c.l.b16 %v1496
    %v2771 = vunpack.c.h.b16 %v1496
    %v2772 = vunpack.c.l.b16 %v1497
    %v2773 = vunpack.c.h.b16 %v1497
    %v2774 = vunpack.c.l.b16 %v1498
    %v2775 = vunpack.c.h.b16 %v1498
    %v2776 = vunpack.c.l.b16 %v1499
    %v2777 = vunpack.c.h.b16 %v1499
    %v2778 = vunpack.c.l.b16 %v1500
    %v2779 = vunpack.c.h.b16 %v1500
    %v2780 = vunpack.c.l.b16 %v1501
    %v2781 = vunpack.c.h.b16 %v1501
    %v2782 = vunpack.c.l.b16 %v1502
    %v2783 = vunpack.c.h.b16 %v1502
    %v2784 = vunpack.c.l.b16 %v1503
    %v2785 = vunpack.c.h.b16 %v1503
    %v2786 = vunpack.c.l.b16 %v1504
    %v2787 = vunpack.c.h.b16 %v1504
    %v2788 = vunpack.c.l.b16 %v1505
    %v2789 = vunpack.c.h.b16 %v1505
    %v2790 = vunpack.c.l.b16 %v1506
    %v2791 = vunpack.c.h.b16 %v1506
    %v2792 = vunpack.c.l.b16 %v1507
    %v2793 = vunpack.c.h.b16 %v1507
    %v2794 = vunpack.c.l.b16 %v1508
    %v2795 = vunpack.c.h.b16 %v1508
    %v2796 = vunpack.c.l.b16 %v1509
    %v2797 = vunpack.c.h.b16 %v1509
    %v2798 = vunpack.c.l.b16 %v1510
    %v2799 = vunpack.c.h.b16 %v1510
    %v2800 = vunpack.c.l.b16 %v1511
    %v2801 = vunpack.c.h.b16 %v1511
    %v2802 = vunpack.c.l.b16 %v1512
    %v2803 = vunpack.c.h.b16 %v1512
    %v2804 = vunpack.c.l.b16 %v1513
    %v2805 = vunpack.c.h.b16 %v1513
    %v2806 = vunpack.c.l.b16 %v1514
    %v2807 = vunpack.c.h.b16 %v1514
    %v2808 = vunpack.c.l.b16 %v1515
    %v2809 = vunpack.c.h.b16 %v1515
    %v2810 = vunpack.c.l.b16 %v1516
    %v2811 = vunpack.c.h.b16 %v1516
    %v2812 = vunpack.c.l.b16 %v1517
    %v2813 = vunpack.c.h.b16 %v1517
    %v2814 = vunpack.c.l.b16 %v1518
    %v2815 = vunpack.c.h.b16 %v1518
    %v2816 = vunpack.c.l.b16 %v1519
    %v2817 = vunpack.c.h.b16 %v1519
    %v2818 = vunpack.c.l.b16 %v1520
    %v2819 = vunpack.c.h.b16 %v1520
    %v2820 = vunpack.c.l.b16 %v1521
    %v2821 = vunpack.c.h.b16 %v1521
    %v2822 = vunpack.c.l.b16 %v1522
    %v2823 = vunpack.c.h.b16 %v1522
    %v2824 = vunpack.c.l.b16 %v1523
    %v2825 = vunpack.c.h.b16 %v1523
    %v2826 = vunpack.c.l.b16 %v1524
    %v2827 = vunpack.c.h.b16 %v1524
    %v2828 = vunpack.c.l.b16 %v1525
    %v2829 = vunpack.c.h.b16 %v1525
    %v2830 = vunpack.c.l.b16 %v1526
    %v2831 = vunpack.c.h.b16 %v1526
    %v2832 = vunpack.c.l.b16 %v1527
    %v2833 = vunpack.c.h.b16 %v1527
    %v2834 = vunpack.c.l.b16 %v1528
    %v2835 = vunpack.c.h.b16 %v1528
    %v2836 = vunpack.c.l.b16 %v1529
    %v2837 = vunpack.c.h.b16 %v1529
    %v2838 = vunpack.c.l.b16 %v1530
    %v2839 = vunpack.c.h.b16 %v1530
    %v2840 = vunpack.c.l.b16 %v1531
    %v2841 = vunpack.c.h.b16 %v1531
    %v2842 = vunpack.c.l.b16 %v1532
    %v2843 = vunpack.c.h.b16 %v1532
    %v2844 = vunpack.c.l.b16 %v1533
    %v2845 = vunpack.c.h.b16 %v1533
    %v2846 = vunpack.c.l.b16 %v1534
    %v2847 = vunpack.c.h.b16 %v1534
    %v2848 = vunpack.c.l.b16 %v1535
    %v2849 = vunpack.c.h.b16 %v1535
    %v2850 = vunpack.c.l.b16 %v1536
    %v2851 = vunpack.c.h.b16 %v1536
    %v2852 = vunpack.c.l.b16 %v1537
    %v2853 = vunpack.c.h.b16 %v1537
    %v2854 = vunpack.c.l.b16 %v1538
    %v2855 = vunpack.c.h.b16 %v1538
    %v2856 = vunpack.c.l.b16 %v1539
    %v2857 = vunpack.c.h.b16 %v1539
    %v2858 = vunpack.c.l.b16 %v1540
    %v2859 = vunpack.c.h.b16 %v1540
    %v2860 = vunpack.c.l.b16 %v1541
    %v2861 = vunpack.c.h.b16 %v1541
    %v2862 = vunpack.c.l.b16 %v1542
    %v2863 = vunpack.c.h.b16 %v1542
    %v2864 = vunpack.c.l.b16 %v1543
    %v2865 = vunpack.c.h.b16 %v1543
    %v2866 = vunpack.c.l.b16 %v1544
    %v2867 = vunpack.c.h.b16 %v1544
    %v2868 = vunpack.c.l.b16 %v1545
    %v2869 = vunpack.c.h.b16 %v1545
    %v2870 = vunpack.c.l.b16 %v1546
    %v2871 = vunpack.c.h.b16 %v1546
    %v2872 = vunpack.c.l.b16 %v1547
    %v2873 = vunpack.c.h.b16 %v1547
    %v2874 = vunpack.c.l.b16 %v1548
    %v2875 = vunpack.c.h.b16 %v1548
    %v2876 = vunpack.c.l.b16 %v1549
    %v2877 = vunpack.c.h.b16 %v1549
    %v2878 = vunpack.c.l.b16 %v1550
    %v2879 = vunpack.c.h.b16 %v1550
    %v2880 = vunpack.c.l.b16 %v1551
    %v2881 = vunpack.c.h.b16 %v1551
    %v2882 = vunpack.c.l.b16 %v1552
    %v2883 = vunpack.c.h.b16 %v1552
    %v2884 = vunpack.c.l.b16 %v1553
    %v2885 = vunpack.c.h.b16 %v1553
    %v2886 = vunpack.c.l.b16 %v1554
    %v2887 = vunpack.c.h.b16 %v1554
    %v2888 = vunpack.c.l.b16 %v1555
    %v2889 = vunpack.c.h.b16 %v1555
    %v2890 = vunpack.c.l.b16 %v1556
    %v2891 = vunpack.c.h.b16 %v1556
    %v2892 = vunpack.c.l.b16 %v1557
    %v2893 = vunpack.c.h.b16 %v1557
    %v2894 = vunpack.c.l.b16 %v1558
    %v2895 = vunpack.c.h.b16 %v1558
    %v2896 = vunpack.c.l.b16 %v1559
    %v2897 = vunpack.c.h.b16 %v1559
    %v2898 = vunpack.c.l.b16 %v1560
    %v2899 = vunpack.c.h.b16 %v1560
    %v2900 = vunpack.c.l.b16 %v1561
    %v2901 = vunpack.c.h.b16 %v1561
    %v2902 = vunpack.c.l.b16 %v1562
    %v2903 = vunpack.c.h.b16 %v1562
    %v2904 = vunpack.c.l.b16 %v1563
    %v2905 = vunpack.c.h.b16 %v1563
    %v2906 = vunpack.c.l.b16 %v1564
    %v2907 = vunpack.c.h.b16 %v1564
    %v2908 = vunpack.c.l.b16 %v1565
    %v2909 = vunpack.c.h.b16 %v1565
    %v2910 = vunpack.c.l.b16 %v1566
    %v2911 = vunpack.c.h.b16 %v1566
    %v2912 = vunpack.c.l.b16 %v1567
    %v2913 = vunpack.c.h.b16 %v1567
    %v2914 = vunpack.c.l.b16 %v1568
    %v2915 = vunpack.c.h.b16 %v1568
    %v2916 = vunpack.c.l.b16 %v1569
    %v2917 = vunpack.c.h.b16 %v1569
    %v2918 = vunpack.c.l.b16 %v1570
    %v2919 = vunpack.c.h.b16 %v1570
    %v2920 = vunpack.c.l.b16 %v1571
    %v2921 = vunpack.c.h.b16 %v1571
    %v2922 = vunpack.c.l.b16 %v1572
    %v2923 = vunpack.c.h.b16 %v1572
    %v2924 = vunpack.c.l.b16 %v1573
    %v2925 = vunpack.c.h.b16 %v1573
    %v2926 = vunpack.c.l.b16 %v1574
    %v2927 = vunpack.c.h.b16 %v1574
    %v2928 = vunpack.c.l.b16 %v1575
    %v2929 = vunpack.c.h.b16 %v1575
    %v2930 = vunpack.c.l.b16 %v1576
    %v2931 = vunpack.c.h.b16 %v1576
    %v2932 = vunpack.c.l.b16 %v1577
    %v2933 = vunpack.c.h.b16 %v1577
    %v2934 = vunpack.c.l.b16 %v1578
    %v2935 = vunpack.c.h.b16 %v1578
    %v2936 = vunpack.c.l.b16 %v1579
    %v2937 = vunpack.c.h.b16 %v1579
    %v2938 = vunpack.c.l.b16 %v1580
    %v2939 = vunpack.c.h.b16 %v1580
    %v2940 = vunpack.c.l.b16 %v1581
    %v2941 = vunpack.c.h.b16 %v1581
    %v2942 = vunpack.c.l.b16 %v1582
    %v2943 = vunpack.c.h.b16 %v1582
    %v2944 = vunpack.c.l.b16 %v1583
    %v2945 = vunpack.c.h.b16 %v1583
    %v2946 = vunpack.c.l.b16 %v1584
    %v2947 = vunpack.c.h.b16 %v1584
    %v2948 = vunpack.c.l.b16 %v1585
    %v2949 = vunpack.c.h.b16 %v1585
    %v2950 = vunpack.c.l.b16 %v1586
    %v2951 = vunpack.c.h.b16 %v1586
    %v2952 = vunpack.c.l.b16 %v1587
    %v2953 = vunpack.c.h.b16 %v1587
    %v2954 = vunpack.c.l.b16 %v1588
    %v2955 = vunpack.c.h.b16 %v1588
    %v2956 = vunpack.c.l.b16 %v1589
    %v2957 = vunpack.c.h.b16 %v1589
    %v2958 = vunpack.c.l.b16 %v1590
    %v2959 = vunpack.c.h.b16 %v1590
    %v2960 = vunpack.c.l.b16 %v1591
    %v2961 = vunpack.c.h.b16 %v1591
    %v2962 = vunpack.c.l.b16 %v1592
    %v2963 = vunpack.c.h.b16 %v1592
    %v2964 = vunpack.c.l.b16 %v1593
    %v2965 = vunpack.c.h.b16 %v1593
    %v2966 = vunpack.c.l.b16 %v1594
    %v2967 = vunpack.c.h.b16 %v1594
    %v2968 = vunpack.c.l.b16 %v1595
    %v2969 = vunpack.c.h.b16 %v1595
    %v2970 = vunpack.c.l.b16 %v1596
    %v2971 = vunpack.c.h.b16 %v1596
    %v2972 = vunpack.c.l.b16 %v1597
    %v2973 = vunpack.c.h.b16 %v1597
    %v2974 = vunpack.c.l.b16 %v1598
    %v2975 = vunpack.c.h.b16 %v1598
    %v2976 = vunpack.c.l.b16 %v1599
    %v2977 = vunpack.c.h.b16 %v1599
    %v2978 = vunpack.c.l.b16 %v1600
    %v2979 = vunpack.c.h.b16 %v1600
    %v2980 = vunpack.c.l.b16 %v1601
    %v2981 = vunpack.c.h.b16 %v1601
    %v2982 = vunpack.c.l.b16 %v1602
    %v2983 = vunpack.c.h.b16 %v1602
    %v2984 = vunpack.c.l.b16 %v1603
    %v2985 = vunpack.c.h.b16 %v1603
    %v2986 = vunpack.c.l.b16 %v1604
    %v2987 = vunpack.c.h.b16 %v1604
    %v2988 = vunpack.c.l.b16 %v1605
    %v2989 = vunpack.c.h.b16 %v1605
    %v2990 = vunpack.c.l.b16 %v1606
    %v2991 = vunpack.c.h.b16 %v1606
    %v2992 = vunpack.c.l.b16 %v1607
    %v2993 = vunpack.c.h.b16 %v1607
    %v2994 = vunpack.c.l.b16 %v1608
    %v2995 = vunpack.c.h.b16 %v1608
    %v2996 = vunpack.c.l.b16 %v1609
    %v2997 = vunpack.c.h.b16 %v1609
    %v2998 = vunpack.c.l.b16 %v1610
    %v2999 = vunpack.c.h.b16 %v1610
    %v3000 = vunpack.c.l.b16 %v1611
    %v3001 = vunpack.c.h.b16 %v1611
    %v3002 = vunpack.c.l.b16 %v1612
    %v3003 = vunpack.c.h.b16 %v1612
    %v3004 = vunpack.c.l.b16 %v1613
    %v3005 = vunpack.c.h.b16 %v1613
    %v3006 = vunpack.c.l.b16 %v1614
    %v3007 = vunpack.c.h.b16 %v1614
    %v3008 = vunpack.c.l.b16 %v1615
    %v3009 = vunpack.c.h.b16 %v1615
    %v3010 = vunpack.c.l.b16 %v1616
    %v3011 = vunpack.c.h.b16 %v1616
    %v3012 = vunpack.c.l.b16 %v1617
    %v3013 = vunpack.c.h.b16 %v1617
    %v3014 = vunpack.c.l.b16 %v1618
    %v3015 = vunpack.c.h.b16 %v1618
    %v3016 = vunpack.c.l.b16 %v1619
    %v3017 = vunpack.c.h.b16 %v1619
    %v3018 = vunpack.c.l.b16 %v1620
    %v3019 = vunpack.c.h.b16 %v1620
    %v3020 = vunpack.c.l.b16 %v1621
    %v3021 = vunpack.c.h.b16 %v1621
    %v3022 = vunpack.c.l.b16 %v1622
    %v3023 = vunpack.c.h.b16 %v1622
    %v3024 = vunpack.c.l.b16 %v1623
    %v3025 = vunpack.c.h.b16 %v1623
    %v3026 = vunpack.c.l.b16 %v1624
    %v3027 = vunpack.c.h.b16 %v1624
    %v3028 = vunpack.c.l.b16 %v1625
    %v3029 = vunpack.c.h.b16 %v1625
    %v3030 = vunpack.c.l.b16 %v1626
    %v3031 = vunpack.c.h.b16 %v1626
    %v3032 = vunpack.c.l.b16 %v1627
    %v3033 = vunpack.c.h.b16 %v1627
    %v3034 = vunpack.c.l.b16 %v1628
    %v3035 = vunpack.c.h.b16 %v1628
    %v3036 = vunpack.c.l.b16 %v1629
    %v3037 = vunpack.c.h.b16 %v1629
    %v3038 = vunpack.c.l.b16 %v1630
    %v3039 = vunpack.c.h.b16 %v1630
    %v3040 = vunpack.c.l.b16 %v1631
    %v3041 = vunpack.c.h.b16 %v1631
    %v3042 = vunpack.c.l.b16 %v1632
    %v3043 = vunpack.c.h.b16 %v1632
    %v3044 = vunpack.c.l.b16 %v1633
    %v3045 = vunpack.c.h.b16 %v1633
    %v3046 = vunpack.c.l.b16 %v1634
    %v3047 = vunpack.c.h.b16 %v1634
    %v3048 = vunpack.c.l.b16 %v1635
    %v3049 = vunpack.c.h.b16 %v1635
    %v3050 = vunpack.c.l.b16 %v1636
    %v3051 = vunpack.c.h.b16 %v1636
    %v3052 = vunpack.c.l.b16 %v1637
    %v3053 = vunpack.c.h.b16 %v1637
    %v3054 = vunpack.c.l.b16 %v1638
    %v3055 = vunpack.c.h.b16 %v1638
    %v3056 = vunpack.c.l.b16 %v1639
    %v3057 = vunpack.c.h.b16 %v1639
    %v3058 = vunpack.c.l.b16 %v1640
    %v3059 = vunpack.c.h.b16 %v1640
    %v3060 = vunpack.c.l.b16 %v1641
    %v3061 = vunpack.c.h.b16 %v1641
    %v3062 = vunpack.c.l.b16 %v1642
    %v3063 = vunpack.c.h.b16 %v1642
    %v3064 = vunpack.c.l.b16 %v1643
    %v3065 = vunpack.c.h.b16 %v1643
    %v3066 = vunpack.c.l.b16 %v1644
    %v3067 = vunpack.c.h.b16 %v1644
    %v3068 = vunpack.c.l.b16 %v1645
    %v3069 = vunpack.c.h.b16 %v1645
    %v3070 = vunpack.c.l.b16 %v1646
    %v3071 = vunpack.c.h.b16 %v1646
    %v3072 = vunpack.c.l.b16 %v1647
    %v3073 = vunpack.c.h.b16 %v1647
    %v3074 = vunpack.c.l.b16 %v1648
    %v3075 = vunpack.c.h.b16 %v1648
    %v3076 = vunpack.c.l.b16 %v1649
    %v3077 = vunpack.c.h.b16 %v1649
    %v3078 = vunpack.c.l.b16 %v1650
    %v3079 = vunpack.c.h.b16 %v1650
    %v3080 = vunpack.c.l.b16 %v1651
    %v3081 = vunpack.c.h.b16 %v1651
    %v3082 = vunpack.c.l.b16 %v1652
    %v3083 = vunpack.c.h.b16 %v1652
    %v3084 = vunpack.c.l.b16 %v1653
    %v3085 = vunpack.c.h.b16 %v1653
    %v3086 = vunpack.c.l.b16 %v1654
    %v3087 = vunpack.c.h.b16 %v1654
    %v3088 = vunpack.c.l.b16 %v1655
    %v3089 = vunpack.c.h.b16 %v1655
    %v3090 = vunpack.c.l.b16 %v1656
    %v3091 = vunpack.c.h.b16 %v1656
    %v3092 = vunpack.c.l.b16 %v1657
    %v3093 = vunpack.c.h.b16 %v1657
    %v3094 = vunpack.c.l.b16 %v1658
    %v3095 = vunpack.c.h.b16 %v1658
    %v3096 = vunpack.c.l.b16 %v1659
    %v3097 = vunpack.c.h.b16 %v1659
    %v3098 = vunpack.c.l.b16 %v1660
    %v3099 = vunpack.c.h.b16 %v1660
    %v3100 = vunpack.c.l.b16 %v1661
    %v3101 = vunpack.c.h.b16 %v1661
    %v3102 = vunpack.c.l.b16 %v1662
    %v3103 = vunpack.c.h.b16 %v1662
    %v3104 = vunpack.c.l.b16 %v1663
    %v3105 = vunpack.c.h.b16 %v1663
    %v3106 = vunpack.c.l.b16 %v1664
    %v3107 = vunpack.c.h.b16 %v1664
    %v3108 = vunpack.c.l.b16 %v1665
    %v3109 = vunpack.c.h.b16 %v1665
    %v3110 = vunpack.c.l.b16 %v1666
    %v3111 = vunpack.c.h.b16 %v1666
    %v3112 = vunpack.c.l.b16 %v1667
    %v3113 = vunpack.c.h.b16 %v1667
    %v3114 = vunpack.c.l.b16 %v1668
    %v3115 = vunpack.c.h.b16 %v1668
    %v3116 = vunpack.c.l.b16 %v1669
    %v3117 = vunpack.c.h.b16 %v1669
    %v3118 = vunpack.c.l.b16 %v1670
    %v3119 = vunpack.c.h.b16 %v1670
    %v3120 = vunpack.c.l.b16 %v1671
    %v3121 = vunpack.c.h.b16 %v1671
    %v3122 = vunpack.c.l.b16 %v1672
    %v3123 = vunpack.c.h.b16 %v1672
    %v3124 = vunpack.c.l.b16 %v1673
    %v3125 = vunpack.c.h.b16 %v1673
    %v3126 = vunpack.c.l.b16 %v1674
    %v3127 = vunpack.c.h.b16 %v1674
    %v3128 = vunpack.c.l.b16 %v1675
    %v3129 = vunpack.c.h.b16 %v1675
    %v3130 = vunpack.c.l.b16 %v1676
    %v3131 = vunpack.c.h.b16 %v1676
    %v3132 = vunpack.c.l.b16 %v1677
    %v3133 = vunpack.c.h.b16 %v1677
    %v3134 = vunpack.c.l.b16 %v1678
    %v3135 = vunpack.c.h.b16 %v1678
    %v3136 = vunpack.c.l.b16 %v1679
    %v3137 = vunpack.c.h.b16 %v1679
    %v3138 = vunpack.c.l.b16 %v1680
    %v3139 = vunpack.c.h.b16 %v1680
    %v3140 = vunpack.c.l.b16 %v1681
    %v3141 = vunpack.c.h.b16 %v1681
    %v3142 = vunpack.c.l.b16 %v1682
    %v3143 = vunpack.c.h.b16 %v1682
    %v3144 = vunpack.c.l.b16 %v1683
    %v3145 = vunpack.c.h.b16 %v1683
    %v3146 = vunpack.c.l.b16 %v1684
    %v3147 = vunpack.c.h.b16 %v1684
    %v3148 = vunpack.c.l.b16 %v1685
    %v3149 = vunpack.c.h.b16 %v1685
    %v3150 = vunpack.c.l.b16 %v1686
    %v3151 = vunpack.c.h.b16 %v1686
    %v3152 = vunpack.c.l.b16 %v1687
    %v3153 = vunpack.c.h.b16 %v1687
    %v3154 = vunpack.c.l.b16 %v1688
    %v3155 = vunpack.c.h.b16 %v1688
    %v3156 = vunpack.c.l.b16 %v1689
    %v3157 = vunpack.c.h.b16 %v1689
    %v3158 = vunpack.c.l.b16 %v1690
    %v3159 = vunpack.c.h.b16 %v1690
    %v3160 = vunpack.c.l.b16 %v1691
    %v3161 = vunpack.c.h.b16 %v1691
    %v3162 = vunpack.c.l.b16 %v1692
    %v3163 = vunpack.c.h.b16 %v1692
    %v3164 = vunpack.c.l.b16 %v1693
    %v3165 = vunpack.c.h.b16 %v1693
    %v3166 = vunpack.c.l.b16 %v1694
    %v3167 = vunpack.c.h.b16 %v1694
    %v3168 = vunpack.c.l.b16 %v1695
    %v3169 = vunpack.c.h.b16 %v1695
    %v3170 = vunpack.c.l.b16 %v1696
    %v3171 = vunpack.c.h.b16 %v1696
    %v3172 = vunpack.c.l.b16 %v1697
    %v3173 = vunpack.c.h.b16 %v1697
    %v3174 = vunpack.c.l.b16 %v1698
    %v3175 = vunpack.c.h.b16 %v1698
    %v3176 = vunpack.c.l.b16 %v1699
    %v3177 = vunpack.c.h.b16 %v1699
    %v3178 = vunpack.c.l.b16 %v1700
    %v3179 = vunpack.c.h.b16 %v1700
    %v3180 = vunpack.c.l.b16 %v1701
    %v3181 = vunpack.c.h.b16 %v1701
    %v3182 = vunpack.c.l.b16 %v1702
    %v3183 = vunpack.c.h.b16 %v1702
    %v3184 = vunpack.c.l.b16 %v1703
    %v3185 = vunpack.c.h.b16 %v1703
    %v3186 = vunpack.c.l.b16 %v1704
    %v3187 = vunpack.c.h.b16 %v1704
    %v3188 = vunpack.c.l.b16 %v1705
    %v3189 = vunpack.c.h.b16 %v1705
    %v3190 = vunpack.c.l.b16 %v1706
    %v3191 = vunpack.c.h.b16 %v1706
    %v3192 = vunpack.c.l.b16 %v1707
    %v3193 = vunpack.c.h.b16 %v1707
    %v3194 = vunpack.c.l.b16 %v1708
    %v3195 = vunpack.c.h.b16 %v1708
    %v3196 = vunpack.c.l.b16 %v1709
    %v3197 = vunpack.c.h.b16 %v1709
    %v3198 = vunpack.c.l.b16 %v1710
    %v3199 = vunpack.c.h.b16 %v1710
    %v3200 = vunpack.c.l.b16 %v1711
    %v3201 = vunpack.c.h.b16 %v1711
    %v3202 = vunpack.c.l.b16 %v1712
    %v3203 = vunpack.c.h.b16 %v1712
    %v3204 = vunpack.c.l.b16 %v1713
    %v3205 = vunpack.c.h.b16 %v1713
    %v3206 = vunpack.c.l.b16 %v1714
    %v3207 = vunpack.c.h.b16 %v1714
    %v3208 = vunpack.c.l.b16 %v1715
    %v3209 = vunpack.c.h.b16 %v1715
    %v3210 = vunpack.c.l.b16 %v1716
    %v3211 = vunpack.c.h.b16 %v1716
    %v3212 = vunpack.c.l.b16 %v1717
    %v3213 = vunpack.c.h.b16 %v1717
    %v3214 = vunpack.c.l.b16 %v1718
    %v3215 = vunpack.c.h.b16 %v1718
    %v3216 = vunpack.c.l.b16 %v1719
    %v3217 = vunpack.c.h.b16 %v1719
    %v3218 = vunpack.c.l.b16 %v1720
    %v3219 = vunpack.c.h.b16 %v1720
    %v3220 = vunpack.c.l.b16 %v1721
    %v3221 = vunpack.c.h.b16 %v1721
    %v3222 = vunpack.c.l.b16 %v1722
    %v3223 = vunpack.c.h.b16 %v1722
    %v3224 = vunpack.c.l.b16 %v1723
    %v3225 = vunpack.c.h.b16 %v1723
    %v3226 = vunpack.c.l.b16 %v1724
    %v3227 = vunpack.c.h.b16 %v1724
    %v3228 = vunpack.c.l.b16 %v1725
    %v3229 = vunpack.c.h.b16 %v1725
    %v3230 = vunpack.c.l.b16 %v1726
    %v3231 = vunpack.c.h.b16 %v1726
    %v3232 = vunpack.c.l.b16 %v1727
    %v3233 = vunpack.c.h.b16 %v1727
    %v3234 = vunpack.c.l.b16 %v1728
    %v3235 = vunpack.c.h.b16 %v1728
    %v3236 = vunpack.c.l.b16 %v1729
    %v3237 = vunpack.c.h.b16 %v1729
    %v3238 = vunpack.c.l.b16 %v1730
    %v3239 = vunpack.c.h.b16 %v1730
    %v3240 = vunpack.c.l.b16 %v1731
    %v3241 = vunpack.c.h.b16 %v1731
    %v3242 = vunpack.c.l.b16 %v1732
    %v3243 = vunpack.c.h.b16 %v1732
    %v3244 = vunpack.c.l.b16 %v1733
    %v3245 = vunpack.c.h.b16 %v1733
    %v3246 = vunpack.c.l.b16 %v1734
    %v3247 = vunpack.c.h.b16 %v1734
    %v3248 = vunpack.c.l.b16 %v1735
    %v3249 = vunpack.c.h.b16 %v1735
    %v3250 = vunpack.c.l.b16 %v1736
    %v3251 = vunpack.c.h.b16 %v1736
    %v3252 = vunpack.c.l.b16 %v1737
    %v3253 = vunpack.c.h.b16 %v1737
    %v3254 = vunpack.c.l.b16 %v1738
    %v3255 = vunpack.c.h.b16 %v1738
    %v3256 = vunpack.c.l.b16 %v1739
    %v3257 = vunpack.c.h.b16 %v1739
    %v3258 = vunpack.c.l.b16 %v1740
    %v3259 = vunpack.c.h.b16 %v1740
    %v3260 = vunpack.c.l.b16 %v1741
    %v3261 = vunpack.c.h.b16 %v1741
    %v3262 = vunpack.c.l.b16 %v1742
    %v3263 = vunpack.c.h.b16 %v1742
    %v3264 = vunpack.c.l.b16 %v1743
    %v3265 = vunpack.c.h.b16 %v1743
    %v3266 = vunpack.c.l.b16 %v1744
    %v3267 = vunpack.c.h.b16 %v1744
    %v3268 = vunpack.c.l.b16 %v1745
    %v3269 = vunpack.c.h.b16 %v1745
    %v3270 = vunpack.c.l.b16 %v1746
    %v3271 = vunpack.c.h.b16 %v1746
    %v3272 = vunpack.c.l.b16 %v1747
    %v3273 = vunpack.c.h.b16 %v1747
    %v3274 = vunpack.c.l.b16 %v1748
    %v3275 = vunpack.c.h.b16 %v1748
    %v3276 = vunpack.c.l.b16 %v1749
    %v3277 = vunpack.c.h.b16 %v1749
    %v3278 = vunpack.c.l.b16 %v1750
    %v3279 = vunpack.c.h.b16 %v1750
    %v3280 = vunpack.c.l.b16 %v1751
    %v3281 = vunpack.c.h.b16 %v1751
    %v3282 = vunpack.c.l.b16 %v1752
    %v3283 = vunpack.c.h.b16 %v1752
    %v3284 = vunpack.c.l.b16 %v1753
    %v3285 = vunpack.c.h.b16 %v1753
    %v3286 = vunpack.c.l.b16 %v1754
    %v3287 = vunpack.c.h.b16 %v1754
    %v3288 = vunpack.c.l.b16 %v1755
    %v3289 = vunpack.c.h.b16 %v1755
    %v3290 = vunpack.c.l.b16 %v1756
    %v3291 = vunpack.c.h.b16 %v1756
    %v3292 = vunpack.c.l.b16 %v1757
    %v3293 = vunpack.c.h.b16 %v1757
    %v3294 = vunpack.c.l.b16 %v1758
    %v3295 = vunpack.c.h.b16 %v1758
    %v3296 = vunpack.c.l.b16 %v1759
    %v3297 = vunpack.c.h.b16 %v1759
    %v3298 = vunpack.c.l.b16 %v1760
    %v3299 = vunpack.c.h.b16 %v1760
    %v3300 = vunpack.c.l.b16 %v1761
    %v3301 = vunpack.c.h.b16 %v1761
    %v3302 = vunpack.c.l.b16 %v1762
    %v3303 = vunpack.c.h.b16 %v1762
    %v3304 = vunpack.c.l.b16 %v1763
    %v3305 = vunpack.c.h.b16 %v1763
    %v3306 = vunpack.c.l.b16 %v1764
    %v3307 = vunpack.c.h.b16 %v1764
    %v3308 = vunpack.c.l.b16 %v1765
    %v3309 = vunpack.c.h.b16 %v1765
    %v3310 = vunpack.c.l.b16 %v1766
    %v3311 = vunpack.c.h.b16 %v1766
    %v3312 = vunpack.c.l.b16 %v1767
    %v3313 = vunpack.c.h.b16 %v1767
    %v3314 = vunpack.c.l.b16 %v1768
    %v3315 = vunpack.c.h.b16 %v1768
    %v3316 = vunpack.c.l.b16 %v1769
    %v3317 = vunpack.c.h.b16 %v1769
    %v3318 = vunpack.c.l.b16 %v1770
    %v3319 = vunpack.c.h.b16 %v1770
    %v3320 = vunpack.c.l.b16 %v1771
    %v3321 = vunpack.c.h.b16 %v1771
    %v3322 = vunpack.c.l.b16 %v1772
    %v3323 = vunpack.c.h.b16 %v1772
    %v3324 = vunpack.c.l.b16 %v1773
    %v3325 = vunpack.c.h.b16 %v1773
    %v3326 = vunpack.c.l.b16 %v1774
    %v3327 = vunpack.c.h.b16 %v1774
    %v3328 = vunpack.c.l.b16 %v1775
    %v3329 = vunpack.c.h.b16 %v1775
    %v3330 = vunpack.c.l.b16 %v1776
    %v3331 = vunpack.c.h.b16 %v1776
    %v3332 = vunpack.c.l.b16 %v1777
    %v3333 = vunpack.c.h.b16 %v1777
    %v3334 = vunpack.c.l.b16 %v1778
    %v3335 = vunpack.c.h.b16 %v1778
    %v3336 = vunpack.c.l.b16 %v1779
    %v3337 = vunpack.c.h.b16 %v1779
    %v3338 = vunpack.c.l.b16 %v1780
    %v3339 = vunpack.c.h.b16 %v1780
    %v3340 = vunpack.c.l.b16 %v1781
    %v3341 = vunpack.c.h.b16 %v1781
    %v3342 = vunpack.c.l.b16 %v1782
    %v3343 = vunpack.c.h.b16 %v1782
    %v3344 = vunpack.c.l.b16 %v1783
    %v3345 = vunpack.c.h.b16 %v1783
    %v3346 = vunpack.c.l.b16 %v1784
    %v3347 = vunpack.c.h.b16 %v1784
    %v3348 = vunpack.c.l.b16 %v1785
    %v3349 = vunpack.c.h.b16 %v1785
    %v3350 = vunpack.c.l.b16 %v1786
    %v3351 = vunpack.c.h.b16 %v1786
    %v3352 = vunpack.c.l.b16 %v1787
    %v3353 = vunpack.c.h.b16 %v1787
    %v3354 = vunpack.c.l.b16 %v1788
    %v3355 = vunpack.c.h.b16 %v1788
    %v3356 = vunpack.c.l.b16 %v1789
    %v3357 = vunpack.c.h.b16 %v1789
    %v3358 = vunpack.c.l.b16 %v1790
    %v3359 = vunpack.c.h.b16 %v1790
    %v3360 = vunpack.c.l.b16 %v1791
    %v3361 = vunpack.c.h.b16 %v1791
    %v3362 = vunpack.c.l.b16 %v1792
    %v3363 = vunpack.c.h.b16 %v1792
    %v3364 = vunpack.c.l.b16 %v1793
    %v3365 = vunpack.c.h.b16 %v1793
    %v3366 = vpack.c.b16 %v2358, %v2342
    %v3367 = vpack.c.b16 %v2359, %v2343
    %v3368 = vpack.c.b16 %v2360, %v2344
    %v3369 = vpack.c.b16 %v2361, %v2345
    %v3370 = vpack.c.b16 %v2362, %v2346
    %v3371 = vpack.c.b16 %v2363, %v2347
    %v3372 = vpack.c.b16 %v2364, %v2348
    %v3373 = vpack.c.b16 %v2365, %v2349
    %v3374 = vpack.c.b16 %v2366, %v2350
    %v3375 = vpack.c.b16 %v2367, %v2351
    %v3376 = vpack.c.b16 %v2368, %v2352
    %v3377 = vpack.c.b16 %v2369, %v2353
    %v3378 = vpack.c.b16 %v2370, %v2354
    %v3379 = vpack.c.b16 %v2371, %v2355
    %v3380 = vpack.c.b16 %v2372, %v2356
    %v3381 = vpack.c.b16 %v2373, %v2357
    %v3382 = vpack.c.b16 %v2390, %v2374
    %v3383 = vpack.c.b16 %v2391, %v2375
    %v3384 = vpack.c.b16 %v2392, %v2376
    %v3385 = vpack.c.b16 %v2393, %v2377
    %v3386 = vpack.c.b16 %v2394, %v2378
    %v3387 = vpack.c.b16 %v2395, %v2379
    %v3388 = vpack.c.b16 %v2396, %v2380
    %v3389 = vpack.c.b16 %v2397, %v2381
    %v3390 = vpack.c.b16 %v2398, %v2382
    %v3391 = vpack.c.b16 %v2399, %v2383
    %v3392 = vpack.c.b16 %v2400, %v2384
    %v3393 = vpack.c.b16 %v2401, %v2385
    %v3394 = vpack.c.b16 %v2402, %v2386
    %v3395 = vpack.c.b16 %v2403, %v2387
    %v3396 = vpack.c.b16 %v2404, %v2388
    %v3397 = vpack.c.b16 %v2405, %v2389
    %v3398 = vpack.c.b16 %v2422, %v2406
    %v3399 = vpack.c.b16 %v2423, %v2407
    %v3400 = vpack.c.b16 %v2424, %v2408
    %v3401 = vpack.c.b16 %v2425, %v2409
    %v3402 = vpack.c.b16 %v2426, %v2410
    %v3403 = vpack.c.b16 %v2427, %v2411
    %v3404 = vpack.c.b16 %v2428, %v2412
    %v3405 = vpack.c.b16 %v2429, %v2413
    %v3406 = vpack.c.b16 %v2430, %v2414
    %v3407 = vpack.c.b16 %v2431, %v2415
    %v3408 = vpack.c.b16 %v2432, %v2416
    %v3409 = vpack.c.b16 %v2433, %v2417
    %v3410 = vpack.c.b16 %v2434, %v2418
    %v3411 = vpack.c.b16 %v2435, %v2419
    %v3412 = vpack.c.b16 %v2436, %v2420
    %v3413 = vpack.c.b16 %v2437, %v2421
    %v3414 = vpack.c.b16 %v2454, %v2438
    %v3415 = vpack.c.b16 %v2455, %v2439
    %v3416 = vpack.c.b16 %v2456, %v2440
    %v3417 = vpack.c.b16 %v2457, %v2441
    %v3418 = vpack.c.b16 %v2458, %v2442
    %v3419 = vpack.c.b16 %v2459, %v2443
    %v3420 = vpack.c.b16 %v2460, %v2444
    %v3421 = vpack.c.b16 %v2461, %v2445
    %v3422 = vpack.c.b16 %v2462, %v2446
    %v3423 = vpack.c.b16 %v2463, %v2447
    %v3424 = vpack.c.b16 %v2464, %v2448
    %v3425 = vpack.c.b16 %v2465, %v2449
    %v3426 = vpack.c.b16 %v2466, %v2450
    %v3427 = vpack.c.b16 %v2467, %v2451
    %v3428 = vpack.c.b16 %v2468, %v2452
    %v3429 = vpack.c.b16 %v2469, %v2453
    %v3430 = vpack.c.b16 %v2486, %v2470
    %v3431 = vpack.c.b16 %v2487, %v2471
    %v3432 = vpack.c.b16 %v2488, %v2472
    %v3433 = vpack.c.b16 %v2489, %v2473
    %v3434 = vpack.c.b16 %v2490, %v2474
    %v3435 = vpack.c.b16 %v2491, %v2475
    %v3436 = vpack.c.b16 %v2492, %v2476
    %v3437 = vpack.c.b16 %v2493, %v2477
    %v3438 = vpack.c.b16 %v2494, %v2478
    %v3439 = vpack.c.b16 %v2495, %v2479
    %v3440 = vpack.c.b16 %v2496, %v2480
    %v3441 = vpack.c.b16 %v2497, %v2481
    %v3442 = vpack.c.b16 %v2498, %v2482
    %v3443 = vpack.c.b16 %v2499, %v2483
    %v3444 = vpack.c.b16 %v2500, %v2484
    %v3445 = vpack.c.b16 %v2501, %v2485
    %v3446 = vpack.c.b16 %v2518, %v2502
    %v3447 = vpack.c.b16 %v2519, %v2503
    %v3448 = vpack.c.b16 %v2520, %v2504
    %v3449 = vpack.c.b16 %v2521, %v2505
    %v3450 = vpack.c.b16 %v2522, %v2506
    %v3451 = vpack.c.b16 %v2523, %v2507
    %v3452 = vpack.c.b16 %v2524, %v2508
    %v3453 = vpack.c.b16 %v2525, %v2509
    %v3454 = vpack.c.b16 %v2526, %v2510
    %v3455 = vpack.c.b16 %v2527, %v2511
    %v3456 = vpack.c.b16 %v2528, %v2512
    %v3457 = vpack.c.b16 %v2529, %v2513
    %v3458 = vpack.c.b16 %v2530, %v2514
    %v3459 = vpack.c.b16 %v2531, %v2515
    %v3460 = vpack.c.b16 %v2532, %v2516
    %v3461 = vpack.c.b16 %v2533, %v2517
    %v3462 = vpack.c.b16 %v2550, %v2534
    %v3463 = vpack.c.b16 %v2551, %v2535
    %v3464 = vpack.c.b16 %v2552, %v2536
    %v3465 = vpack.c.b16 %v2553, %v2537
    %v3466 = vpack.c.b16 %v2554, %v2538
    %v3467 = vpack.c.b16 %v2555, %v2539
    %v3468 = vpack.c.b16 %v2556, %v2540
    %v3469 = vpack.c.b16 %v2557, %v2541
    %v3470 = vpack.c.b16 %v2558, %v2542
    %v3471 = vpack.c.b16 %v2559, %v2543
    %v3472 = vpack.c.b16 %v2560, %v2544
    %v3473 = vpack.c.b16 %v2561, %v2545
    %v3474 = vpack.c.b16 %v2562, %v2546
    %v3475 = vpack.c.b16 %v2563, %v2547
    %v3476 = vpack.c.b16 %v2564, %v2548
    %v3477 = vpack.c.b16 %v2565, %v2549
    %v3478 = vpack.c.b16 %v2582, %v2566
    %v3479 = vpack.c.b16 %v2583, %v2567
    %v3480 = vpack.c.b16 %v2584, %v2568
    %v3481 = vpack.c.b16 %v2585, %v2569
    %v3482 = vpack.c.b16 %v2586, %v2570
    %v3483 = vpack.c.b16 %v2587, %v2571
    %v3484 = vpack.c.b16 %v2588, %v2572
    %v3485 = vpack.c.b16 %v2589, %v2573
    %v3486 = vpack.c.b16 %v2590, %v2574
    %v3487 = vpack.c.b16 %v2591, %v2575
    %v3488 = vpack.c.b16 %v2592, %v2576
    %v3489 = vpack.c.b16 %v2593, %v2577
    %v3490 = vpack.c.b16 %v2594, %v2578
    %v3491 = vpack.c.b16 %v2595, %v2579
    %v3492 = vpack.c.b16 %v2596, %v2580
    %v3493 = vpack.c.b16 %v2597, %v2581
    %v3494 = vpack.c.b16 %v2614, %v2598
    %v3495 = vpack.c.b16 %v2615, %v2599
    %v3496 = vpack.c.b16 %v2616, %v2600
    %v3497 = vpack.c.b16 %v2617, %v2601
    %v3498 = vpack.c.b16 %v2618, %v2602
    %v3499 = vpack.c.b16 %v2619, %v2603
    %v3500 = vpack.c.b16 %v2620, %v2604
    %v3501 = vpack.c.b16 %v2621, %v2605
    %v3502 = vpack.c.b16 %v2622, %v2606
    %v3503 = vpack.c.b16 %v2623, %v2607
    %v3504 = vpack.c.b16 %v2624, %v2608
    %v3505 = vpack.c.b16 %v2625, %v2609
    %v3506 = vpack.c.b16 %v2626, %v2610
    %v3507 = vpack.c.b16 %v2627, %v2611
    %v3508 = vpack.c.b16 %v2628, %v2612
    %v3509 = vpack.c.b16 %v2629, %v2613
    %v3510 = vpack.c.b16 %v2646, %v2630
    %v3511 = vpack.c.b16 %v2647, %v2631
    %v3512 = vpack.c.b16 %v2648, %v2632
    %v3513 = vpack.c.b16 %v2649, %v2633
    %v3514 = vpack.c.b16 %v2650, %v2634
    %v3515 = vpack.c.b16 %v2651, %v2635
    %v3516 = vpack.c.b16 %v2652, %v2636
    %v3517 = vpack.c.b16 %v2653, %v2637
    %v3518 = vpack.c.b16 %v2654, %v2638
    %v3519 = vpack.c.b16 %v2655, %v2639
    %v3520 = vpack.c.b16 %v2656, %v2640
    %v3521 = vpack.c.b16 %v2657, %v2641
    %v3522 = vpack.c.b16 %v2658, %v2642
    %v3523 = vpack.c.b16 %v2659, %v2643
    %v3524 = vpack.c.b16 %v2660, %v2644
    %v3525 = vpack.c.b16 %v2661, %v2645
    %v3526 = vpack.c.b16 %v2678, %v2662
    %v3527 = vpack.c.b16 %v2679, %v2663
    %v3528 = vpack.c.b16 %v2680, %v2664
    %v3529 = vpack.c.b16 %v2681, %v2665
    %v3530 = vpack.c.b16 %v2682, %v2666
    %v3531 = vpack.c.b16 %v2683, %v2667
    %v3532 = vpack.c.b16 %v2684, %v2668
    %v3533 = vpack.c.b16 %v2685, %v2669
    %v3534 = vpack.c.b16 %v2686, %v2670
    %v3535 = vpack.c.b16 %v2687, %v2671
    %v3536 = vpack.c.b16 %v2688, %v2672
    %v3537 = vpack.c.b16 %v2689, %v2673
    %v3538 = vpack.c.b16 %v2690, %v2674
    %v3539 = vpack.c.b16 %v2691, %v2675
    %v3540 = vpack.c.b16 %v2692, %v2676
    %v3541 = vpack.c.b16 %v2693, %v2677
    %v3542 = vpack.c.b16 %v2710, %v2694
    %v3543 = vpack.c.b16 %v2711, %v2695
    %v3544 = vpack.c.b16 %v2712, %v2696
    %v3545 = vpack.c.b16 %v2713, %v2697
    %v3546 = vpack.c.b16 %v2714, %v2698
    %v3547 = vpack.c.b16 %v2715, %v2699
    %v3548 = vpack.c.b16 %v2716, %v2700
    %v3549 = vpack.c.b16 %v2717, %v2701
    %v3550 = vpack.c.b16 %v2718, %v2702
    %v3551 = vpack.c.b16 %v2719, %v2703
    %v3552 = vpack.c.b16 %v2720, %v2704
    %v3553 = vpack.c.b16 %v2721, %v2705
    %v3554 = vpack.c.b16 %v2722, %v2706
    %v3555 = vpack.c.b16 %v2723, %v2707
    %v3556 = vpack.c.b16 %v2724, %v2708
    %v3557 = vpack.c.b16 %v2725, %v2709
    %v3558 = vpack.c.b16 %v2742, %v2726
    %v3559 = vpack.c.b16 %v2743, %v2727
    %v3560 = vpack.c.b16 %v2744, %v2728
    %v3561 = vpack.c.b16 %v2745, %v2729
    %v3562 = vpack.c.b16 %v2746, %v2730
    %v3563 = vpack.c.b16 %v2747, %v2731
    %v3564 = vpack.c.b16 %v2748, %v2732
    %v3565 = vpack.c.b16 %v2749, %v2733
    %v3566 = vpack.c.b16 %v2750, %v2734
    %v3567 = vpack.c.b16 %v2751, %v2735
    %v3568 = vpack.c.b16 %v2752, %v2736
    %v3569 = vpack.c.b16 %v2753, %v2737
    %v3570 = vpack.c.b16 %v2754, %v2738
    %v3571 = vpack.c.b16 %v2755, %v2739
    %v3572 = vpack.c.b16 %v2756, %v2740
    %v3573 = vpack.c.b16 %v2757, %v2741
    %v3574 = vpack.c.b16 %v2774, %v2758
    %v3575 = vpack.c.b16 %v2775, %v2759
    %v3576 = vpack.c.b16 %v2776, %v2760
    %v3577 = vpack.c.b16 %v2777, %v2761
    %v3578 = vpack.c.b16 %v2778, %v2762
    %v3579 = vpack.c.b16 %v2779, %v2763
    %v3580 = vpack.c.b16 %v2780, %v2764
    %v3581 = vpack.c.b16 %v2781, %v2765
    %v3582 = vpack.c.b16 %v2782, %v2766
    %v3583 = vpack.c.b16 %v2783, %v2767
    %v3584 = vpack.c.b16 %v2784, %v2768
    %v3585 = vpack.c.b16 %v2785, %v2769
    %v3586 = vpack.c.b16 %v2786, %v2770
    %v3587 = vpack.c.b16 %v2787, %v2771
    %v3588 = vpack.c.b16 %v2788, %v2772
    %v3589 = vpack.c.b16 %v2789, %v2773
    %v3590 = vpack.c.b16 %v2806, %v2790
    %v3591 = vpack.c.b16 %v2807, %v2791
    %v3592 = vpack.c.b16 %v2808, %v2792
    %v3593 = vpack.c.b16 %v2809, %v2793
    %v3594 = vpack.c.b16 %v2810, %v2794
    %v3595 = vpack.c.b16 %v2811, %v2795
    %v3596 = vpack.c.b16 %v2812, %v2796
    %v3597 = vpack.c.b16 %v2813, %v2797
    %v3598 = vpack.c.b16 %v2814, %v2798
    %v3599 = vpack.c.b16 %v2815, %v2799
    %v3600 = vpack.c.b16 %v2816, %v2800
    %v3601 = vpack.c.b16 %v2817, %v2801
    %v3602 = vpack.c.b16 %v2818, %v2802
    %v3603 = vpack.c.b16 %v2819, %v2803
    %v3604 = vpack.c.b16 %v2820, %v2804
    %v3605 = vpack.c.b16 %v2821, %v2805
    %v3606 = vpack.c.b16 %v2838, %v2822
    %v3607 = vpack.c.b16 %v2839, %v2823
    %v3608 = vpack.c.b16 %v2840, %v2824
    %v3609 = vpack.c.b16 %v2841, %v2825
    %v3610 = vpack.c.b16 %v2842, %v2826
    %v3611 = vpack.c.b16 %v2843, %v2827
    %v3612 = vpack.c.b16 %v2844, %v2828
    %v3613 = vpack.c.b16 %v2845, %v2829
    %v3614 = vpack.c.b16 %v2846, %v2830
    %v3615 = vpack.c.b16 %v2847, %v2831
    %v3616 = vpack.c.b16 %v2848, %v2832
    %v3617 = vpack.c.b16 %v2849, %v2833
    %v3618 = vpack.c.b16 %v2850, %v2834
    %v3619 = vpack.c.b16 %v2851, %v2835
    %v3620 = vpack.c.b16 %v2852, %v2836
    %v3621 = vpack.c.b16 %v2853, %v2837
    %v3622 = vpack.c.b16 %v2870, %v2854
    %v3623 = vpack.c.b16 %v2871, %v2855
    %v3624 = vpack.c.b16 %v2872, %v2856
    %v3625 = vpack.c.b16 %v2873, %v2857
    %v3626 = vpack.c.b16 %v2874, %v2858
    %v3627 = vpack.c.b16 %v2875, %v2859
    %v3628 = vpack.c.b16 %v2876, %v2860
    %v3629 = vpack.c.b16 %v2877, %v2861
    %v3630 = vpack.c.b16 %v2878, %v2862
    %v3631 = vpack.c.b16 %v2879, %v2863
    %v3632 = vpack.c.b16 %v2880, %v2864
    %v3633 = vpack.c.b16 %v2881, %v2865
    %v3634 = vpack.c.b16 %v2882, %v2866
    %v3635 = vpack.c.b16 %v2883, %v2867
    %v3636 = vpack.c.b16 %v2884, %v2868
    %v3637 = vpack.c.b16 %v2885, %v2869
    %v3638 = vpack.c.b16 %v2902, %v2886
    %v3639 = vpack.c.b16 %v2903, %v2887
    %v3640 = vpack.c.b16 %v2904, %v2888
    %v3641 = vpack.c.b16 %v2905, %v2889
    %v3642 = vpack.c.b16 %v2906, %v2890
    %v3643 = vpack.c.b16 %v2907, %v2891
    %v3644 = vpack.c.b16 %v2908, %v2892
    %v3645 = vpack.c.b16 %v2909, %v2893
    %v3646 = vpack.c.b16 %v2910, %v2894
    %v3647 = vpack.c.b16 %v2911, %v2895
    %v3648 = vpack.c.b16 %v2912, %v2896
    %v3649 = vpack.c.b16 %v2913, %v2897
    %v3650 = vpack.c.b16 %v2914, %v2898
    %v3651 = vpack.c.b16 %v2915, %v2899
    %v3652 = vpack.c.b16 %v2916, %v2900
    %v3653 = vpack.c.b16 %v2917, %v2901
    %v3654 = vpack.c.b16 %v2934, %v2918
    %v3655 = vpack.c.b16 %v2935, %v2919
    %v3656 = vpack.c.b16 %v2936, %v2920
    %v3657 = vpack.c.b16 %v2937, %v2921
    %v3658 = vpack.c.b16 %v2938, %v2922
    %v3659 = vpack.c.b16 %v2939, %v2923
    %v3660 = vpack.c.b16 %v2940, %v2924
    %v3661 = vpack.c.b16 %v2941, %v2925
    %v3662 = vpack.c.b16 %v2942, %v2926
    %v3663 = vpack.c.b16 %v2943, %v2927
    %v3664 = vpack.c.b16 %v2944, %v2928
    %v3665 = vpack.c.b16 %v2945, %v2929
    %v3666 = vpack.c.b16 %v2946, %v2930
    %v3667 = vpack.c.b16 %v2947, %v2931
    %v3668 = vpack.c.b16 %v2948, %v2932
    %v3669 = vpack.c.b16 %v2949, %v2933
    %v3670 = vpack.c.b16 %v2966, %v2950
    %v3671 = vpack.c.b16 %v2967, %v2951
    %v3672 = vpack.c.b16 %v2968, %v2952
    %v3673 = vpack.c.b16 %v2969, %v2953
    %v3674 = vpack.c.b16 %v2970, %v2954
    %v3675 = vpack.c.b16 %v2971, %v2955
    %v3676 = vpack.c.b16 %v2972, %v2956
    %v3677 = vpack.c.b16 %v2973, %v2957
    %v3678 = vpack.c.b16 %v2974, %v2958
    %v3679 = vpack.c.b16 %v2975, %v2959
    %v3680 = vpack.c.b16 %v2976, %v2960
    %v3681 = vpack.c.b16 %v2977, %v2961
    %v3682 = vpack.c.b16 %v2978, %v2962
    %v3683 = vpack.c.b16 %v2979, %v2963
    %v3684 = vpack.c.b16 %v2980, %v2964
    %v3685 = vpack.c.b16 %v2981, %v2965
    %v3686 = vpack.c.b16 %v2998, %v2982
    %v3687 = vpack.c.b16 %v2999, %v2983
    %v3688 = vpack.c.b16 %v3000, %v2984
    %v3689 = vpack.c.b16 %v3001, %v2985
    %v3690 = vpack.c.b16 %v3002, %v2986
    %v3691 = vpack.c.b16 %v3003, %v2987
    %v3692 = vpack.c.b16 %v3004, %v2988
    %v3693 = vpack.c.b16 %v3005, %v2989
    %v3694 = vpack.c.b16 %v3006, %v2990
    %v3695 = vpack.c.b16 %v3007, %v2991
    %v3696 = vpack.c.b16 %v3008, %v2992
    %v3697 = vpack.c.b16 %v3009, %v2993
    %v3698 = vpack.c.b16 %v3010, %v2994
    %v3699 = vpack.c.b16 %v3011, %v2995
    %v3700 = vpack.c.b16 %v3012, %v2996
    %v3701 = vpack.c.b16 %v3013, %v2997
    %v3702 = vpack.c.b16 %v3030, %v3014
    %v3703 = vpack.c.b16 %v3031, %v3015
    %v3704 = vpack.c.b16 %v3032, %v3016
    %v3705 = vpack.c.b16 %v3033, %v3017
    %v3706 = vpack.c.b16 %v3034, %v3018
    %v3707 = vpack.c.b16 %v3035, %v3019
    %v3708 = vpack.c.b16 %v3036, %v3020
    %v3709 = vpack.c.b16 %v3037, %v3021
    %v3710 = vpack.c.b16 %v3038, %v3022
    %v3711 = vpack.c.b16 %v3039, %v3023
    %v3712 = vpack.c.b16 %v3040, %v3024
    %v3713 = vpack.c.b16 %v3041, %v3025
    %v3714 = vpack.c.b16 %v3042, %v3026
    %v3715 = vpack.c.b16 %v3043, %v3027
    %v3716 = vpack.c.b16 %v3044, %v3028
    %v3717 = vpack.c.b16 %v3045, %v3029
    %v3718 = vpack.c.b16 %v3062, %v3046
    %v3719 = vpack.c.b16 %v3063, %v3047
    %v3720 = vpack.c.b16 %v3064, %v3048
    %v3721 = vpack.c.b16 %v3065, %v3049
    %v3722 = vpack.c.b16 %v3066, %v3050
    %v3723 = vpack.c.b16 %v3067, %v3051
    %v3724 = vpack.c.b16 %v3068, %v3052
    %v3725 = vpack.c.b16 %v3069, %v3053
    %v3726 = vpack.c.b16 %v3070, %v3054
    %v3727 = vpack.c.b16 %v3071, %v3055
    %v3728 = vpack.c.b16 %v3072, %v3056
    %v3729 = vpack.c.b16 %v3073, %v3057
    %v3730 = vpack.c.b16 %v3074, %v3058
    %v3731 = vpack.c.b16 %v3075, %v3059
    %v3732 = vpack.c.b16 %v3076, %v3060
    %v3733 = vpack.c.b16 %v3077, %v3061
    %v3734 = vpack.c.b16 %v3094, %v3078
    %v3735 = vpack.c.b16 %v3095, %v3079
    %v3736 = vpack.c.b16 %v3096, %v3080
    %v3737 = vpack.c.b16 %v3097, %v3081
    %v3738 = vpack.c.b16 %v3098, %v3082
    %v3739 = vpack.c.b16 %v3099, %v3083
    %v3740 = vpack.c.b16 %v3100, %v3084
    %v3741 = vpack.c.b16 %v3101, %v3085
    %v3742 = vpack.c.b16 %v3102, %v3086
    %v3743 = vpack.c.b16 %v3103, %v3087
    %v3744 = vpack.c.b16 %v3104, %v3088
    %v3745 = vpack.c.b16 %v3105, %v3089
    %v3746 = vpack.c.b16 %v3106, %v3090
    %v3747 = vpack.c.b16 %v3107, %v3091
    %v3748 = vpack.c.b16 %v3108, %v3092
    %v3749 = vpack.c.b16 %v3109, %v3093
    %v3750 = vpack.c.b16 %v3126, %v3110
    %v3751 = vpack.c.b16 %v3127, %v3111
    %v3752 = vpack.c.b16 %v3128, %v3112
    %v3753 = vpack.c.b16 %v3129, %v3113
    %v3754 = vpack.c.b16 %v3130, %v3114
    %v3755 = vpack.c.b16 %v3131, %v3115
    %v3756 = vpack.c.b16 %v3132, %v3116
    %v3757 = vpack.c.b16 %v3133, %v3117
    %v3758 = vpack.c.b16 %v3134, %v3118
    %v3759 = vpack.c.b16 %v3135, %v3119
    %v3760 = vpack.c.b16 %v3136, %v3120
    %v3761 = vpack.c.b16 %v3137, %v3121
    %v3762 = vpack.c.b16 %v3138, %v3122
    %v3763 = vpack.c.b16 %v3139, %v3123
    %v3764 = vpack.c.b16 %v3140, %v3124
    %v3765 = vpack.c.b16 %v3141, %v3125
    %v3766 = vpack.c.b16 %v3158, %v3142
    %v3767 = vpack.c.b16 %v3159, %v3143
    %v3768 = vpack.c.b16 %v3160, %v3144
    %v3769 = vpack.c.b16 %v3161, %v3145
    %v3770 = vpack.c.b16 %v3162, %v3146
    %v3771 = vpack.c.b16 %v3163, %v3147
    %v3772 = vpack.c.b16 %v3164, %v3148
    %v3773 = vpack.c.b16 %v3165, %v3149
    %v3774 = vpack.c.b16 %v3166, %v3150
    %v3775 = vpack.c.b16 %v3167, %v3151
    %v3776 = vpack.c.b16 %v3168, %v3152
    %v3777 = vpack.c.b16 %v3169, %v3153
    %v3778 = vpack.c.b16 %v3170, %v3154
    %v3779 = vpack.c.b16 %v3171, %v3155
    %v3780 = vpack.c.b16 %v3172, %v3156
    %v3781 = vpack.c.b16 %v3173, %v3157
    %v3782 = vpack.c.b16 %v3190, %v3174
    %v3783 = vpack.c.b16 %v3191, %v3175
    %v3784 = vpack.c.b16 %v3192, %v3176
    %v3785 = vpack.c.b16 %v3193, %v3177
    %v3786 = vpack.c.b16 %v3194, %v3178
    %v3787 = vpack.c.b16 %v3195, %v3179
    %v3788 = vpack.c.b16 %v3196, %v3180
    %v3789 = vpack.c.b16 %v3197, %v3181
    %v3790 = vpack.c.b16 %v3198, %v3182
    %v3791 = vpack.c.b16 %v3199, %v3183
    %v3792 = vpack.c.b16 %v3200, %v3184
    %v3793 = vpack.c.b16 %v3201, %v3185
    %v3794 = vpack.c.b16 %v3202, %v3186
    %v3795 = vpack.c.b16 %v3203, %v3187
    %v3796 = vpack.c.b16 %v3204, %v3188
    %v3797 = vpack.c.b16 %v3205, %v3189
    %v3798 = vpack.c.b16 %v3222, %v3206
    %v3799 = vpack.c.b16 %v3223, %v3207
    %v3800 = vpack.c.b16 %v3224, %v3208
    %v3801 = vpack.c.b16 %v3225, %v3209
    %v3802 = vpack.c.b16 %v3226, %v3210
    %v3803 = vpack.c.b16 %v3227, %v3211
    %v3804 = vpack.c.b16 %v3228, %v3212
    %v3805 = vpack.c.b16 %v3229, %v3213
    %v3806 = vpack.c.b16 %v3230, %v3214
    %v3807 = vpack.c.b16 %v3231, %v3215
    %v3808 = vpack.c.b16 %v3232, %v3216
    %v3809 = vpack.c.b16 %v3233, %v3217
    %v3810 = vpack.c.b16 %v3234, %v3218
    %v3811 = vpack.c.b16 %v3235, %v3219
    %v3812 = vpack.c.b16 %v3236, %v3220
    %v3813 = vpack.c.b16 %v3237, %v3221
    %v3814 = vpack.c.b16 %v3254, %v3238
    %v3815 = vpack.c.b16 %v3255, %v3239
    %v3816 = vpack.c.b16 %v3256, %v3240
    %v3817 = vpack.c.b16 %v3257, %v3241
    %v3818 = vpack.c.b16 %v3258, %v3242
    %v3819 = vpack.c.b16 %v3259, %v3243
    %v3820 = vpack.c.b16 %v3260, %v3244
    %v3821 = vpack.c.b16 %v3261, %v3245
    %v3822 = vpack.c.b16 %v3262, %v3246
    %v3823 = vpack.c.b16 %v3263, %v3247
    %v3824 = vpack.c.b16 %v3264, %v3248
    %v3825 = vpack.c.b16 %v3265, %v3249
    %v3826 = vpack.c.b16 %v3266, %v3250
    %v3827 = vpack.c.b16 %v3267, %v3251
    %v3828 = vpack.c.b16 %v3268, %v3252
    %v3829 = vpack.c.b16 %v3269, %v3253
    %v3830 = vpack.c.b16 %v3286, %v3270
    %v3831 = vpack.c.b16 %v3287, %v3271
    %v3832 = vpack.c.b16 %v3288, %v3272
    %v3833 = vpack.c.b16 %v3289, %v3273
    %v3834 = vpack.c.b16 %v3290, %v3274
    %v3835 = vpack.c.b16 %v3291, %v3275
    %v3836 = vpack.c.b16 %v3292, %v3276
    %v3837 = vpack.c.b16 %v3293, %v3277
    %v3838 = vpack.c.b16 %v3294, %v3278
    %v3839 = vpack.c.b16 %v3295, %v3279
    %v3840 = vpack.c.b16 %v3296, %v3280
    %v3841 = vpack.c.b16 %v3297, %v3281
    %v3842 = vpack.c.b16 %v3298, %v3282
    %v3843 = vpack.c.b16 %v3299, %v3283
    %v3844 = vpack.c.b16 %v3300, %v3284
    %v3845 = vpack.c.b16 %v3301, %v3285
    %v3846 = vpack.c.b16 %v3318, %v3302
    %v3847 = vpack.c.b16 %v3319, %v3303
    %v3848 = vpack.c.b16 %v3320, %v3304
    %v3849 = vpack.c.b16 %v3321, %v3305
    %v3850 = vpack.c.b16 %v3322, %v3306
    %v3851 = vpack.c.b16 %v3323, %v3307
    %v3852 = vpack.c.b16 %v3324, %v3308
    %v3853 = vpack.c.b16 %v3325, %v3309
    %v3854 = vpack.c.b16 %v3326, %v3310
    %v3855 = vpack.c.b16 %v3327, %v3311
    %v3856 = vpack.c.b16 %v3328, %v3312
    %v3857 = vpack.c.b16 %v3329, %v3313
    %v3858 = vpack.c.b16 %v3330, %v3314
    %v3859 = vpack.c.b16 %v3331, %v3315
    %v3860 = vpack.c.b16 %v3332, %v3316
    %v3861 = vpack.c.b16 %v3333, %v3317
    %v3862 = vpack.c.b16 %v3350, %v3334
    %v3863 = vpack.c.b16 %v3351, %v3335
    %v3864 = vpack.c.b16 %v3352, %v3336
    %v3865 = vpack.c.b16 %v3353, %v3337
    %v3866 = vpack.c.b16 %v3354, %v3338
    %v3867 = vpack.c.b16 %v3355, %v3339
    %v3868 = vpack.c.b16 %v3356, %v3340
    %v3869 = vpack.c.b16 %v3357, %v3341
    %v3870 = vpack.c.b16 %v3358, %v3342
    %v3871 = vpack.c.b16 %v3359, %v3343
    %v3872 = vpack.c.b16 %v3360, %v3344
    %v3873 = vpack.c.b16 %v3361, %v3345
    %v3874 = vpack.c.b16 %v3362, %v3346
    %v3875 = vpack.c.b16 %v3363, %v3347
    %v3876 = vpack.c.b16 %v3364, %v3348
    %v3877 = vpack.c.b16 %v3365, %v3349
    %4390 = vmatpush.bf16.msra.mxu0 %v3478
    %4391 = vmatpush.bf16.msra.mxu0 %v3462
    %4392 = vmatpush.bf16.msra.mxu0 %v3446
    %4393 = vmatpush.bf16.msra.mxu0 %v3430
    %4394 = vmatpush.bf16.msra.mxu0 %v3414
    %4395 = vmatpush.bf16.msra.mxu0 %v3398
    %4396 = vmatpush.bf16.msra.mxu0 %v3382
    %4397 = vmatpush.bf16.msra.mxu0 %v3366
    %4398 = vmatmul.bf16.gmra.mxu0 %v1278
    %v4399 = vpop.f32.mrf.mxu0
    %v4400 = vadd.f32 %v1798, %v4399
    %v4401 = vpop.f32.mrf.mxu0
    %4402 = vdwg.mxu0
    %4403 = vmatpush.bf16.msra.mxu0 %v3606
    %4404 = vmatpush.bf16.msra.mxu0 %v3590
    %4405 = vmatpush.bf16.msra.mxu0 %v3574
    %4406 = vmatpush.bf16.msra.mxu0 %v3558
    %4407 = vmatpush.bf16.msra.mxu0 %v3542
    %4408 = vmatpush.bf16.msra.mxu0 %v3526
    %4409 = vmatpush.bf16.msra.mxu0 %v3510
    %4410 = vmatpush.bf16.msra.mxu0 %v3494
    %4411 = vmatmul.bf16.gmra.mxu0 %v1279
    %v4412 = vpop.f32.mrf.mxu0
    %v4413 = vadd.f32 %v4400, %v4412
    %v4414 = vpop.f32.mrf.mxu0
    %4415 = vdwg.mxu0
    %4416 = vmatpush.bf16.msra.mxu0 %v3734
    %4417 = vmatpush.bf16.msra.mxu0 %v3718
    %4418 = vmatpush.bf16.msra.mxu0 %v3702
    %4419 = vmatpush.bf16.msra.mxu0 %v3686
    %4420 = vmatpush.bf16.msra.mxu0 %v3670
    %4421 = vmatpush.bf16.msra.mxu0 %v3654
    %4422 = vmatpush.bf16.msra.mxu0 %v3638
    %4423 = vmatpush.bf16.msra.mxu0 %v3622
    %4424 = vmatmul.bf16.gmra.mxu0 %v1280
    %v4425 = vpop.f32.mrf.mxu0
    %v4426 = vadd.f32 %v4413, %v4425
    %v4427 = vpop.f32.mrf.mxu0
    %4428 = vdwg.mxu0
    %4429 = vmatpush.bf16.msra.mxu0 %v3862
    %4430 = vmatpush.bf16.msra.mxu0 %v3846
    %4431 = vmatpush.bf16.msra.mxu0 %v3830
    %4432 = vmatpush.bf16.msra.mxu0 %v3814
    %4433 = vmatpush.bf16.msra.mxu0 %v3798
    %4434 = vmatpush.bf16.msra.mxu0 %v3782
    %4435 = vmatpush.bf16.msra.mxu0 %v3766
    %4436 = vmatpush.bf16.msra.mxu0 %v3750
    %4437 = vmatmul.bf16.gmra.mxu0 %v1281
    %v4438 = vpop.f32.mrf.mxu0
    %v4439 = vadd.f32 %v4426, %v4438
    %v4440 = vpop.f32.mrf.mxu0
    %4441 = vdwg.mxu0
    %4442 = vmatpush.bf16.msra.mxu0 %v3479
    %4443 = vmatpush.bf16.msra.mxu0 %v3463
    %4444 = vmatpush.bf16.msra.mxu0 %v3447
    %4445 = vmatpush.bf16.msra.mxu0 %v3431
    %4446 = vmatpush.bf16.msra.mxu0 %v3415
    %4447 = vmatpush.bf16.msra.mxu0 %v3399
    %4448 = vmatpush.bf16.msra.mxu0 %v3383
    %4449 = vmatpush.bf16.msra.mxu0 %v3367
    %4450 = vmatmul.bf16.gmra.mxu0 %v1278
    %v4451 = vpop.f32.mrf.mxu0
    %v4452 = vadd.f32 %v1799, %v4451
    %v4453 = vpop.f32.mrf.mxu0
    %4454 = vdwg.mxu0
    %4455 = vmatpush.bf16.msra.mxu0 %v3607
    %4456 = vmatpush.bf16.msra.mxu0 %v3591
    %4457 = vmatpush.bf16.msra.mxu0 %v3575
    %4458 = vmatpush.bf16.msra.mxu0 %v3559
    %4459 = vmatpush.bf16.msra.mxu0 %v3543
    %4460 = vmatpush.bf16.msra.mxu0 %v3527
    %4461 = vmatpush.bf16.msra.mxu0 %v3511
    %4462 = vmatpush.bf16.msra.mxu0 %v3495
    %4463 = vmatmul.bf16.gmra.mxu0 %v1279
    %v4464 = vpop.f32.mrf.mxu0
    %v4465 = vadd.f32 %v4452, %v4464
    %v4466 = vpop.f32.mrf.mxu0
    %4467 = vdwg.mxu0
    %4468 = vmatpush.bf16.msra.mxu0 %v3735
    %4469 = vmatpush.bf16.msra.mxu0 %v3719
    %4470 = vmatpush.bf16.msra.mxu0 %v3703
    %4471 = vmatpush.bf16.msra.mxu0 %v3687
    %4472 = vmatpush.bf16.msra.mxu0 %v3671
    %4473 = vmatpush.bf16.msra.mxu0 %v3655
    %4474 = vmatpush.bf16.msra.mxu0 %v3639
    %4475 = vmatpush.bf16.msra.mxu0 %v3623
    %4476 = vmatmul.bf16.gmra.mxu0 %v1280
    %v4477 = vpop.f32.mrf.mxu0
    %v4478 = vadd.f32 %v4465, %v4477
    %v4479 = vpop.f32.mrf.mxu0
    %4480 = vdwg.mxu0
    %4481 = vmatpush.bf16.msra.mxu0 %v3863
    %4482 = vmatpush.bf16.msra.mxu0 %v3847
    %4483 = vmatpush.bf16.msra.mxu0 %v3831
    %4484 = vmatpush.bf16.msra.mxu0 %v3815
    %4485 = vmatpush.bf16.msra.mxu0 %v3799
    %4486 = vmatpush.bf16.msra.mxu0 %v3783
    %4487 = vmatpush.bf16.msra.mxu0 %v3767
    %4488 = vmatpush.bf16.msra.mxu0 %v3751
    %4489 = vmatmul.bf16.gmra.mxu0 %v1281
    %v4490 = vpop.f32.mrf.mxu0
    %v4491 = vadd.f32 %v4478, %v4490
    %v4492 = vpop.f32.mrf.mxu0
    %4493 = vdwg.mxu0
    %4494 = vmatpush.bf16.msra.mxu0 %v3480
    %4495 = vmatpush.bf16.msra.mxu0 %v3464
    %4496 = vmatpush.bf16.msra.mxu0 %v3448
    %4497 = vmatpush.bf16.msra.mxu0 %v3432
    %4498 = vmatpush.bf16.msra.mxu0 %v3416
    %4499 = vmatpush.bf16.msra.mxu0 %v3400
    %4500 = vmatpush.bf16.msra.mxu0 %v3384
    %4501 = vmatpush.bf16.msra.mxu0 %v3368
    %4502 = vmatmul.bf16.gmra.mxu0 %v1278
    %v4503 = vpop.f32.mrf.mxu0
    %v4504 = vadd.f32 %v1800, %v4503
    %v4505 = vpop.f32.mrf.mxu0
    %4506 = vdwg.mxu0
    %4507 = vmatpush.bf16.msra.mxu0 %v3608
    %4508 = vmatpush.bf16.msra.mxu0 %v3592
    %4509 = vmatpush.bf16.msra.mxu0 %v3576
    %4510 = vmatpush.bf16.msra.mxu0 %v3560
    %4511 = vmatpush.bf16.msra.mxu0 %v3544
    %4512 = vmatpush.bf16.msra.mxu0 %v3528
    %4513 = vmatpush.bf16.msra.mxu0 %v3512
    %4514 = vmatpush.bf16.msra.mxu0 %v3496
    %4515 = vmatmul.bf16.gmra.mxu0 %v1279
    %v4516 = vpop.f32.mrf.mxu0
    %v4517 = vadd.f32 %v4504, %v4516
    %v4518 = vpop.f32.mrf.mxu0
    %4519 = vdwg.mxu0
    %4520 = vmatpush.bf16.msra.mxu0 %v3736
    %4521 = vmatpush.bf16.msra.mxu0 %v3720
    %4522 = vmatpush.bf16.msra.mxu0 %v3704
    %4523 = vmatpush.bf16.msra.mxu0 %v3688
    %4524 = vmatpush.bf16.msra.mxu0 %v3672
    %4525 = vmatpush.bf16.msra.mxu0 %v3656
    %4526 = vmatpush.bf16.msra.mxu0 %v3640
    %4527 = vmatpush.bf16.msra.mxu0 %v3624
    %4528 = vmatmul.bf16.gmra.mxu0 %v1280
    %v4529 = vpop.f32.mrf.mxu0
    %v4530 = vadd.f32 %v4517, %v4529
    %v4531 = vpop.f32.mrf.mxu0
    %4532 = vdwg.mxu0
    %4533 = vmatpush.bf16.msra.mxu0 %v3864
    %4534 = vmatpush.bf16.msra.mxu0 %v3848
    %4535 = vmatpush.bf16.msra.mxu0 %v3832
    %4536 = vmatpush.bf16.msra.mxu0 %v3816
    %4537 = vmatpush.bf16.msra.mxu0 %v3800
    %4538 = vmatpush.bf16.msra.mxu0 %v3784
    %4539 = vmatpush.bf16.msra.mxu0 %v3768
    %4540 = vmatpush.bf16.msra.mxu0 %v3752
    %4541 = vmatmul.bf16.gmra.mxu0 %v1281
    %v4542 = vpop.f32.mrf.mxu0
    %v4543 = vadd.f32 %v4530, %v4542
    %v4544 = vpop.f32.mrf.mxu0
    %4545 = vdwg.mxu0
    %4546 = vmatpush.bf16.msra.mxu0 %v3481
    %4547 = vmatpush.bf16.msra.mxu0 %v3465
    %4548 = vmatpush.bf16.msra.mxu0 %v3449
    %4549 = vmatpush.bf16.msra.mxu0 %v3433
    %4550 = vmatpush.bf16.msra.mxu0 %v3417
    %4551 = vmatpush.bf16.msra.mxu0 %v3401
    %4552 = vmatpush.bf16.msra.mxu0 %v3385
    %4553 = vmatpush.bf16.msra.mxu0 %v3369
    %4554 = vmatmul.bf16.gmra.mxu0 %v1278
    %v4555 = vpop.f32.mrf.mxu0
    %v4556 = vadd.f32 %v1801, %v4555
    %v4557 = vpop.f32.mrf.mxu0
    %4558 = vdwg.mxu0
    %4559 = vmatpush.bf16.msra.mxu0 %v3609
    %4560 = vmatpush.bf16.msra.mxu0 %v3593
    %4561 = vmatpush.bf16.msra.mxu0 %v3577
    %4562 = vmatpush.bf16.msra.mxu0 %v3561
    %4563 = vmatpush.bf16.msra.mxu0 %v3545
    %4564 = vmatpush.bf16.msra.mxu0 %v3529
    %4565 = vmatpush.bf16.msra.mxu0 %v3513
    %4566 = vmatpush.bf16.msra.mxu0 %v3497
    %4567 = vmatmul.bf16.gmra.mxu0 %v1279
    %v4568 = vpop.f32.mrf.mxu0
    %v4569 = vadd.f32 %v4556, %v4568
    %v4570 = vpop.f32.mrf.mxu0
    %4571 = vdwg.mxu0
    %4572 = vmatpush.bf16.msra.mxu0 %v3737
    %4573 = vmatpush.bf16.msra.mxu0 %v3721
    %4574 = vmatpush.bf16.msra.mxu0 %v3705
    %4575 = vmatpush.bf16.msra.mxu0 %v3689
    %4576 = vmatpush.bf16.msra.mxu0 %v3673
    %4577 = vmatpush.bf16.msra.mxu0 %v3657
    %4578 = vmatpush.bf16.msra.mxu0 %v3641
    %4579 = vmatpush.bf16.msra.mxu0 %v3625
    %4580 = vmatmul.bf16.gmra.mxu0 %v1280
    %v4581 = vpop.f32.mrf.mxu0
    %v4582 = vadd.f32 %v4569, %v4581
    %v4583 = vpop.f32.mrf.mxu0
    %4584 = vdwg.mxu0
    %4585 = vmatpush.bf16.msra.mxu0 %v3865
    %4586 = vmatpush.bf16.msra.mxu0 %v3849
    %4587 = vmatpush.bf16.msra.mxu0 %v3833
    %4588 = vmatpush.bf16.msra.mxu0 %v3817
    %4589 = vmatpush.bf16.msra.mxu0 %v3801
    %4590 = vmatpush.bf16.msra.mxu0 %v3785
    %4591 = vmatpush.bf16.msra.mxu0 %v3769
    %4592 = vmatpush.bf16.msra.mxu0 %v3753
    %4593 = vmatmul.bf16.gmra.mxu0 %v1281
    %v4594 = vpop.f32.mrf.mxu0
    %v4595 = vadd.f32 %v4582, %v4594
    %v4596 = vpop.f32.mrf.mxu0
    %4597 = vdwg.mxu0
    %4598 = vmatpush.bf16.msra.mxu0 %v3482
    %4599 = vmatpush.bf16.msra.mxu0 %v3466
    %4600 = vmatpush.bf16.msra.mxu0 %v3450
    %4601 = vmatpush.bf16.msra.mxu0 %v3434
    %4602 = vmatpush.bf16.msra.mxu0 %v3418
    %4603 = vmatpush.bf16.msra.mxu0 %v3402
    %4604 = vmatpush.bf16.msra.mxu0 %v3386
    %4605 = vmatpush.bf16.msra.mxu0 %v3370
    %4606 = vmatmul.bf16.gmra.mxu0 %v1278
    %v4607 = vpop.f32.mrf.mxu0
    %v4608 = vadd.f32 %v1802, %v4607
    %v4609 = vpop.f32.mrf.mxu0
    %4610 = vdwg.mxu0
    %4611 = vmatpush.bf16.msra.mxu0 %v3610
    %4612 = vmatpush.bf16.msra.mxu0 %v3594
    %4613 = vmatpush.bf16.msra.mxu0 %v3578
    %4614 = vmatpush.bf16.msra.mxu0 %v3562
    %4615 = vmatpush.bf16.msra.mxu0 %v3546
    %4616 = vmatpush.bf16.msra.mxu0 %v3530
    %4617 = vmatpush.bf16.msra.mxu0 %v3514
    %4618 = vmatpush.bf16.msra.mxu0 %v3498
    %4619 = vmatmul.bf16.gmra.mxu0 %v1279
    %v4620 = vpop.f32.mrf.mxu0
    %v4621 = vadd.f32 %v4608, %v4620
    %v4622 = vpop.f32.mrf.mxu0
    %4623 = vdwg.mxu0
    %4624 = vmatpush.bf16.msra.mxu0 %v3738
    %4625 = vmatpush.bf16.msra.mxu0 %v3722
    %4626 = vmatpush.bf16.msra.mxu0 %v3706
    %4627 = vmatpush.bf16.msra.mxu0 %v3690
    %4628 = vmatpush.bf16.msra.mxu0 %v3674
    %4629 = vmatpush.bf16.msra.mxu0 %v3658
    %4630 = vmatpush.bf16.msra.mxu0 %v3642
    %4631 = vmatpush.bf16.msra.mxu0 %v3626
    %4632 = vmatmul.bf16.gmra.mxu0 %v1280
    %v4633 = vpop.f32.mrf.mxu0
    %v4634 = vadd.f32 %v4621, %v4633
    %v4635 = vpop.f32.mrf.mxu0
    %4636 = vdwg.mxu0
    %4637 = vmatpush.bf16.msra.mxu0 %v3866
    %4638 = vmatpush.bf16.msra.mxu0 %v3850
    %4639 = vmatpush.bf16.msra.mxu0 %v3834
    %4640 = vmatpush.bf16.msra.mxu0 %v3818
    %4641 = vmatpush.bf16.msra.mxu0 %v3802
    %4642 = vmatpush.bf16.msra.mxu0 %v3786
    %4643 = vmatpush.bf16.msra.mxu0 %v3770
    %4644 = vmatpush.bf16.msra.mxu0 %v3754
    %4645 = vmatmul.bf16.gmra.mxu0 %v1281
    %v4646 = vpop.f32.mrf.mxu0
    %v4647 = vadd.f32 %v4634, %v4646
    %v4648 = vpop.f32.mrf.mxu0
    %4649 = vdwg.mxu0
    %4650 = vmatpush.bf16.msra.mxu0 %v3483
    %4651 = vmatpush.bf16.msra.mxu0 %v3467
    %4652 = vmatpush.bf16.msra.mxu0 %v3451
    %4653 = vmatpush.bf16.msra.mxu0 %v3435
    %4654 = vmatpush.bf16.msra.mxu0 %v3419
    %4655 = vmatpush.bf16.msra.mxu0 %v3403
    %4656 = vmatpush.bf16.msra.mxu0 %v3387
    %4657 = vmatpush.bf16.msra.mxu0 %v3371
    %4658 = vmatmul.bf16.gmra.mxu0 %v1278
    %v4659 = vpop.f32.mrf.mxu0
    %v4660 = vadd.f32 %v1803, %v4659
    %v4661 = vpop.f32.mrf.mxu0
    %4662 = vdwg.mxu0
    %4663 = vmatpush.bf16.msra.mxu0 %v3611
    %4664 = vmatpush.bf16.msra.mxu0 %v3595
    %4665 = vmatpush.bf16.msra.mxu0 %v3579
    %4666 = vmatpush.bf16.msra.mxu0 %v3563
    %4667 = vmatpush.bf16.msra.mxu0 %v3547
    %4668 = vmatpush.bf16.msra.mxu0 %v3531
    %4669 = vmatpush.bf16.msra.mxu0 %v3515
    %4670 = vmatpush.bf16.msra.mxu0 %v3499
    %4671 = vmatmul.bf16.gmra.mxu0 %v1279
    %v4672 = vpop.f32.mrf.mxu0
    %v4673 = vadd.f32 %v4660, %v4672
    %v4674 = vpop.f32.mrf.mxu0
    %4675 = vdwg.mxu0
    %4676 = vmatpush.bf16.msra.mxu0 %v3739
    %4677 = vmatpush.bf16.msra.mxu0 %v3723
    %4678 = vmatpush.bf16.msra.mxu0 %v3707
    %4679 = vmatpush.bf16.msra.mxu0 %v3691
    %4680 = vmatpush.bf16.msra.mxu0 %v3675
    %4681 = vmatpush.bf16.msra.mxu0 %v3659
    %4682 = vmatpush.bf16.msra.mxu0 %v3643
    %4683 = vmatpush.bf16.msra.mxu0 %v3627
    %4684 = vmatmul.bf16.gmra.mxu0 %v1280
    %v4685 = vpop.f32.mrf.mxu0
    %v4686 = vadd.f32 %v4673, %v4685
    %v4687 = vpop.f32.mrf.mxu0
    %4688 = vdwg.mxu0
    %4689 = vmatpush.bf16.msra.mxu0 %v3867
    %4690 = vmatpush.bf16.msra.mxu0 %v3851
    %4691 = vmatpush.bf16.msra.mxu0 %v3835
    %4692 = vmatpush.bf16.msra.mxu0 %v3819
    %4693 = vmatpush.bf16.msra.mxu0 %v3803
    %4694 = vmatpush.bf16.msra.mxu0 %v3787
    %4695 = vmatpush.bf16.msra.mxu0 %v3771
    %4696 = vmatpush.bf16.msra.mxu0 %v3755
    %4697 = vmatmul.bf16.gmra.mxu0 %v1281
    %v4698 = vpop.f32.mrf.mxu0
    %v4699 = vadd.f32 %v4686, %v4698
    %v4700 = vpop.f32.mrf.mxu0
    %4701 = vdwg.mxu0
    %4702 = vmatpush.bf16.msra.mxu0 %v3484
    %4703 = vmatpush.bf16.msra.mxu0 %v3468
    %4704 = vmatpush.bf16.msra.mxu0 %v3452
    %4705 = vmatpush.bf16.msra.mxu0 %v3436
    %4706 = vmatpush.bf16.msra.mxu0 %v3420
    %4707 = vmatpush.bf16.msra.mxu0 %v3404
    %4708 = vmatpush.bf16.msra.mxu0 %v3388
    %4709 = vmatpush.bf16.msra.mxu0 %v3372
    %4710 = vmatmul.bf16.gmra.mxu0 %v1278
    %v4711 = vpop.f32.mrf.mxu0
    %v4712 = vadd.f32 %v1804, %v4711
    %v4713 = vpop.f32.mrf.mxu0
    %4714 = vdwg.mxu0
    %4715 = vmatpush.bf16.msra.mxu0 %v3612
    %4716 = vmatpush.bf16.msra.mxu0 %v3596
    %4717 = vmatpush.bf16.msra.mxu0 %v3580
    %4718 = vmatpush.bf16.msra.mxu0 %v3564
    %4719 = vmatpush.bf16.msra.mxu0 %v3548
    %4720 = vmatpush.bf16.msra.mxu0 %v3532
    %4721 = vmatpush.bf16.msra.mxu0 %v3516
    %4722 = vmatpush.bf16.msra.mxu0 %v3500
    %4723 = vmatmul.bf16.gmra.mxu0 %v1279
    %v4724 = vpop.f32.mrf.mxu0
    %v4725 = vadd.f32 %v4712, %v4724
    %v4726 = vpop.f32.mrf.mxu0
    %4727 = vdwg.mxu0
    %4728 = vmatpush.bf16.msra.mxu0 %v3740
    %4729 = vmatpush.bf16.msra.mxu0 %v3724
    %4730 = vmatpush.bf16.msra.mxu0 %v3708
    %4731 = vmatpush.bf16.msra.mxu0 %v3692
    %4732 = vmatpush.bf16.msra.mxu0 %v3676
    %4733 = vmatpush.bf16.msra.mxu0 %v3660
    %4734 = vmatpush.bf16.msra.mxu0 %v3644
    %4735 = vmatpush.bf16.msra.mxu0 %v3628
    %4736 = vmatmul.bf16.gmra.mxu0 %v1280
    %v4737 = vpop.f32.mrf.mxu0
    %v4738 = vadd.f32 %v4725, %v4737
    %v4739 = vpop.f32.mrf.mxu0
    %4740 = vdwg.mxu0
    %4741 = vmatpush.bf16.msra.mxu0 %v3868
    %4742 = vmatpush.bf16.msra.mxu0 %v3852
    %4743 = vmatpush.bf16.msra.mxu0 %v3836
    %4744 = vmatpush.bf16.msra.mxu0 %v3820
    %4745 = vmatpush.bf16.msra.mxu0 %v3804
    %4746 = vmatpush.bf16.msra.mxu0 %v3788
    %4747 = vmatpush.bf16.msra.mxu0 %v3772
    %4748 = vmatpush.bf16.msra.mxu0 %v3756
    %4749 = vmatmul.bf16.gmra.mxu0 %v1281
    %v4750 = vpop.f32.mrf.mxu0
    %v4751 = vadd.f32 %v4738, %v4750
    %v4752 = vpop.f32.mrf.mxu0
    %4753 = vdwg.mxu0
    %4754 = vmatpush.bf16.msra.mxu0 %v3485
    %4755 = vmatpush.bf16.msra.mxu0 %v3469
    %4756 = vmatpush.bf16.msra.mxu0 %v3453
    %4757 = vmatpush.bf16.msra.mxu0 %v3437
    %4758 = vmatpush.bf16.msra.mxu0 %v3421
    %4759 = vmatpush.bf16.msra.mxu0 %v3405
    %4760 = vmatpush.bf16.msra.mxu0 %v3389
    %4761 = vmatpush.bf16.msra.mxu0 %v3373
    %4762 = vmatmul.bf16.gmra.mxu0 %v1278
    %v4763 = vpop.f32.mrf.mxu0
    %v4764 = vadd.f32 %v1805, %v4763
    %v4765 = vpop.f32.mrf.mxu0
    %4766 = vdwg.mxu0
    %4767 = vmatpush.bf16.msra.mxu0 %v3613
    %4768 = vmatpush.bf16.msra.mxu0 %v3597
    %4769 = vmatpush.bf16.msra.mxu0 %v3581
    %4770 = vmatpush.bf16.msra.mxu0 %v3565
    %4771 = vmatpush.bf16.msra.mxu0 %v3549
    %4772 = vmatpush.bf16.msra.mxu0 %v3533
    %4773 = vmatpush.bf16.msra.mxu0 %v3517
    %4774 = vmatpush.bf16.msra.mxu0 %v3501
    %4775 = vmatmul.bf16.gmra.mxu0 %v1279
    %v4776 = vpop.f32.mrf.mxu0
    %v4777 = vadd.f32 %v4764, %v4776
    %v4778 = vpop.f32.mrf.mxu0
    %4779 = vdwg.mxu0
    %4780 = vmatpush.bf16.msra.mxu0 %v3741
    %4781 = vmatpush.bf16.msra.mxu0 %v3725
    %4782 = vmatpush.bf16.msra.mxu0 %v3709
    %4783 = vmatpush.bf16.msra.mxu0 %v3693
    %4784 = vmatpush.bf16.msra.mxu0 %v3677
    %4785 = vmatpush.bf16.msra.mxu0 %v3661
    %4786 = vmatpush.bf16.msra.mxu0 %v3645
    %4787 = vmatpush.bf16.msra.mxu0 %v3629
    %4788 = vmatmul.bf16.gmra.mxu0 %v1280
    %v4789 = vpop.f32.mrf.mxu0
    %v4790 = vadd.f32 %v4777, %v4789
    %v4791 = vpop.f32.mrf.mxu0
    %4792 = vdwg.mxu0
    %4793 = vmatpush.bf16.msra.mxu0 %v3869
    %4794 = vmatpush.bf16.msra.mxu0 %v3853
    %4795 = vmatpush.bf16.msra.mxu0 %v3837
    %4796 = vmatpush.bf16.msra.mxu0 %v3821
    %4797 = vmatpush.bf16.msra.mxu0 %v3805
    %4798 = vmatpush.bf16.msra.mxu0 %v3789
    %4799 = vmatpush.bf16.msra.mxu0 %v3773
    %4800 = vmatpush.bf16.msra.mxu0 %v3757
    %4801 = vmatmul.bf16.gmra.mxu0 %v1281
    %v4802 = vpop.f32.mrf.mxu0
    %v4803 = vadd.f32 %v4790, %v4802
    %v4804 = vpop.f32.mrf.mxu0
    %4805 = vdwg.mxu0
    %4806 = vmatpush.bf16.msra.mxu0 %v3486
    %4807 = vmatpush.bf16.msra.mxu0 %v3470
    %4808 = vmatpush.bf16.msra.mxu0 %v3454
    %4809 = vmatpush.bf16.msra.mxu0 %v3438
    %4810 = vmatpush.bf16.msra.mxu0 %v3422
    %4811 = vmatpush.bf16.msra.mxu0 %v3406
    %4812 = vmatpush.bf16.msra.mxu0 %v3390
    %4813 = vmatpush.bf16.msra.mxu0 %v3374
    %4814 = vmatmul.bf16.gmra.mxu0 %v1278
    %v4815 = vpop.f32.mrf.mxu0
    %v4816 = vadd.f32 %v1806, %v4815
    %v4817 = vpop.f32.mrf.mxu0
    %4818 = vdwg.mxu0
    %4819 = vmatpush.bf16.msra.mxu0 %v3614
    %4820 = vmatpush.bf16.msra.mxu0 %v3598
    %4821 = vmatpush.bf16.msra.mxu0 %v3582
    %4822 = vmatpush.bf16.msra.mxu0 %v3566
    %4823 = vmatpush.bf16.msra.mxu0 %v3550
    %4824 = vmatpush.bf16.msra.mxu0 %v3534
    %4825 = vmatpush.bf16.msra.mxu0 %v3518
    %4826 = vmatpush.bf16.msra.mxu0 %v3502
    %4827 = vmatmul.bf16.gmra.mxu0 %v1279
    %v4828 = vpop.f32.mrf.mxu0
    %v4829 = vadd.f32 %v4816, %v4828
    %v4830 = vpop.f32.mrf.mxu0
    %4831 = vdwg.mxu0
    %4832 = vmatpush.bf16.msra.mxu0 %v3742
    %4833 = vmatpush.bf16.msra.mxu0 %v3726
    %4834 = vmatpush.bf16.msra.mxu0 %v3710
    %4835 = vmatpush.bf16.msra.mxu0 %v3694
    %4836 = vmatpush.bf16.msra.mxu0 %v3678
    %4837 = vmatpush.bf16.msra.mxu0 %v3662
    %4838 = vmatpush.bf16.msra.mxu0 %v3646
    %4839 = vmatpush.bf16.msra.mxu0 %v3630
    %4840 = vmatmul.bf16.gmra.mxu0 %v1280
    %v4841 = vpop.f32.mrf.mxu0
    %v4842 = vadd.f32 %v4829, %v4841
    %v4843 = vpop.f32.mrf.mxu0
    %4844 = vdwg.mxu0
    %4845 = vmatpush.bf16.msra.mxu0 %v3870
    %4846 = vmatpush.bf16.msra.mxu0 %v3854
    %4847 = vmatpush.bf16.msra.mxu0 %v3838
    %4848 = vmatpush.bf16.msra.mxu0 %v3822
    %4849 = vmatpush.bf16.msra.mxu0 %v3806
    %4850 = vmatpush.bf16.msra.mxu0 %v3790
    %4851 = vmatpush.bf16.msra.mxu0 %v3774
    %4852 = vmatpush.bf16.msra.mxu0 %v3758
    %4853 = vmatmul.bf16.gmra.mxu0 %v1281
    %v4854 = vpop.f32.mrf.mxu0
    %v4855 = vadd.f32 %v4842, %v4854
    %v4856 = vpop.f32.mrf.mxu0
    %4857 = vdwg.mxu0
    %4858 = vmatpush.bf16.msra.mxu0 %v3487
    %4859 = vmatpush.bf16.msra.mxu0 %v3471
    %4860 = vmatpush.bf16.msra.mxu0 %v3455
    %4861 = vmatpush.bf16.msra.mxu0 %v3439
    %4862 = vmatpush.bf16.msra.mxu0 %v3423
    %4863 = vmatpush.bf16.msra.mxu0 %v3407
    %4864 = vmatpush.bf16.msra.mxu0 %v3391
    %4865 = vmatpush.bf16.msra.mxu0 %v3375
    %4866 = vmatmul.bf16.gmra.mxu0 %v1278
    %v4867 = vpop.f32.mrf.mxu0
    %v4868 = vadd.f32 %v1807, %v4867
    %v4869 = vpop.f32.mrf.mxu0
    %4870 = vdwg.mxu0
    %4871 = vmatpush.bf16.msra.mxu0 %v3615
    %4872 = vmatpush.bf16.msra.mxu0 %v3599
    %4873 = vmatpush.bf16.msra.mxu0 %v3583
    %4874 = vmatpush.bf16.msra.mxu0 %v3567
    %4875 = vmatpush.bf16.msra.mxu0 %v3551
    %4876 = vmatpush.bf16.msra.mxu0 %v3535
    %4877 = vmatpush.bf16.msra.mxu0 %v3519
    %4878 = vmatpush.bf16.msra.mxu0 %v3503
    %4879 = vmatmul.bf16.gmra.mxu0 %v1279
    %v4880 = vpop.f32.mrf.mxu0
    %v4881 = vadd.f32 %v4868, %v4880
    %v4882 = vpop.f32.mrf.mxu0
    %4883 = vdwg.mxu0
    %4884 = vmatpush.bf16.msra.mxu0 %v3743
    %4885 = vmatpush.bf16.msra.mxu0 %v3727
    %4886 = vmatpush.bf16.msra.mxu0 %v3711
    %4887 = vmatpush.bf16.msra.mxu0 %v3695
    %4888 = vmatpush.bf16.msra.mxu0 %v3679
    %4889 = vmatpush.bf16.msra.mxu0 %v3663
    %4890 = vmatpush.bf16.msra.mxu0 %v3647
    %4891 = vmatpush.bf16.msra.mxu0 %v3631
    %4892 = vmatmul.bf16.gmra.mxu0 %v1280
    %v4893 = vpop.f32.mrf.mxu0
    %v4894 = vadd.f32 %v4881, %v4893
    %v4895 = vpop.f32.mrf.mxu0
    %4896 = vdwg.mxu0
    %4897 = vmatpush.bf16.msra.mxu0 %v3871
    %4898 = vmatpush.bf16.msra.mxu0 %v3855
    %4899 = vmatpush.bf16.msra.mxu0 %v3839
    %4900 = vmatpush.bf16.msra.mxu0 %v3823
    %4901 = vmatpush.bf16.msra.mxu0 %v3807
    %4902 = vmatpush.bf16.msra.mxu0 %v3791
    %4903 = vmatpush.bf16.msra.mxu0 %v3775
    %4904 = vmatpush.bf16.msra.mxu0 %v3759
    %4905 = vmatmul.bf16.gmra.mxu0 %v1281
    %v4906 = vpop.f32.mrf.mxu0
    %v4907 = vadd.f32 %v4894, %v4906
    %v4908 = vpop.f32.mrf.mxu0
    %4909 = vdwg.mxu0
    %4910 = vmatpush.bf16.msra.mxu0 %v3488
    %4911 = vmatpush.bf16.msra.mxu0 %v3472
    %4912 = vmatpush.bf16.msra.mxu0 %v3456
    %4913 = vmatpush.bf16.msra.mxu0 %v3440
    %4914 = vmatpush.bf16.msra.mxu0 %v3424
    %4915 = vmatpush.bf16.msra.mxu0 %v3408
    %4916 = vmatpush.bf16.msra.mxu0 %v3392
    %4917 = vmatpush.bf16.msra.mxu0 %v3376
    %4918 = vmatmul.bf16.gmra.mxu0 %v1278
    %v4919 = vpop.f32.mrf.mxu0
    %v4920 = vadd.f32 %v1808, %v4919
    %v4921 = vpop.f32.mrf.mxu0
    %4922 = vdwg.mxu0
    %4923 = vmatpush.bf16.msra.mxu0 %v3616
    %4924 = vmatpush.bf16.msra.mxu0 %v3600
    %4925 = vmatpush.bf16.msra.mxu0 %v3584
    %4926 = vmatpush.bf16.msra.mxu0 %v3568
    %4927 = vmatpush.bf16.msra.mxu0 %v3552
    %4928 = vmatpush.bf16.msra.mxu0 %v3536
    %4929 = vmatpush.bf16.msra.mxu0 %v3520
    %4930 = vmatpush.bf16.msra.mxu0 %v3504
    %4931 = vmatmul.bf16.gmra.mxu0 %v1279
    %v4932 = vpop.f32.mrf.mxu0
    %v4933 = vadd.f32 %v4920, %v4932
    %v4934 = vpop.f32.mrf.mxu0
    %4935 = vdwg.mxu0
    %4936 = vmatpush.bf16.msra.mxu0 %v3744
    %4937 = vmatpush.bf16.msra.mxu0 %v3728
    %4938 = vmatpush.bf16.msra.mxu0 %v3712
    %4939 = vmatpush.bf16.msra.mxu0 %v3696
    %4940 = vmatpush.bf16.msra.mxu0 %v3680
    %4941 = vmatpush.bf16.msra.mxu0 %v3664
    %4942 = vmatpush.bf16.msra.mxu0 %v3648
    %4943 = vmatpush.bf16.msra.mxu0 %v3632
    %4944 = vmatmul.bf16.gmra.mxu0 %v1280
    %v4945 = vpop.f32.mrf.mxu0
    %v4946 = vadd.f32 %v4933, %v4945
    %v4947 = vpop.f32.mrf.mxu0
    %4948 = vdwg.mxu0
    %4949 = vmatpush.bf16.msra.mxu0 %v3872
    %4950 = vmatpush.bf16.msra.mxu0 %v3856
    %4951 = vmatpush.bf16.msra.mxu0 %v3840
    %4952 = vmatpush.bf16.msra.mxu0 %v3824
    %4953 = vmatpush.bf16.msra.mxu0 %v3808
    %4954 = vmatpush.bf16.msra.mxu0 %v3792
    %4955 = vmatpush.bf16.msra.mxu0 %v3776
    %4956 = vmatpush.bf16.msra.mxu0 %v3760
    %4957 = vmatmul.bf16.gmra.mxu0 %v1281
    %v4958 = vpop.f32.mrf.mxu0
    %v4959 = vadd.f32 %v4946, %v4958
    %v4960 = vpop.f32.mrf.mxu0
    %4961 = vdwg.mxu0
    %4962 = vmatpush.bf16.msra.mxu0 %v3489
    %4963 = vmatpush.bf16.msra.mxu0 %v3473
    %4964 = vmatpush.bf16.msra.mxu0 %v3457
    %4965 = vmatpush.bf16.msra.mxu0 %v3441
    %4966 = vmatpush.bf16.msra.mxu0 %v3425
    %4967 = vmatpush.bf16.msra.mxu0 %v3409
    %4968 = vmatpush.bf16.msra.mxu0 %v3393
    %4969 = vmatpush.bf16.msra.mxu0 %v3377
    %4970 = vmatmul.bf16.gmra.mxu0 %v1278
    %v4971 = vpop.f32.mrf.mxu0
    %v4972 = vadd.f32 %v1809, %v4971
    %v4973 = vpop.f32.mrf.mxu0
    %4974 = vdwg.mxu0
    %4975 = vmatpush.bf16.msra.mxu0 %v3617
    %4976 = vmatpush.bf16.msra.mxu0 %v3601
    %4977 = vmatpush.bf16.msra.mxu0 %v3585
    %4978 = vmatpush.bf16.msra.mxu0 %v3569
    %4979 = vmatpush.bf16.msra.mxu0 %v3553
    %4980 = vmatpush.bf16.msra.mxu0 %v3537
    %4981 = vmatpush.bf16.msra.mxu0 %v3521
    %4982 = vmatpush.bf16.msra.mxu0 %v3505
    %4983 = vmatmul.bf16.gmra.mxu0 %v1279
    %v4984 = vpop.f32.mrf.mxu0
    %v4985 = vadd.f32 %v4972, %v4984
    %v4986 = vpop.f32.mrf.mxu0
    %4987 = vdwg.mxu0
    %4988 = vmatpush.bf16.msra.mxu0 %v3745
    %4989 = vmatpush.bf16.msra.mxu0 %v3729
    %4990 = vmatpush.bf16.msra.mxu0 %v3713
    %4991 = vmatpush.bf16.msra.mxu0 %v3697
    %4992 = vmatpush.bf16.msra.mxu0 %v3681
    %4993 = vmatpush.bf16.msra.mxu0 %v3665
    %4994 = vmatpush.bf16.msra.mxu0 %v3649
    %4995 = vmatpush.bf16.msra.mxu0 %v3633
    %4996 = vmatmul.bf16.gmra.mxu0 %v1280
    %v4997 = vpop.f32.mrf.mxu0
    %v4998 = vadd.f32 %v4985, %v4997
    %v4999 = vpop.f32.mrf.mxu0
    %5000 = vdwg.mxu0
    %5001 = vmatpush.bf16.msra.mxu0 %v3873
    %5002 = vmatpush.bf16.msra.mxu0 %v3857
    %5003 = vmatpush.bf16.msra.mxu0 %v3841
    %5004 = vmatpush.bf16.msra.mxu0 %v3825
    %5005 = vmatpush.bf16.msra.mxu0 %v3809
    %5006 = vmatpush.bf16.msra.mxu0 %v3793
    %5007 = vmatpush.bf16.msra.mxu0 %v3777
    %5008 = vmatpush.bf16.msra.mxu0 %v3761
    %5009 = vmatmul.bf16.gmra.mxu0 %v1281
    %v5010 = vpop.f32.mrf.mxu0
    %v5011 = vadd.f32 %v4998, %v5010
    %v5012 = vpop.f32.mrf.mxu0
    %5013 = vdwg.mxu0
    %5014 = vmatpush.bf16.msra.mxu0 %v3490
    %5015 = vmatpush.bf16.msra.mxu0 %v3474
    %5016 = vmatpush.bf16.msra.mxu0 %v3458
    %5017 = vmatpush.bf16.msra.mxu0 %v3442
    %5018 = vmatpush.bf16.msra.mxu0 %v3426
    %5019 = vmatpush.bf16.msra.mxu0 %v3410
    %5020 = vmatpush.bf16.msra.mxu0 %v3394
    %5021 = vmatpush.bf16.msra.mxu0 %v3378
    %5022 = vmatmul.bf16.gmra.mxu0 %v1278
    %v5023 = vpop.f32.mrf.mxu0
    %v5024 = vadd.f32 %v1810, %v5023
    %v5025 = vpop.f32.mrf.mxu0
    %5026 = vdwg.mxu0
    %5027 = vmatpush.bf16.msra.mxu0 %v3618
    %5028 = vmatpush.bf16.msra.mxu0 %v3602
    %5029 = vmatpush.bf16.msra.mxu0 %v3586
    %5030 = vmatpush.bf16.msra.mxu0 %v3570
    %5031 = vmatpush.bf16.msra.mxu0 %v3554
    %5032 = vmatpush.bf16.msra.mxu0 %v3538
    %5033 = vmatpush.bf16.msra.mxu0 %v3522
    %5034 = vmatpush.bf16.msra.mxu0 %v3506
    %5035 = vmatmul.bf16.gmra.mxu0 %v1279
    %v5036 = vpop.f32.mrf.mxu0
    %v5037 = vadd.f32 %v5024, %v5036
    %v5038 = vpop.f32.mrf.mxu0
    %5039 = vdwg.mxu0
    %5040 = vmatpush.bf16.msra.mxu0 %v3746
    %5041 = vmatpush.bf16.msra.mxu0 %v3730
    %5042 = vmatpush.bf16.msra.mxu0 %v3714
    %5043 = vmatpush.bf16.msra.mxu0 %v3698
    %5044 = vmatpush.bf16.msra.mxu0 %v3682
    %5045 = vmatpush.bf16.msra.mxu0 %v3666
    %5046 = vmatpush.bf16.msra.mxu0 %v3650
    %5047 = vmatpush.bf16.msra.mxu0 %v3634
    %5048 = vmatmul.bf16.gmra.mxu0 %v1280
    %v5049 = vpop.f32.mrf.mxu0
    %v5050 = vadd.f32 %v5037, %v5049
    %v5051 = vpop.f32.mrf.mxu0
    %5052 = vdwg.mxu0
    %5053 = vmatpush.bf16.msra.mxu0 %v3874
    %5054 = vmatpush.bf16.msra.mxu0 %v3858
    %5055 = vmatpush.bf16.msra.mxu0 %v3842
    %5056 = vmatpush.bf16.msra.mxu0 %v3826
    %5057 = vmatpush.bf16.msra.mxu0 %v3810
    %5058 = vmatpush.bf16.msra.mxu0 %v3794
    %5059 = vmatpush.bf16.msra.mxu0 %v3778
    %5060 = vmatpush.bf16.msra.mxu0 %v3762
    %5061 = vmatmul.bf16.gmra.mxu0 %v1281
    %v5062 = vpop.f32.mrf.mxu0
    %v5063 = vadd.f32 %v5050, %v5062
    %v5064 = vpop.f32.mrf.mxu0
    %5065 = vdwg.mxu0
    %5066 = vmatpush.bf16.msra.mxu0 %v3491
    %5067 = vmatpush.bf16.msra.mxu0 %v3475
    %5068 = vmatpush.bf16.msra.mxu0 %v3459
    %5069 = vmatpush.bf16.msra.mxu0 %v3443
    %5070 = vmatpush.bf16.msra.mxu0 %v3427
    %5071 = vmatpush.bf16.msra.mxu0 %v3411
    %5072 = vmatpush.bf16.msra.mxu0 %v3395
    %5073 = vmatpush.bf16.msra.mxu0 %v3379
    %5074 = vmatmul.bf16.gmra.mxu0 %v1278
    %v5075 = vpop.f32.mrf.mxu0
    %v5076 = vadd.f32 %v1811, %v5075
    %v5077 = vpop.f32.mrf.mxu0
    %5078 = vdwg.mxu0
    %5079 = vmatpush.bf16.msra.mxu0 %v3619
    %5080 = vmatpush.bf16.msra.mxu0 %v3603
    %5081 = vmatpush.bf16.msra.mxu0 %v3587
    %5082 = vmatpush.bf16.msra.mxu0 %v3571
    %5083 = vmatpush.bf16.msra.mxu0 %v3555
    %5084 = vmatpush.bf16.msra.mxu0 %v3539
    %5085 = vmatpush.bf16.msra.mxu0 %v3523
    %5086 = vmatpush.bf16.msra.mxu0 %v3507
    %5087 = vmatmul.bf16.gmra.mxu0 %v1279
    %v5088 = vpop.f32.mrf.mxu0
    %v5089 = vadd.f32 %v5076, %v5088
    %v5090 = vpop.f32.mrf.mxu0
    %5091 = vdwg.mxu0
    %5092 = vmatpush.bf16.msra.mxu0 %v3747
    %5093 = vmatpush.bf16.msra.mxu0 %v3731
    %5094 = vmatpush.bf16.msra.mxu0 %v3715
    %5095 = vmatpush.bf16.msra.mxu0 %v3699
    %5096 = vmatpush.bf16.msra.mxu0 %v3683
    %5097 = vmatpush.bf16.msra.mxu0 %v3667
    %5098 = vmatpush.bf16.msra.mxu0 %v3651
    %5099 = vmatpush.bf16.msra.mxu0 %v3635
    %5100 = vmatmul.bf16.gmra.mxu0 %v1280
    %v5101 = vpop.f32.mrf.mxu0
    %v5102 = vadd.f32 %v5089, %v5101
    %v5103 = vpop.f32.mrf.mxu0
    %5104 = vdwg.mxu0
    %5105 = vmatpush.bf16.msra.mxu0 %v3875
    %5106 = vmatpush.bf16.msra.mxu0 %v3859
    %5107 = vmatpush.bf16.msra.mxu0 %v3843
    %5108 = vmatpush.bf16.msra.mxu0 %v3827
    %5109 = vmatpush.bf16.msra.mxu0 %v3811
    %5110 = vmatpush.bf16.msra.mxu0 %v3795
    %5111 = vmatpush.bf16.msra.mxu0 %v3779
    %5112 = vmatpush.bf16.msra.mxu0 %v3763
    %5113 = vmatmul.bf16.gmra.mxu0 %v1281
    %v5114 = vpop.f32.mrf.mxu0
    %v5115 = vadd.f32 %v5102, %v5114
    %v5116 = vpop.f32.mrf.mxu0
    %5117 = vdwg.mxu0
    %5118 = vmatpush.bf16.msra.mxu0 %v3492
    %5119 = vmatpush.bf16.msra.mxu0 %v3476
    %5120 = vmatpush.bf16.msra.mxu0 %v3460
    %5121 = vmatpush.bf16.msra.mxu0 %v3444
    %5122 = vmatpush.bf16.msra.mxu0 %v3428
    %5123 = vmatpush.bf16.msra.mxu0 %v3412
    %5124 = vmatpush.bf16.msra.mxu0 %v3396
    %5125 = vmatpush.bf16.msra.mxu0 %v3380
    %5126 = vmatmul.bf16.gmra.mxu0 %v1278
    %v5127 = vpop.f32.mrf.mxu0
    %v5128 = vadd.f32 %v1812, %v5127
    %v5129 = vpop.f32.mrf.mxu0
    %5130 = vdwg.mxu0
    %5131 = vmatpush.bf16.msra.mxu0 %v3620
    %5132 = vmatpush.bf16.msra.mxu0 %v3604
    %5133 = vmatpush.bf16.msra.mxu0 %v3588
    %5134 = vmatpush.bf16.msra.mxu0 %v3572
    %5135 = vmatpush.bf16.msra.mxu0 %v3556
    %5136 = vmatpush.bf16.msra.mxu0 %v3540
    %5137 = vmatpush.bf16.msra.mxu0 %v3524
    %5138 = vmatpush.bf16.msra.mxu0 %v3508
    %5139 = vmatmul.bf16.gmra.mxu0 %v1279
    %v5140 = vpop.f32.mrf.mxu0
    %v5141 = vadd.f32 %v5128, %v5140
    %v5142 = vpop.f32.mrf.mxu0
    %5143 = vdwg.mxu0
    %5144 = vmatpush.bf16.msra.mxu0 %v3748
    %5145 = vmatpush.bf16.msra.mxu0 %v3732
    %5146 = vmatpush.bf16.msra.mxu0 %v3716
    %5147 = vmatpush.bf16.msra.mxu0 %v3700
    %5148 = vmatpush.bf16.msra.mxu0 %v3684
    %5149 = vmatpush.bf16.msra.mxu0 %v3668
    %5150 = vmatpush.bf16.msra.mxu0 %v3652
    %5151 = vmatpush.bf16.msra.mxu0 %v3636
    %5152 = vmatmul.bf16.gmra.mxu0 %v1280
    %v5153 = vpop.f32.mrf.mxu0
    %v5154 = vadd.f32 %v5141, %v5153
    %v5155 = vpop.f32.mrf.mxu0
    %5156 = vdwg.mxu0
    %5157 = vmatpush.bf16.msra.mxu0 %v3876
    %5158 = vmatpush.bf16.msra.mxu0 %v3860
    %5159 = vmatpush.bf16.msra.mxu0 %v3844
    %5160 = vmatpush.bf16.msra.mxu0 %v3828
    %5161 = vmatpush.bf16.msra.mxu0 %v3812
    %5162 = vmatpush.bf16.msra.mxu0 %v3796
    %5163 = vmatpush.bf16.msra.mxu0 %v3780
    %5164 = vmatpush.bf16.msra.mxu0 %v3764
    %5165 = vmatmul.bf16.gmra.mxu0 %v1281
    %v5166 = vpop.f32.mrf.mxu0
    %v5167 = vadd.f32 %v5154, %v5166
    %v5168 = vpop.f32.mrf.mxu0
    %5169 = vdwg.mxu0
    %5170 = vmatpush.bf16.msra.mxu0 %v3493
    %5171 = vmatpush.bf16.msra.mxu0 %v3477
    %5172 = vmatpush.bf16.msra.mxu0 %v3461
    %5173 = vmatpush.bf16.msra.mxu0 %v3445
    %5174 = vmatpush.bf16.msra.mxu0 %v3429
    %5175 = vmatpush.bf16.msra.mxu0 %v3413
    %5176 = vmatpush.bf16.msra.mxu0 %v3397
    %5177 = vmatpush.bf16.msra.mxu0 %v3381
    %5178 = vmatmul.bf16.gmra.mxu0 %v1278
    %v5179 = vpop.f32.mrf.mxu0
    %v5180 = vadd.f32 %v1813, %v5179
    %v5181 = vpop.f32.mrf.mxu0
    %5182 = vdwg.mxu0
    %5183 = vmatpush.bf16.msra.mxu0 %v3621
    %5184 = vmatpush.bf16.msra.mxu0 %v3605
    %5185 = vmatpush.bf16.msra.mxu0 %v3589
    %5186 = vmatpush.bf16.msra.mxu0 %v3573
    %5187 = vmatpush.bf16.msra.mxu0 %v3557
    %5188 = vmatpush.bf16.msra.mxu0 %v3541
    %5189 = vmatpush.bf16.msra.mxu0 %v3525
    %5190 = vmatpush.bf16.msra.mxu0 %v3509
    %5191 = vmatmul.bf16.gmra.mxu0 %v1279
    %v5192 = vpop.f32.mrf.mxu0
    %v5193 = vadd.f32 %v5180, %v5192
    %v5194 = vpop.f32.mrf.mxu0
    %5195 = vdwg.mxu0
    %5196 = vmatpush.bf16.msra.mxu0 %v3749
    %5197 = vmatpush.bf16.msra.mxu0 %v3733
    %5198 = vmatpush.bf16.msra.mxu0 %v3717
    %5199 = vmatpush.bf16.msra.mxu0 %v3701
    %5200 = vmatpush.bf16.msra.mxu0 %v3685
    %5201 = vmatpush.bf16.msra.mxu0 %v3669
    %5202 = vmatpush.bf16.msra.mxu0 %v3653
    %5203 = vmatpush.bf16.msra.mxu0 %v3637
    %5204 = vmatmul.bf16.gmra.mxu0 %v1280
    %v5205 = vpop.f32.mrf.mxu0
    %v5206 = vadd.f32 %v5193, %v5205
    %v5207 = vpop.f32.mrf.mxu0
    %5208 = vdwg.mxu0
    %5209 = vmatpush.bf16.msra.mxu0 %v3877
    %5210 = vmatpush.bf16.msra.mxu0 %v3861
    %5211 = vmatpush.bf16.msra.mxu0 %v3845
    %5212 = vmatpush.bf16.msra.mxu0 %v3829
    %5213 = vmatpush.bf16.msra.mxu0 %v3813
    %5214 = vmatpush.bf16.msra.mxu0 %v3797
    %5215 = vmatpush.bf16.msra.mxu0 %v3781
    %5216 = vmatpush.bf16.msra.mxu0 %v3765
    %5217 = vmatmul.bf16.gmra.mxu0 %v1281
    %v5218 = vpop.f32.mrf.mxu0
    %v5219 = vadd.f32 %v5206, %v5218
    %v5220 = vpop.f32.mrf.mxu0
    %5221 = vdwg.mxu0
    %v5222 = vmax.f32 %v4439, 0.0
    %v5223 = vmax.f32 %v4491, 0.0
    %v5224 = vmax.f32 %v4543, 0.0
    %v5225 = vmax.f32 %v4595, 0.0
    %v5226 = vmax.f32 %v4647, 0.0
    %v5227 = vmax.f32 %v4699, 0.0
    %v5228 = vmax.f32 %v4751, 0.0
    %v5229 = vmax.f32 %v4803, 0.0
    %v5230 = vmax.f32 %v4855, 0.0
    %v5231 = vmax.f32 %v4907, 0.0
    %v5232 = vmax.f32 %v4959, 0.0
    %v5233 = vmax.f32 %v5011, 0.0
    %v5234 = vmax.f32 %v5063, 0.0
    %v5235 = vmax.f32 %v5115, 0.0
    %v5236 = vmax.f32 %v5167, 0.0
    %v5237 = vmax.f32 %v5219, 0.0
    %v5238 = vpack.c.bf16 %v5222, %v5222
    %v5239 = vpack.c.bf16 %v5223, %v5223
    %v5240 = vpack.c.bf16 %v5224, %v5224
    %v5241 = vpack.c.bf16 %v5225, %v5225
    %v5242 = vpack.c.bf16 %v5226, %v5226
    %v5243 = vpack.c.bf16 %v5227, %v5227
    %v5244 = vpack.c.bf16 %v5228, %v5228
    %v5245 = vpack.c.bf16 %v5229, %v5229
    %v5246 = vpack.c.bf16 %v5230, %v5230
    %v5247 = vpack.c.bf16 %v5231, %v5231
    %v5248 = vpack.c.bf16 %v5232, %v5232
    %v5249 = vpack.c.bf16 %v5233, %v5233
    %v5250 = vpack.c.bf16 %v5234, %v5234
    %v5251 = vpack.c.bf16 %v5235, %v5235
    %v5252 = vpack.c.bf16 %v5236, %v5236
    %v5253 = vpack.c.bf16 %v5237, %v5237
    %v5254 = vld [vmem:[#allocation14] sm:$0xf]
    %v5255 = vld [vmem:[#allocation14 + $0x4] sm:$0xf]
    %v5256 = vld [vmem:[#allocation14 + $0x8] sm:$0xf]
    %v5257 = vld [vmem:[#allocation14 + $0xc] sm:$0xf]
    %v5258 = vld [vmem:[#allocation14 + $0x10] sm:$0xf]
    %v5259 = vld [vmem:[#allocation14 + $0x14] sm:$0xf]
    %v5260 = vld [vmem:[#allocation14 + $0x18] sm:$0xf]
    %v5261 = vld [vmem:[#allocation14 + $0x1c] sm:$0xf]
    %v5262 = vld [vmem:[#allocation14 + $0x20] sm:$0xf]
    %v5263 = vld [vmem:[#allocation14 + $0x24] sm:$0xf]
    %v5264 = vld [vmem:[#allocation14 + $0x28] sm:$0xf]
    %v5265 = vld [vmem:[#allocation14 + $0x2c] sm:$0xf]
    %v5266 = vld [vmem:[#allocation14 + $0x30] sm:$0xf]
    %v5267 = vld [vmem:[#allocation14 + $0x34] sm:$0xf]
    %v5268 = vld [vmem:[#allocation14 + $0x38] sm:$0xf]
    %v5269 = vld [vmem:[#allocation14 + $0x3c] sm:$0xf]
    %v5270 = vld [vmem:[#allocation14 + $0x40] sm:$0xf]
    %v5271 = vld [vmem:[#allocation14 + $0x44] sm:$0xf]
    %v5272 = vld [vmem:[#allocation14 + $0x48] sm:$0xf]
    %v5273 = vld [vmem:[#allocation14 + $0x4c] sm:$0xf]
    %v5274 = vld [vmem:[#allocation14 + $0x50] sm:$0xf]
    %v5275 = vld [vmem:[#allocation14 + $0x54] sm:$0xf]
    %v5276 = vld [vmem:[#allocation14 + $0x58] sm:$0xf]
    %v5277 = vld [vmem:[#allocation14 + $0x5c] sm:$0xf]
    %v5278 = vld [vmem:[#allocation14 + $0x60] sm:$0xf]
    %v5279 = vld [vmem:[#allocation14 + $0x64] sm:$0xf]
    %v5280 = vld [vmem:[#allocation14 + $0x68] sm:$0xf]
    %v5281 = vld [vmem:[#allocation14 + $0x6c] sm:$0xf]
    %v5282 = vld [vmem:[#allocation14 + $0x70] sm:$0xf]
    %v5283 = vld [vmem:[#allocation14 + $0x74] sm:$0xf]
    %v5284 = vld [vmem:[#allocation14 + $0x78] sm:$0xf]
    %v5285 = vld [vmem:[#allocation14 + $0x7c] sm:$0xf]
    %v5286 = vld [vmem:[#allocation14 + $0x80] sm:$0xf]
    %v5287 = vld [vmem:[#allocation14 + $0x84] sm:$0xf]
    %v5288 = vld [vmem:[#allocation14 + $0x88] sm:$0xf]
    %v5289 = vld [vmem:[#allocation14 + $0x8c] sm:$0xf]
    %v5290 = vld [vmem:[#allocation14 + $0x90] sm:$0xf]
    %v5291 = vld [vmem:[#allocation14 + $0x94] sm:$0xf]
    %v5292 = vld [vmem:[#allocation14 + $0x98] sm:$0xf]
    %v5293 = vld [vmem:[#allocation14 + $0x9c] sm:$0xf]
    %v5294 = vld [vmem:[#allocation14 + $0xa0] sm:$0xf]
    %v5295 = vld [vmem:[#allocation14 + $0xa4] sm:$0xf]
    %v5296 = vld [vmem:[#allocation14 + $0xa8] sm:$0xf]
    %v5297 = vld [vmem:[#allocation14 + $0xac] sm:$0xf]
    %v5298 = vld [vmem:[#allocation14 + $0xb0] sm:$0xf]
    %v5299 = vld [vmem:[#allocation14 + $0xb4] sm:$0xf]
    %v5300 = vld [vmem:[#allocation14 + $0xb8] sm:$0xf]
    %v5301 = vld [vmem:[#allocation14 + $0xbc] sm:$0xf]
    %v5302 = vld [vmem:[#allocation14 + $0xc0] sm:$0xf]
    %v5303 = vld [vmem:[#allocation14 + $0xc4] sm:$0xf]
    %v5304 = vld [vmem:[#allocation14 + $0xc8] sm:$0xf]
    %v5305 = vld [vmem:[#allocation14 + $0xcc] sm:$0xf]
    %v5306 = vld [vmem:[#allocation14 + $0xd0] sm:$0xf]
    %v5307 = vld [vmem:[#allocation14 + $0xd4] sm:$0xf]
    %v5308 = vld [vmem:[#allocation14 + $0xd8] sm:$0xf]
    %v5309 = vld [vmem:[#allocation14 + $0xdc] sm:$0xf]
    %v5310 = vld [vmem:[#allocation14 + $0xe0] sm:$0xf]
    %v5311 = vld [vmem:[#allocation14 + $0xe4] sm:$0xf]
    %v5312 = vld [vmem:[#allocation14 + $0xe8] sm:$0xf]
    %v5313 = vld [vmem:[#allocation14 + $0xec] sm:$0xf]
    %v5314 = vld [vmem:[#allocation14 + $0xf0] sm:$0xf]
    %v5315 = vld [vmem:[#allocation14 + $0xf4] sm:$0xf]
    %v5316 = vld [vmem:[#allocation14 + $0xf8] sm:$0xf]
    %v5317 = vld [vmem:[#allocation14 + $0xfc] sm:$0xf]
    %v5318 = vld [vmem:[#allocation14 + $0x100] sm:$0xf]
    %v5319 = vld [vmem:[#allocation14 + $0x104] sm:$0xf]
    %v5320 = vld [vmem:[#allocation14 + $0x108] sm:$0xf]
    %v5321 = vld [vmem:[#allocation14 + $0x10c] sm:$0xf]
    %v5322 = vld [vmem:[#allocation14 + $0x110] sm:$0xf]
    %v5323 = vld [vmem:[#allocation14 + $0x114] sm:$0xf]
    %v5324 = vld [vmem:[#allocation14 + $0x118] sm:$0xf]
    %v5325 = vld [vmem:[#allocation14 + $0x11c] sm:$0xf]
    %v5326 = vld [vmem:[#allocation14 + $0x120] sm:$0xf]
    %v5327 = vld [vmem:[#allocation14 + $0x124] sm:$0xf]
    %v5328 = vld [vmem:[#allocation14 + $0x128] sm:$0xf]
    %v5329 = vld [vmem:[#allocation14 + $0x12c] sm:$0xf]
    %v5330 = vld [vmem:[#allocation14 + $0x130] sm:$0xf]
    %v5331 = vld [vmem:[#allocation14 + $0x134] sm:$0xf]
    %v5332 = vld [vmem:[#allocation14 + $0x138] sm:$0xf]
    %v5333 = vld [vmem:[#allocation14 + $0x13c] sm:$0xf]
    %v5334 = vld [vmem:[#allocation14 + $0x140] sm:$0xf]
    %v5335 = vld [vmem:[#allocation14 + $0x144] sm:$0xf]
    %v5336 = vld [vmem:[#allocation14 + $0x148] sm:$0xf]
    %v5337 = vld [vmem:[#allocation14 + $0x14c] sm:$0xf]
    %v5338 = vld [vmem:[#allocation14 + $0x150] sm:$0xf]
    %v5339 = vld [vmem:[#allocation14 + $0x154] sm:$0xf]
    %v5340 = vld [vmem:[#allocation14 + $0x158] sm:$0xf]
    %v5341 = vld [vmem:[#allocation14 + $0x15c] sm:$0xf]
    %v5342 = vld [vmem:[#allocation14 + $0x160] sm:$0xf]
    %v5343 = vld [vmem:[#allocation14 + $0x164] sm:$0xf]
    %v5344 = vld [vmem:[#allocation14 + $0x168] sm:$0xf]
    %v5345 = vld [vmem:[#allocation14 + $0x16c] sm:$0xf]
    %v5346 = vld [vmem:[#allocation14 + $0x170] sm:$0xf]
    %v5347 = vld [vmem:[#allocation14 + $0x174] sm:$0xf]
    %v5348 = vld [vmem:[#allocation14 + $0x178] sm:$0xf]
    %v5349 = vld [vmem:[#allocation14 + $0x17c] sm:$0xf]
    %v5350 = vld [vmem:[#allocation14 + $0x180] sm:$0xf]
    %v5351 = vld [vmem:[#allocation14 + $0x184] sm:$0xf]
    %v5352 = vld [vmem:[#allocation14 + $0x188] sm:$0xf]
    %v5353 = vld [vmem:[#allocation14 + $0x18c] sm:$0xf]
    %v5354 = vld [vmem:[#allocation14 + $0x190] sm:$0xf]
    %v5355 = vld [vmem:[#allocation14 + $0x194] sm:$0xf]
    %v5356 = vld [vmem:[#allocation14 + $0x198] sm:$0xf]
    %v5357 = vld [vmem:[#allocation14 + $0x19c] sm:$0xf]
    %v5358 = vld [vmem:[#allocation14 + $0x1a0] sm:$0xf]
    %v5359 = vld [vmem:[#allocation14 + $0x1a4] sm:$0xf]
    %v5360 = vld [vmem:[#allocation14 + $0x1a8] sm:$0xf]
    %v5361 = vld [vmem:[#allocation14 + $0x1ac] sm:$0xf]
    %v5362 = vld [vmem:[#allocation14 + $0x1b0] sm:$0xf]
    %v5363 = vld [vmem:[#allocation14 + $0x1b4] sm:$0xf]
    %v5364 = vld [vmem:[#allocation14 + $0x1b8] sm:$0xf]
    %v5365 = vld [vmem:[#allocation14 + $0x1bc] sm:$0xf]
    %v5366 = vld [vmem:[#allocation14 + $0x1c0] sm:$0xf]
    %v5367 = vld [vmem:[#allocation14 + $0x1c4] sm:$0xf]
    %v5368 = vld [vmem:[#allocation14 + $0x1c8] sm:$0xf]
    %v5369 = vld [vmem:[#allocation14 + $0x1cc] sm:$0xf]
    %v5370 = vld [vmem:[#allocation14 + $0x1d0] sm:$0xf]
    %v5371 = vld [vmem:[#allocation14 + $0x1d4] sm:$0xf]
    %v5372 = vld [vmem:[#allocation14 + $0x1d8] sm:$0xf]
    %v5373 = vld [vmem:[#allocation14 + $0x1dc] sm:$0xf]
    %v5374 = vld [vmem:[#allocation14 + $0x1e0] sm:$0xf]
    %v5375 = vld [vmem:[#allocation14 + $0x1e4] sm:$0xf]
    %v5376 = vld [vmem:[#allocation14 + $0x1e8] sm:$0xf]
    %v5377 = vld [vmem:[#allocation14 + $0x1ec] sm:$0xf]
    %v5378 = vld [vmem:[#allocation14 + $0x1f0] sm:$0xf]
    %v5379 = vld [vmem:[#allocation14 + $0x1f4] sm:$0xf]
    %v5380 = vld [vmem:[#allocation14 + $0x1f8] sm:$0xf]
    %v5381 = vld [vmem:[#allocation14 + $0x1fc] sm:$0xf]
    %v5382 = vld [vmem:[#allocation14 + $0x200] sm:$0xf]
    %v5383 = vld [vmem:[#allocation14 + $0x204] sm:$0xf]
    %v5384 = vld [vmem:[#allocation14 + $0x208] sm:$0xf]
    %v5385 = vld [vmem:[#allocation14 + $0x20c] sm:$0xf]
    %v5386 = vld [vmem:[#allocation14 + $0x210] sm:$0xf]
    %v5387 = vld [vmem:[#allocation14 + $0x214] sm:$0xf]
    %v5388 = vld [vmem:[#allocation14 + $0x218] sm:$0xf]
    %v5389 = vld [vmem:[#allocation14 + $0x21c] sm:$0xf]
    %v5390 = vld [vmem:[#allocation14 + $0x220] sm:$0xf]
    %v5391 = vld [vmem:[#allocation14 + $0x224] sm:$0xf]
    %v5392 = vld [vmem:[#allocation14 + $0x228] sm:$0xf]
    %v5393 = vld [vmem:[#allocation14 + $0x22c] sm:$0xf]
    %v5394 = vld [vmem:[#allocation14 + $0x230] sm:$0xf]
    %v5395 = vld [vmem:[#allocation14 + $0x234] sm:$0xf]
    %v5396 = vld [vmem:[#allocation14 + $0x238] sm:$0xf]
    %v5397 = vld [vmem:[#allocation14 + $0x23c] sm:$0xf]
    %v5398 = vld [vmem:[#allocation14 + $0x240] sm:$0xf]
    %v5399 = vld [vmem:[#allocation14 + $0x244] sm:$0xf]
    %v5400 = vld [vmem:[#allocation14 + $0x248] sm:$0xf]
    %v5401 = vld [vmem:[#allocation14 + $0x24c] sm:$0xf]
    %v5402 = vld [vmem:[#allocation14 + $0x250] sm:$0xf]
    %v5403 = vld [vmem:[#allocation14 + $0x254] sm:$0xf]
    %v5404 = vld [vmem:[#allocation14 + $0x258] sm:$0xf]
    %v5405 = vld [vmem:[#allocation14 + $0x25c] sm:$0xf]
    %v5406 = vld [vmem:[#allocation14 + $0x260] sm:$0xf]
    %v5407 = vld [vmem:[#allocation14 + $0x264] sm:$0xf]
    %v5408 = vld [vmem:[#allocation14 + $0x268] sm:$0xf]
    %v5409 = vld [vmem:[#allocation14 + $0x26c] sm:$0xf]
    %v5410 = vld [vmem:[#allocation14 + $0x270] sm:$0xf]
    %v5411 = vld [vmem:[#allocation14 + $0x274] sm:$0xf]
    %v5412 = vld [vmem:[#allocation14 + $0x278] sm:$0xf]
    %v5413 = vld [vmem:[#allocation14 + $0x27c] sm:$0xf]
    %v5414 = vld [vmem:[#allocation14 + $0x280] sm:$0xf]
    %v5415 = vld [vmem:[#allocation14 + $0x284] sm:$0xf]
    %v5416 = vld [vmem:[#allocation14 + $0x288] sm:$0xf]
    %v5417 = vld [vmem:[#allocation14 + $0x28c] sm:$0xf]
    %v5418 = vld [vmem:[#allocation14 + $0x290] sm:$0xf]
    %v5419 = vld [vmem:[#allocation14 + $0x294] sm:$0xf]
    %v5420 = vld [vmem:[#allocation14 + $0x298] sm:$0xf]
    %v5421 = vld [vmem:[#allocation14 + $0x29c] sm:$0xf]
    %v5422 = vld [vmem:[#allocation14 + $0x2a0] sm:$0xf]
    %v5423 = vld [vmem:[#allocation14 + $0x2a4] sm:$0xf]
    %v5424 = vld [vmem:[#allocation14 + $0x2a8] sm:$0xf]
    %v5425 = vld [vmem:[#allocation14 + $0x2ac] sm:$0xf]
    %v5426 = vld [vmem:[#allocation14 + $0x2b0] sm:$0xf]
    %v5427 = vld [vmem:[#allocation14 + $0x2b4] sm:$0xf]
    %v5428 = vld [vmem:[#allocation14 + $0x2b8] sm:$0xf]
    %v5429 = vld [vmem:[#allocation14 + $0x2bc] sm:$0xf]
    %v5430 = vld [vmem:[#allocation14 + $0x2c0] sm:$0xf]
    %v5431 = vld [vmem:[#allocation14 + $0x2c4] sm:$0xf]
    %v5432 = vld [vmem:[#allocation14 + $0x2c8] sm:$0xf]
    %v5433 = vld [vmem:[#allocation14 + $0x2cc] sm:$0xf]
    %v5434 = vld [vmem:[#allocation14 + $0x2d0] sm:$0xf]
    %v5435 = vld [vmem:[#allocation14 + $0x2d4] sm:$0xf]
    %v5436 = vld [vmem:[#allocation14 + $0x2d8] sm:$0xf]
    %v5437 = vld [vmem:[#allocation14 + $0x2dc] sm:$0xf]
    %v5438 = vld [vmem:[#allocation14 + $0x2e0] sm:$0xf]
    %v5439 = vld [vmem:[#allocation14 + $0x2e4] sm:$0xf]
    %v5440 = vld [vmem:[#allocation14 + $0x2e8] sm:$0xf]
    %v5441 = vld [vmem:[#allocation14 + $0x2ec] sm:$0xf]
    %v5442 = vld [vmem:[#allocation14 + $0x2f0] sm:$0xf]
    %v5443 = vld [vmem:[#allocation14 + $0x2f4] sm:$0xf]
    %v5444 = vld [vmem:[#allocation14 + $0x2f8] sm:$0xf]
    %v5445 = vld [vmem:[#allocation14 + $0x2fc] sm:$0xf]
    %v5446 = vld [vmem:[#allocation14 + $0x300] sm:$0xf]
    %v5447 = vld [vmem:[#allocation14 + $0x304] sm:$0xf]
    %v5448 = vld [vmem:[#allocation14 + $0x308] sm:$0xf]
    %v5449 = vld [vmem:[#allocation14 + $0x30c] sm:$0xf]
    %v5450 = vld [vmem:[#allocation14 + $0x310] sm:$0xf]
    %v5451 = vld [vmem:[#allocation14 + $0x314] sm:$0xf]
    %v5452 = vld [vmem:[#allocation14 + $0x318] sm:$0xf]
    %v5453 = vld [vmem:[#allocation14 + $0x31c] sm:$0xf]
    %v5454 = vld [vmem:[#allocation14 + $0x320] sm:$0xf]
    %v5455 = vld [vmem:[#allocation14 + $0x324] sm:$0xf]
    %v5456 = vld [vmem:[#allocation14 + $0x328] sm:$0xf]
    %v5457 = vld [vmem:[#allocation14 + $0x32c] sm:$0xf]
    %v5458 = vld [vmem:[#allocation14 + $0x330] sm:$0xf]
    %v5459 = vld [vmem:[#allocation14 + $0x334] sm:$0xf]
    %v5460 = vld [vmem:[#allocation14 + $0x338] sm:$0xf]
    %v5461 = vld [vmem:[#allocation14 + $0x33c] sm:$0xf]
    %v5462 = vld [vmem:[#allocation14 + $0x340] sm:$0xf]
    %v5463 = vld [vmem:[#allocation14 + $0x344] sm:$0xf]
    %v5464 = vld [vmem:[#allocation14 + $0x348] sm:$0xf]
    %v5465 = vld [vmem:[#allocation14 + $0x34c] sm:$0xf]
    %v5466 = vld [vmem:[#allocation14 + $0x350] sm:$0xf]
    %v5467 = vld [vmem:[#allocation14 + $0x354] sm:$0xf]
    %v5468 = vld [vmem:[#allocation14 + $0x358] sm:$0xf]
    %v5469 = vld [vmem:[#allocation14 + $0x35c] sm:$0xf]
    %v5470 = vld [vmem:[#allocation14 + $0x360] sm:$0xf]
    %v5471 = vld [vmem:[#allocation14 + $0x364] sm:$0xf]
    %v5472 = vld [vmem:[#allocation14 + $0x368] sm:$0xf]
    %v5473 = vld [vmem:[#allocation14 + $0x36c] sm:$0xf]
    %v5474 = vld [vmem:[#allocation14 + $0x370] sm:$0xf]
    %v5475 = vld [vmem:[#allocation14 + $0x374] sm:$0xf]
    %v5476 = vld [vmem:[#allocation14 + $0x378] sm:$0xf]
    %v5477 = vld [vmem:[#allocation14 + $0x37c] sm:$0xf]
    %v5478 = vld [vmem:[#allocation14 + $0x380] sm:$0xf]
    %v5479 = vld [vmem:[#allocation14 + $0x384] sm:$0xf]
    %v5480 = vld [vmem:[#allocation14 + $0x388] sm:$0xf]
    %v5481 = vld [vmem:[#allocation14 + $0x38c] sm:$0xf]
    %v5482 = vld [vmem:[#allocation14 + $0x390] sm:$0xf]
    %v5483 = vld [vmem:[#allocation14 + $0x394] sm:$0xf]
    %v5484 = vld [vmem:[#allocation14 + $0x398] sm:$0xf]
    %v5485 = vld [vmem:[#allocation14 + $0x39c] sm:$0xf]
    %v5486 = vld [vmem:[#allocation14 + $0x3a0] sm:$0xf]
    %v5487 = vld [vmem:[#allocation14 + $0x3a4] sm:$0xf]
    %v5488 = vld [vmem:[#allocation14 + $0x3a8] sm:$0xf]
    %v5489 = vld [vmem:[#allocation14 + $0x3ac] sm:$0xf]
    %v5490 = vld [vmem:[#allocation14 + $0x3b0] sm:$0xf]
    %v5491 = vld [vmem:[#allocation14 + $0x3b4] sm:$0xf]
    %v5492 = vld [vmem:[#allocation14 + $0x3b8] sm:$0xf]
    %v5493 = vld [vmem:[#allocation14 + $0x3bc] sm:$0xf]
    %v5494 = vld [vmem:[#allocation14 + $0x3c0] sm:$0xf]
    %v5495 = vld [vmem:[#allocation14 + $0x3c4] sm:$0xf]
    %v5496 = vld [vmem:[#allocation14 + $0x3c8] sm:$0xf]
    %v5497 = vld [vmem:[#allocation14 + $0x3cc] sm:$0xf]
    %v5498 = vld [vmem:[#allocation14 + $0x3d0] sm:$0xf]
    %v5499 = vld [vmem:[#allocation14 + $0x3d4] sm:$0xf]
    %v5500 = vld [vmem:[#allocation14 + $0x3d8] sm:$0xf]
    %v5501 = vld [vmem:[#allocation14 + $0x3dc] sm:$0xf]
    %v5502 = vld [vmem:[#allocation14 + $0x3e0] sm:$0xf]
    %v5503 = vld [vmem:[#allocation14 + $0x3e4] sm:$0xf]
    %v5504 = vld [vmem:[#allocation14 + $0x3e8] sm:$0xf]
    %v5505 = vld [vmem:[#allocation14 + $0x3ec] sm:$0xf]
    %v5506 = vld [vmem:[#allocation14 + $0x3f0] sm:$0xf]
    %v5507 = vld [vmem:[#allocation14 + $0x3f4] sm:$0xf]
    %v5508 = vld [vmem:[#allocation14 + $0x3f8] sm:$0xf]
    %v5509 = vld [vmem:[#allocation14 + $0x3fc] sm:$0xf]
    %v5510 = vld [vmem:[#allocation16] sm:$0x1]
    %v5512 = vperm.slane %v5510, 0
    %v5770 = vunpack.c.l.b16 %v5254
    %v5771 = vunpack.c.l.b16 %v5255
    %v5772 = vunpack.c.l.b16 %v5256
    %v5773 = vunpack.c.l.b16 %v5257
    %v5774 = vunpack.c.l.b16 %v5258
    %v5775 = vunpack.c.l.b16 %v5259
    %v5776 = vunpack.c.l.b16 %v5260
    %v5777 = vunpack.c.l.b16 %v5261
    %v5778 = vunpack.c.l.b16 %v5262
    %v5779 = vunpack.c.l.b16 %v5263
    %v5780 = vunpack.c.l.b16 %v5264
    %v5781 = vunpack.c.l.b16 %v5265
    %v5782 = vunpack.c.l.b16 %v5266
    %v5783 = vunpack.c.l.b16 %v5267
    %v5784 = vunpack.c.l.b16 %v5268
    %v5785 = vunpack.c.l.b16 %v5269
    %v5786 = vunpack.c.l.b16 %v5270
    %v5787 = vunpack.c.l.b16 %v5271
    %v5788 = vunpack.c.l.b16 %v5272
    %v5789 = vunpack.c.l.b16 %v5273
    %v5790 = vunpack.c.l.b16 %v5274
    %v5791 = vunpack.c.l.b16 %v5275
    %v5792 = vunpack.c.l.b16 %v5276
    %v5793 = vunpack.c.l.b16 %v5277
    %v5794 = vunpack.c.l.b16 %v5278
    %v5795 = vunpack.c.l.b16 %v5279
    %v5796 = vunpack.c.l.b16 %v5280
    %v5797 = vunpack.c.l.b16 %v5281
    %v5798 = vunpack.c.l.b16 %v5282
    %v5799 = vunpack.c.l.b16 %v5283
    %v5800 = vunpack.c.l.b16 %v5284
    %v5801 = vunpack.c.l.b16 %v5285
    %v5802 = vunpack.c.l.b16 %v5286
    %v5803 = vunpack.c.l.b16 %v5287
    %v5804 = vunpack.c.l.b16 %v5288
    %v5805 = vunpack.c.l.b16 %v5289
    %v5806 = vunpack.c.l.b16 %v5290
    %v5807 = vunpack.c.l.b16 %v5291
    %v5808 = vunpack.c.l.b16 %v5292
    %v5809 = vunpack.c.l.b16 %v5293
    %v5810 = vunpack.c.l.b16 %v5294
    %v5811 = vunpack.c.l.b16 %v5295
    %v5812 = vunpack.c.l.b16 %v5296
    %v5813 = vunpack.c.l.b16 %v5297
    %v5814 = vunpack.c.l.b16 %v5298
    %v5815 = vunpack.c.l.b16 %v5299
    %v5816 = vunpack.c.l.b16 %v5300
    %v5817 = vunpack.c.l.b16 %v5301
    %v5818 = vunpack.c.l.b16 %v5302
    %v5819 = vunpack.c.l.b16 %v5303
    %v5820 = vunpack.c.l.b16 %v5304
    %v5821 = vunpack.c.l.b16 %v5305
    %v5822 = vunpack.c.l.b16 %v5306
    %v5823 = vunpack.c.l.b16 %v5307
    %v5824 = vunpack.c.l.b16 %v5308
    %v5825 = vunpack.c.l.b16 %v5309
    %v5826 = vunpack.c.l.b16 %v5310
    %v5827 = vunpack.c.l.b16 %v5311
    %v5828 = vunpack.c.l.b16 %v5312
    %v5829 = vunpack.c.l.b16 %v5313
    %v5830 = vunpack.c.l.b16 %v5314
    %v5831 = vunpack.c.l.b16 %v5315
    %v5832 = vunpack.c.l.b16 %v5316
    %v5833 = vunpack.c.l.b16 %v5317
    %v5834 = vunpack.c.l.b16 %v5318
    %v5835 = vunpack.c.l.b16 %v5319
    %v5836 = vunpack.c.l.b16 %v5320
    %v5837 = vunpack.c.l.b16 %v5321
    %v5838 = vunpack.c.l.b16 %v5322
    %v5839 = vunpack.c.l.b16 %v5323
    %v5840 = vunpack.c.l.b16 %v5324
    %v5841 = vunpack.c.l.b16 %v5325
    %v5842 = vunpack.c.l.b16 %v5326
    %v5843 = vunpack.c.l.b16 %v5327
    %v5844 = vunpack.c.l.b16 %v5328
    %v5845 = vunpack.c.l.b16 %v5329
    %v5846 = vunpack.c.l.b16 %v5330
    %v5847 = vunpack.c.l.b16 %v5331
    %v5848 = vunpack.c.l.b16 %v5332
    %v5849 = vunpack.c.l.b16 %v5333
    %v5850 = vunpack.c.l.b16 %v5334
    %v5851 = vunpack.c.l.b16 %v5335
    %v5852 = vunpack.c.l.b16 %v5336
    %v5853 = vunpack.c.l.b16 %v5337
    %v5854 = vunpack.c.l.b16 %v5338
    %v5855 = vunpack.c.l.b16 %v5339
    %v5856 = vunpack.c.l.b16 %v5340
    %v5857 = vunpack.c.l.b16 %v5341
    %v5858 = vunpack.c.l.b16 %v5342
    %v5859 = vunpack.c.l.b16 %v5343
    %v5860 = vunpack.c.l.b16 %v5344
    %v5861 = vunpack.c.l.b16 %v5345
    %v5862 = vunpack.c.l.b16 %v5346
    %v5863 = vunpack.c.l.b16 %v5347
    %v5864 = vunpack.c.l.b16 %v5348
    %v5865 = vunpack.c.l.b16 %v5349
    %v5866 = vunpack.c.l.b16 %v5350
    %v5867 = vunpack.c.l.b16 %v5351
    %v5868 = vunpack.c.l.b16 %v5352
    %v5869 = vunpack.c.l.b16 %v5353
    %v5870 = vunpack.c.l.b16 %v5354
    %v5871 = vunpack.c.l.b16 %v5355
    %v5872 = vunpack.c.l.b16 %v5356
    %v5873 = vunpack.c.l.b16 %v5357
    %v5874 = vunpack.c.l.b16 %v5358
    %v5875 = vunpack.c.l.b16 %v5359
    %v5876 = vunpack.c.l.b16 %v5360
    %v5877 = vunpack.c.l.b16 %v5361
    %v5878 = vunpack.c.l.b16 %v5362
    %v5879 = vunpack.c.l.b16 %v5363
    %v5880 = vunpack.c.l.b16 %v5364
    %v5881 = vunpack.c.l.b16 %v5365
    %v5882 = vunpack.c.l.b16 %v5366
    %v5883 = vunpack.c.l.b16 %v5367
    %v5884 = vunpack.c.l.b16 %v5368
    %v5885 = vunpack.c.l.b16 %v5369
    %v5886 = vunpack.c.l.b16 %v5370
    %v5887 = vunpack.c.l.b16 %v5371
    %v5888 = vunpack.c.l.b16 %v5372
    %v5889 = vunpack.c.l.b16 %v5373
    %v5890 = vunpack.c.l.b16 %v5374
    %v5891 = vunpack.c.l.b16 %v5375
    %v5892 = vunpack.c.l.b16 %v5376
    %v5893 = vunpack.c.l.b16 %v5377
    %v5894 = vunpack.c.l.b16 %v5378
    %v5895 = vunpack.c.l.b16 %v5379
    %v5896 = vunpack.c.l.b16 %v5380
    %v5897 = vunpack.c.l.b16 %v5381
    %v5898 = vunpack.c.l.b16 %v5382
    %v5899 = vunpack.c.l.b16 %v5383
    %v5900 = vunpack.c.l.b16 %v5384
    %v5901 = vunpack.c.l.b16 %v5385
    %v5902 = vunpack.c.l.b16 %v5386
    %v5903 = vunpack.c.l.b16 %v5387
    %v5904 = vunpack.c.l.b16 %v5388
    %v5905 = vunpack.c.l.b16 %v5389
    %v5906 = vunpack.c.l.b16 %v5390
    %v5907 = vunpack.c.l.b16 %v5391
    %v5908 = vunpack.c.l.b16 %v5392
    %v5909 = vunpack.c.l.b16 %v5393
    %v5910 = vunpack.c.l.b16 %v5394
    %v5911 = vunpack.c.l.b16 %v5395
    %v5912 = vunpack.c.l.b16 %v5396
    %v5913 = vunpack.c.l.b16 %v5397
    %v5914 = vunpack.c.l.b16 %v5398
    %v5915 = vunpack.c.l.b16 %v5399
    %v5916 = vunpack.c.l.b16 %v5400
    %v5917 = vunpack.c.l.b16 %v5401
    %v5918 = vunpack.c.l.b16 %v5402
    %v5919 = vunpack.c.l.b16 %v5403
    %v5920 = vunpack.c.l.b16 %v5404
    %v5921 = vunpack.c.l.b16 %v5405
    %v5922 = vunpack.c.l.b16 %v5406
    %v5923 = vunpack.c.l.b16 %v5407
    %v5924 = vunpack.c.l.b16 %v5408
    %v5925 = vunpack.c.l.b16 %v5409
    %v5926 = vunpack.c.l.b16 %v5410
    %v5927 = vunpack.c.l.b16 %v5411
    %v5928 = vunpack.c.l.b16 %v5412
    %v5929 = vunpack.c.l.b16 %v5413
    %v5930 = vunpack.c.l.b16 %v5414
    %v5931 = vunpack.c.l.b16 %v5415
    %v5932 = vunpack.c.l.b16 %v5416
    %v5933 = vunpack.c.l.b16 %v5417
    %v5934 = vunpack.c.l.b16 %v5418
    %v5935 = vunpack.c.l.b16 %v5419
    %v5936 = vunpack.c.l.b16 %v5420
    %v5937 = vunpack.c.l.b16 %v5421
    %v5938 = vunpack.c.l.b16 %v5422
    %v5939 = vunpack.c.l.b16 %v5423
    %v5940 = vunpack.c.l.b16 %v5424
    %v5941 = vunpack.c.l.b16 %v5425
    %v5942 = vunpack.c.l.b16 %v5426
    %v5943 = vunpack.c.l.b16 %v5427
    %v5944 = vunpack.c.l.b16 %v5428
    %v5945 = vunpack.c.l.b16 %v5429
    %v5946 = vunpack.c.l.b16 %v5430
    %v5947 = vunpack.c.l.b16 %v5431
    %v5948 = vunpack.c.l.b16 %v5432
    %v5949 = vunpack.c.l.b16 %v5433
    %v5950 = vunpack.c.l.b16 %v5434
    %v5951 = vunpack.c.l.b16 %v5435
    %v5952 = vunpack.c.l.b16 %v5436
    %v5953 = vunpack.c.l.b16 %v5437
    %v5954 = vunpack.c.l.b16 %v5438
    %v5955 = vunpack.c.l.b16 %v5439
    %v5956 = vunpack.c.l.b16 %v5440
    %v5957 = vunpack.c.l.b16 %v5441
    %v5958 = vunpack.c.l.b16 %v5442
    %v5959 = vunpack.c.l.b16 %v5443
    %v5960 = vunpack.c.l.b16 %v5444
    %v5961 = vunpack.c.l.b16 %v5445
    %v5962 = vunpack.c.l.b16 %v5446
    %v5963 = vunpack.c.l.b16 %v5447
    %v5964 = vunpack.c.l.b16 %v5448
    %v5965 = vunpack.c.l.b16 %v5449
    %v5966 = vunpack.c.l.b16 %v5450
    %v5967 = vunpack.c.l.b16 %v5451
    %v5968 = vunpack.c.l.b16 %v5452
    %v5969 = vunpack.c.l.b16 %v5453
    %v5970 = vunpack.c.l.b16 %v5454
    %v5971 = vunpack.c.l.b16 %v5455
    %v5972 = vunpack.c.l.b16 %v5456
    %v5973 = vunpack.c.l.b16 %v5457
    %v5974 = vunpack.c.l.b16 %v5458
    %v5975 = vunpack.c.l.b16 %v5459
    %v5976 = vunpack.c.l.b16 %v5460
    %v5977 = vunpack.c.l.b16 %v5461
    %v5978 = vunpack.c.l.b16 %v5462
    %v5979 = vunpack.c.l.b16 %v5463
    %v5980 = vunpack.c.l.b16 %v5464
    %v5981 = vunpack.c.l.b16 %v5465
    %v5982 = vunpack.c.l.b16 %v5466
    %v5983 = vunpack.c.l.b16 %v5467
    %v5984 = vunpack.c.l.b16 %v5468
    %v5985 = vunpack.c.l.b16 %v5469
    %v5986 = vunpack.c.l.b16 %v5470
    %v5987 = vunpack.c.l.b16 %v5471
    %v5988 = vunpack.c.l.b16 %v5472
    %v5989 = vunpack.c.l.b16 %v5473
    %v5990 = vunpack.c.l.b16 %v5474
    %v5991 = vunpack.c.l.b16 %v5475
    %v5992 = vunpack.c.l.b16 %v5476
    %v5993 = vunpack.c.l.b16 %v5477
    %v5994 = vunpack.c.l.b16 %v5478
    %v5995 = vunpack.c.l.b16 %v5479
    %v5996 = vunpack.c.l.b16 %v5480
    %v5997 = vunpack.c.l.b16 %v5481
    %v5998 = vunpack.c.l.b16 %v5482
    %v5999 = vunpack.c.l.b16 %v5483
    %v6000 = vunpack.c.l.b16 %v5484
    %v6001 = vunpack.c.l.b16 %v5485
    %v6002 = vunpack.c.l.b16 %v5486
    %v6003 = vunpack.c.l.b16 %v5487
    %v6004 = vunpack.c.l.b16 %v5488
    %v6005 = vunpack.c.l.b16 %v5489
    %v6006 = vunpack.c.l.b16 %v5490
    %v6007 = vunpack.c.l.b16 %v5491
    %v6008 = vunpack.c.l.b16 %v5492
    %v6009 = vunpack.c.l.b16 %v5493
    %v6010 = vunpack.c.l.b16 %v5494
    %v6011 = vunpack.c.l.b16 %v5495
    %v6012 = vunpack.c.l.b16 %v5496
    %v6013 = vunpack.c.l.b16 %v5497
    %v6014 = vunpack.c.l.b16 %v5498
    %v6015 = vunpack.c.l.b16 %v5499
    %v6016 = vunpack.c.l.b16 %v5500
    %v6017 = vunpack.c.l.b16 %v5501
    %v6018 = vunpack.c.l.b16 %v5502
    %v6019 = vunpack.c.l.b16 %v5503
    %v6020 = vunpack.c.l.b16 %v5504
    %v6021 = vunpack.c.l.b16 %v5505
    %v6022 = vunpack.c.l.b16 %v5506
    %v6023 = vunpack.c.l.b16 %v5507
    %v6024 = vunpack.c.l.b16 %v5508
    %v6025 = vunpack.c.l.b16 %v5509
    %v6026 = vpack.c.b16 %v5771, %v5770
    %v6027 = vpack.c.b16 %v5773, %v5772
    %v6028 = vpack.c.b16 %v5775, %v5774
    %v6029 = vpack.c.b16 %v5777, %v5776
    %v6030 = vpack.c.b16 %v5779, %v5778
    %v6031 = vpack.c.b16 %v5781, %v5780
    %v6032 = vpack.c.b16 %v5783, %v5782
    %v6033 = vpack.c.b16 %v5785, %v5784
    %v6034 = vpack.c.b16 %v5787, %v5786
    %v6035 = vpack.c.b16 %v5789, %v5788
    %v6036 = vpack.c.b16 %v5791, %v5790
    %v6037 = vpack.c.b16 %v5793, %v5792
    %v6038 = vpack.c.b16 %v5795, %v5794
    %v6039 = vpack.c.b16 %v5797, %v5796
    %v6040 = vpack.c.b16 %v5799, %v5798
    %v6041 = vpack.c.b16 %v5801, %v5800
    %v6042 = vpack.c.b16 %v5803, %v5802
    %v6043 = vpack.c.b16 %v5805, %v5804
    %v6044 = vpack.c.b16 %v5807, %v5806
    %v6045 = vpack.c.b16 %v5809, %v5808
    %v6046 = vpack.c.b16 %v5811, %v5810
    %v6047 = vpack.c.b16 %v5813, %v5812
    %v6048 = vpack.c.b16 %v5815, %v5814
    %v6049 = vpack.c.b16 %v5817, %v5816
    %v6050 = vpack.c.b16 %v5819, %v5818
    %v6051 = vpack.c.b16 %v5821, %v5820
    %v6052 = vpack.c.b16 %v5823, %v5822
    %v6053 = vpack.c.b16 %v5825, %v5824
    %v6054 = vpack.c.b16 %v5827, %v5826
    %v6055 = vpack.c.b16 %v5829, %v5828
    %v6056 = vpack.c.b16 %v5831, %v5830
    %v6057 = vpack.c.b16 %v5833, %v5832
    %v6058 = vpack.c.b16 %v5835, %v5834
    %v6059 = vpack.c.b16 %v5837, %v5836
    %v6060 = vpack.c.b16 %v5839, %v5838
    %v6061 = vpack.c.b16 %v5841, %v5840
    %v6062 = vpack.c.b16 %v5843, %v5842
    %v6063 = vpack.c.b16 %v5845, %v5844
    %v6064 = vpack.c.b16 %v5847, %v5846
    %v6065 = vpack.c.b16 %v5849, %v5848
    %v6066 = vpack.c.b16 %v5851, %v5850
    %v6067 = vpack.c.b16 %v5853, %v5852
    %v6068 = vpack.c.b16 %v5855, %v5854
    %v6069 = vpack.c.b16 %v5857, %v5856
    %v6070 = vpack.c.b16 %v5859, %v5858
    %v6071 = vpack.c.b16 %v5861, %v5860
    %v6072 = vpack.c.b16 %v5863, %v5862
    %v6073 = vpack.c.b16 %v5865, %v5864
    %v6074 = vpack.c.b16 %v5867, %v5866
    %v6075 = vpack.c.b16 %v5869, %v5868
    %v6076 = vpack.c.b16 %v5871, %v5870
    %v6077 = vpack.c.b16 %v5873, %v5872
    %v6078 = vpack.c.b16 %v5875, %v5874
    %v6079 = vpack.c.b16 %v5877, %v5876
    %v6080 = vpack.c.b16 %v5879, %v5878
    %v6081 = vpack.c.b16 %v5881, %v5880
    %v6082 = vpack.c.b16 %v5883, %v5882
    %v6083 = vpack.c.b16 %v5885, %v5884
    %v6084 = vpack.c.b16 %v5887, %v5886
    %v6085 = vpack.c.b16 %v5889, %v5888
    %v6086 = vpack.c.b16 %v5891, %v5890
    %v6087 = vpack.c.b16 %v5893, %v5892
    %v6088 = vpack.c.b16 %v5895, %v5894
    %v6089 = vpack.c.b16 %v5897, %v5896
    %v6090 = vpack.c.b16 %v5899, %v5898
    %v6091 = vpack.c.b16 %v5901, %v5900
    %v6092 = vpack.c.b16 %v5903, %v5902
    %v6093 = vpack.c.b16 %v5905, %v5904
    %v6094 = vpack.c.b16 %v5907, %v5906
    %v6095 = vpack.c.b16 %v5909, %v5908
    %v6096 = vpack.c.b16 %v5911, %v5910
    %v6097 = vpack.c.b16 %v5913, %v5912
    %v6098 = vpack.c.b16 %v5915, %v5914
    %v6099 = vpack.c.b16 %v5917, %v5916
    %v6100 = vpack.c.b16 %v5919, %v5918
    %v6101 = vpack.c.b16 %v5921, %v5920
    %v6102 = vpack.c.b16 %v5923, %v5922
    %v6103 = vpack.c.b16 %v5925, %v5924
    %v6104 = vpack.c.b16 %v5927, %v5926
    %v6105 = vpack.c.b16 %v5929, %v5928
    %v6106 = vpack.c.b16 %v5931, %v5930
    %v6107 = vpack.c.b16 %v5933, %v5932
    %v6108 = vpack.c.b16 %v5935, %v5934
    %v6109 = vpack.c.b16 %v5937, %v5936
    %v6110 = vpack.c.b16 %v5939, %v5938
    %v6111 = vpack.c.b16 %v5941, %v5940
    %v6112 = vpack.c.b16 %v5943, %v5942
    %v6113 = vpack.c.b16 %v5945, %v5944
    %v6114 = vpack.c.b16 %v5947, %v5946
    %v6115 = vpack.c.b16 %v5949, %v5948
    %v6116 = vpack.c.b16 %v5951, %v5950
    %v6117 = vpack.c.b16 %v5953, %v5952
    %v6118 = vpack.c.b16 %v5955, %v5954
    %v6119 = vpack.c.b16 %v5957, %v5956
    %v6120 = vpack.c.b16 %v5959, %v5958
    %v6121 = vpack.c.b16 %v5961, %v5960
    %v6122 = vpack.c.b16 %v5963, %v5962
    %v6123 = vpack.c.b16 %v5965, %v5964
    %v6124 = vpack.c.b16 %v5967, %v5966
    %v6125 = vpack.c.b16 %v5969, %v5968
    %v6126 = vpack.c.b16 %v5971, %v5970
    %v6127 = vpack.c.b16 %v5973, %v5972
    %v6128 = vpack.c.b16 %v5975, %v5974
    %v6129 = vpack.c.b16 %v5977, %v5976
    %v6130 = vpack.c.b16 %v5979, %v5978
    %v6131 = vpack.c.b16 %v5981, %v5980
    %v6132 = vpack.c.b16 %v5983, %v5982
    %v6133 = vpack.c.b16 %v5985, %v5984
    %v6134 = vpack.c.b16 %v5987, %v5986
    %v6135 = vpack.c.b16 %v5989, %v5988
    %v6136 = vpack.c.b16 %v5991, %v5990
    %v6137 = vpack.c.b16 %v5993, %v5992
    %v6138 = vpack.c.b16 %v5995, %v5994
    %v6139 = vpack.c.b16 %v5997, %v5996
    %v6140 = vpack.c.b16 %v5999, %v5998
    %v6141 = vpack.c.b16 %v6001, %v6000
    %v6142 = vpack.c.b16 %v6003, %v6002
    %v6143 = vpack.c.b16 %v6005, %v6004
    %v6144 = vpack.c.b16 %v6007, %v6006
    %v6145 = vpack.c.b16 %v6009, %v6008
    %v6146 = vpack.c.b16 %v6011, %v6010
    %v6147 = vpack.c.b16 %v6013, %v6012
    %v6148 = vpack.c.b16 %v6015, %v6014
    %v6149 = vpack.c.b16 %v6017, %v6016
    %v6150 = vpack.c.b16 %v6019, %v6018
    %v6151 = vpack.c.b16 %v6021, %v6020
    %v6152 = vpack.c.b16 %v6023, %v6022
    %v6153 = vpack.c.b16 %v6025, %v6024
    %6282 = vmatpush.bf16.msra.mxu0 %v6033
    %6283 = vmatpush.bf16.msra.mxu0 %v6032
    %6284 = vmatpush.bf16.msra.mxu0 %v6031
    %6285 = vmatpush.bf16.msra.mxu0 %v6030
    %6286 = vmatpush.bf16.msra.mxu0 %v6029
    %6287 = vmatpush.bf16.msra.mxu0 %v6028
    %6288 = vmatpush.bf16.msra.mxu0 %v6027
    %6289 = vmatpush.bf16.msra.mxu0 %v6026
    %6290 = vmatmul.bf16.gmra.mxu0 %v5238
    %v6291 = vpop.f32.mrf.mxu0
    %v6292 = vadd.f32 %v5512, %v6291
    %v6293 = vpop.f32.mrf.mxu0
    %6294 = vdwg.mxu0
    %6295 = vmatpush.bf16.msra.mxu0 %v6041
    %6296 = vmatpush.bf16.msra.mxu0 %v6040
    %6297 = vmatpush.bf16.msra.mxu0 %v6039
    %6298 = vmatpush.bf16.msra.mxu0 %v6038
    %6299 = vmatpush.bf16.msra.mxu0 %v6037
    %6300 = vmatpush.bf16.msra.mxu0 %v6036
    %6301 = vmatpush.bf16.msra.mxu0 %v6035
    %6302 = vmatpush.bf16.msra.mxu0 %v6034
    %6303 = vmatmul.bf16.gmra.mxu0 %v5239
    %v6304 = vpop.f32.mrf.mxu0
    %v6305 = vadd.f32 %v6292, %v6304
    %v6306 = vpop.f32.mrf.mxu0
    %6307 = vdwg.mxu0
    %6308 = vmatpush.bf16.msra.mxu0 %v6049
    %6309 = vmatpush.bf16.msra.mxu0 %v6048
    %6310 = vmatpush.bf16.msra.mxu0 %v6047
    %6311 = vmatpush.bf16.msra.mxu0 %v6046
    %6312 = vmatpush.bf16.msra.mxu0 %v6045
    %6313 = vmatpush.bf16.msra.mxu0 %v6044
    %6314 = vmatpush.bf16.msra.mxu0 %v6043
    %6315 = vmatpush.bf16.msra.mxu0 %v6042
    %6316 = vmatmul.bf16.gmra.mxu0 %v5240
    %v6317 = vpop.f32.mrf.mxu0
    %v6318 = vadd.f32 %v6305, %v6317
    %v6319 = vpop.f32.mrf.mxu0
    %6320 = vdwg.mxu0
    %6321 = vmatpush.bf16.msra.mxu0 %v6057
    %6322 = vmatpush.bf16.msra.mxu0 %v6056
    %6323 = vmatpush.bf16.msra.mxu0 %v6055
    %6324 = vmatpush.bf16.msra.mxu0 %v6054
    %6325 = vmatpush.bf16.msra.mxu0 %v6053
    %6326 = vmatpush.bf16.msra.mxu0 %v6052
    %6327 = vmatpush.bf16.msra.mxu0 %v6051
    %6328 = vmatpush.bf16.msra.mxu0 %v6050
    %6329 = vmatmul.bf16.gmra.mxu0 %v5241
    %v6330 = vpop.f32.mrf.mxu0
    %v6331 = vadd.f32 %v6318, %v6330
    %v6332 = vpop.f32.mrf.mxu0
    %6333 = vdwg.mxu0
    %6334 = vmatpush.bf16.msra.mxu0 %v6065
    %6335 = vmatpush.bf16.msra.mxu0 %v6064
    %6336 = vmatpush.bf16.msra.mxu0 %v6063
    %6337 = vmatpush.bf16.msra.mxu0 %v6062
    %6338 = vmatpush.bf16.msra.mxu0 %v6061
    %6339 = vmatpush.bf16.msra.mxu0 %v6060
    %6340 = vmatpush.bf16.msra.mxu0 %v6059
    %6341 = vmatpush.bf16.msra.mxu0 %v6058
    %6342 = vmatmul.bf16.gmra.mxu0 %v5242
    %v6343 = vpop.f32.mrf.mxu0
    %v6344 = vadd.f32 %v6331, %v6343
    %v6345 = vpop.f32.mrf.mxu0
    %6346 = vdwg.mxu0
    %6347 = vmatpush.bf16.msra.mxu0 %v6073
    %6348 = vmatpush.bf16.msra.mxu0 %v6072
    %6349 = vmatpush.bf16.msra.mxu0 %v6071
    %6350 = vmatpush.bf16.msra.mxu0 %v6070
    %6351 = vmatpush.bf16.msra.mxu0 %v6069
    %6352 = vmatpush.bf16.msra.mxu0 %v6068
    %6353 = vmatpush.bf16.msra.mxu0 %v6067
    %6354 = vmatpush.bf16.msra.mxu0 %v6066
    %6355 = vmatmul.bf16.gmra.mxu0 %v5243
    %v6356 = vpop.f32.mrf.mxu0
    %v6357 = vadd.f32 %v6344, %v6356
    %v6358 = vpop.f32.mrf.mxu0
    %6359 = vdwg.mxu0
    %6360 = vmatpush.bf16.msra.mxu0 %v6081
    %6361 = vmatpush.bf16.msra.mxu0 %v6080
    %6362 = vmatpush.bf16.msra.mxu0 %v6079
    %6363 = vmatpush.bf16.msra.mxu0 %v6078
    %6364 = vmatpush.bf16.msra.mxu0 %v6077
    %6365 = vmatpush.bf16.msra.mxu0 %v6076
    %6366 = vmatpush.bf16.msra.mxu0 %v6075
    %6367 = vmatpush.bf16.msra.mxu0 %v6074
    %6368 = vmatmul.bf16.gmra.mxu0 %v5244
    %v6369 = vpop.f32.mrf.mxu0
    %v6370 = vadd.f32 %v6357, %v6369
    %v6371 = vpop.f32.mrf.mxu0
    %6372 = vdwg.mxu0
    %6373 = vmatpush.bf16.msra.mxu0 %v6089
    %6374 = vmatpush.bf16.msra.mxu0 %v6088
    %6375 = vmatpush.bf16.msra.mxu0 %v6087
    %6376 = vmatpush.bf16.msra.mxu0 %v6086
    %6377 = vmatpush.bf16.msra.mxu0 %v6085
    %6378 = vmatpush.bf16.msra.mxu0 %v6084
    %6379 = vmatpush.bf16.msra.mxu0 %v6083
    %6380 = vmatpush.bf16.msra.mxu0 %v6082
    %6381 = vmatmul.bf16.gmra.mxu0 %v5245
    %v6382 = vpop.f32.mrf.mxu0
    %v6383 = vadd.f32 %v6370, %v6382
    %v6384 = vpop.f32.mrf.mxu0
    %6385 = vdwg.mxu0
    %6386 = vmatpush.bf16.msra.mxu0 %v6097
    %6387 = vmatpush.bf16.msra.mxu0 %v6096
    %6388 = vmatpush.bf16.msra.mxu0 %v6095
    %6389 = vmatpush.bf16.msra.mxu0 %v6094
    %6390 = vmatpush.bf16.msra.mxu0 %v6093
    %6391 = vmatpush.bf16.msra.mxu0 %v6092
    %6392 = vmatpush.bf16.msra.mxu0 %v6091
    %6393 = vmatpush.bf16.msra.mxu0 %v6090
    %6394 = vmatmul.bf16.gmra.mxu0 %v5246
    %v6395 = vpop.f32.mrf.mxu0
    %v6396 = vadd.f32 %v6383, %v6395
    %v6397 = vpop.f32.mrf.mxu0
    %6398 = vdwg.mxu0
    %6399 = vmatpush.bf16.msra.mxu0 %v6105
    %6400 = vmatpush.bf16.msra.mxu0 %v6104
    %6401 = vmatpush.bf16.msra.mxu0 %v6103
    %6402 = vmatpush.bf16.msra.mxu0 %v6102
    %6403 = vmatpush.bf16.msra.mxu0 %v6101
    %6404 = vmatpush.bf16.msra.mxu0 %v6100
    %6405 = vmatpush.bf16.msra.mxu0 %v6099
    %6406 = vmatpush.bf16.msra.mxu0 %v6098
    %6407 = vmatmul.bf16.gmra.mxu0 %v5247
    %v6408 = vpop.f32.mrf.mxu0
    %v6409 = vadd.f32 %v6396, %v6408
    %v6410 = vpop.f32.mrf.mxu0
    %6411 = vdwg.mxu0
    %6412 = vmatpush.bf16.msra.mxu0 %v6113
    %6413 = vmatpush.bf16.msra.mxu0 %v6112
    %6414 = vmatpush.bf16.msra.mxu0 %v6111
    %6415 = vmatpush.bf16.msra.mxu0 %v6110
    %6416 = vmatpush.bf16.msra.mxu0 %v6109
    %6417 = vmatpush.bf16.msra.mxu0 %v6108
    %6418 = vmatpush.bf16.msra.mxu0 %v6107
    %6419 = vmatpush.bf16.msra.mxu0 %v6106
    %6420 = vmatmul.bf16.gmra.mxu0 %v5248
    %v6421 = vpop.f32.mrf.mxu0
    %v6422 = vadd.f32 %v6409, %v6421
    %v6423 = vpop.f32.mrf.mxu0
    %6424 = vdwg.mxu0
    %6425 = vmatpush.bf16.msra.mxu0 %v6121
    %6426 = vmatpush.bf16.msra.mxu0 %v6120
    %6427 = vmatpush.bf16.msra.mxu0 %v6119
    %6428 = vmatpush.bf16.msra.mxu0 %v6118
    %6429 = vmatpush.bf16.msra.mxu0 %v6117
    %6430 = vmatpush.bf16.msra.mxu0 %v6116
    %6431 = vmatpush.bf16.msra.mxu0 %v6115
    %6432 = vmatpush.bf16.msra.mxu0 %v6114
    %6433 = vmatmul.bf16.gmra.mxu0 %v5249
    %v6434 = vpop.f32.mrf.mxu0
    %v6435 = vadd.f32 %v6422, %v6434
    %v6436 = vpop.f32.mrf.mxu0
    %6437 = vdwg.mxu0
    %6438 = vmatpush.bf16.msra.mxu0 %v6129
    %6439 = vmatpush.bf16.msra.mxu0 %v6128
    %6440 = vmatpush.bf16.msra.mxu0 %v6127
    %6441 = vmatpush.bf16.msra.mxu0 %v6126
    %6442 = vmatpush.bf16.msra.mxu0 %v6125
    %6443 = vmatpush.bf16.msra.mxu0 %v6124
    %6444 = vmatpush.bf16.msra.mxu0 %v6123
    %6445 = vmatpush.bf16.msra.mxu0 %v6122
    %6446 = vmatmul.bf16.gmra.mxu0 %v5250
    %v6447 = vpop.f32.mrf.mxu0
    %v6448 = vadd.f32 %v6435, %v6447
    %v6449 = vpop.f32.mrf.mxu0
    %6450 = vdwg.mxu0
    %6451 = vmatpush.bf16.msra.mxu0 %v6137
    %6452 = vmatpush.bf16.msra.mxu0 %v6136
    %6453 = vmatpush.bf16.msra.mxu0 %v6135
    %6454 = vmatpush.bf16.msra.mxu0 %v6134
    %6455 = vmatpush.bf16.msra.mxu0 %v6133
    %6456 = vmatpush.bf16.msra.mxu0 %v6132
    %6457 = vmatpush.bf16.msra.mxu0 %v6131
    %6458 = vmatpush.bf16.msra.mxu0 %v6130
    %6459 = vmatmul.bf16.gmra.mxu0 %v5251
    %v6460 = vpop.f32.mrf.mxu0
    %v6461 = vadd.f32 %v6448, %v6460
    %v6462 = vpop.f32.mrf.mxu0
    %6463 = vdwg.mxu0
    %6464 = vmatpush.bf16.msra.mxu0 %v6145
    %6465 = vmatpush.bf16.msra.mxu0 %v6144
    %6466 = vmatpush.bf16.msra.mxu0 %v6143
    %6467 = vmatpush.bf16.msra.mxu0 %v6142
    %6468 = vmatpush.bf16.msra.mxu0 %v6141
    %6469 = vmatpush.bf16.msra.mxu0 %v6140
    %6470 = vmatpush.bf16.msra.mxu0 %v6139
    %6471 = vmatpush.bf16.msra.mxu0 %v6138
    %6472 = vmatmul.bf16.gmra.mxu0 %v5252
    %v6473 = vpop.f32.mrf.mxu0
    %v6474 = vadd.f32 %v6461, %v6473
    %v6475 = vpop.f32.mrf.mxu0
    %6476 = vdwg.mxu0
    %6477 = vmatpush.bf16.msra.mxu0 %v6153
    %6478 = vmatpush.bf16.msra.mxu0 %v6152
    %6479 = vmatpush.bf16.msra.mxu0 %v6151
    %6480 = vmatpush.bf16.msra.mxu0 %v6150
    %6481 = vmatpush.bf16.msra.mxu0 %v6149
    %6482 = vmatpush.bf16.msra.mxu0 %v6148
    %6483 = vmatpush.bf16.msra.mxu0 %v6147
    %6484 = vmatpush.bf16.msra.mxu0 %v6146
    %6485 = vmatmul.bf16.gmra.mxu0 %v5253
    %v6486 = vpop.f32.mrf.mxu0
    %v6487 = vadd.f32 %v6474, %v6486
    %v6488 = vpop.f32.mrf.mxu0
    %6489 = vdwg.mxu0
    %6490 = vst [vmem:[#allocation17] sm:$0xff] %v6487
    // Predicated region
    $region74: #{tpu_custom_call.1} parent=1 // pred_check
      _
    $region75: #{tpu_custom_call.1} parent=1 // pred_check_branch
      %6492 = sbr.rel (0) target = $region77
    $region76: #{tpu_custom_call.1} parent=1 // pred_region
      %6494 = vsyncadd [#allocation4], 0
      %s6496 = sshll.u32 [#allocation17], 4
      %s6497 = int_to_ptr.vmem [resolvable:$true] %s6496
      %s6498 = sshll.u32 %s9, 4
      %s6499 = int_to_ptr.hbm [resolvable:$true] %s6498
      %6501 = dma.vmem_to_hbm [thread:$0]  %s6497, 128, %s6499, [#allocation4]
    $region77: #{tpu_custom_call.1} parent=1 // pred_fallthru
      _
    // Predicated region
    $region78: #{tpu_custom_call.1} parent=1 // pred_check
      _
    $region79: #{tpu_custom_call.1} parent=1 // pred_check_branch
      %6503 = sbr.rel (0) target = $region81
    $region80: #{tpu_custom_call.1} parent=1 // pred_region
      %6505 = dma.done [#allocation4], 128
    $region81: #{tpu_custom_call.1} parent=1 // pred_fallthru
      _
    %6506 = vsyncpa [#allocation3], 1
    %6507 = vsyncpa [#allocation6], 1
    %6508 = vsyncpa [#allocation9], 1
    %6509 = vsyncpa [#allocation12], 1
    %6510 = vsyncpa [#allocation15], 1
    %6511 = vsyncpa [#allocation4], 1

</llo_original>
